<compile_context>
chip_gen: v7x
topology: tpu7x:2x2x1
jax: 0.10.0
libtpu: 0.0.40
codegen_flags: <defaults>
</compile_context>

<pallas_src>
import jax
import jax.numpy as jnp
from jax.experimental import pallas as pl
from jax.experimental.pallas import tpu as pltpu


# ----------------------------------------------------------------------------
# Stage 1 kernel: pointwise-conv MLP + fused (hoisted) ReLU / max-pool.
# x tile is points-major (block_b*N, k); one dot per layer; pooled output is
# lane-dense (block_b, 512).
# ----------------------------------------------------------------------------
def conv_pool_kernel(x_ref, w1_ref, b1_ref, w2_ref, b2_ref, w3_ref, b3_ref,
                     feat_ref):
    cdt = w1_ref.dtype                         # compute dtype (bf16 or f32)
    block_b, c_out = feat_ref.shape            # (block_b, 512)
    n_pts = x_ref.shape[0] // block_b          # N points per batch element

    x = x_ref[...]                                              # (block_b*N, k), pre-cast
    h = jnp.dot(x, w1_ref[...], preferred_element_type=jnp.float32) + b1_ref[...]
    h = jnp.maximum(h, 0.0).astype(cdt)                         # (block_b*N, 64)
    h = jnp.dot(h, w2_ref[...], preferred_element_type=jnp.float32) + b2_ref[...]
    h = jnp.maximum(h, 0.0).astype(cdt)                         # (block_b*N, 128)

    # conv3 raw matmul output; bias + ReLU hoisted PAST the max (exact).
    s = jnp.dot(h, w3_ref[...], preferred_element_type=jnp.float32)   # (block_b*N, 512) f32
    mx = jnp.max(s.reshape(block_b, n_pts, c_out), axis=1)            # (block_b, 512)
    feat_ref[...] = jnp.maximum(mx + b3_ref[...], 0.0)                # lane-dense store


# ----------------------------------------------------------------------------
# Stage 2 kernel: fc head for all B rows at once (M = B).  Identity already
# folded into the fc3 bias on the host.
# ----------------------------------------------------------------------------
def head_kernel(feat_ref, wf1_ref, bf1_ref, wf2_ref, bf2_ref, wf3_ref, bf3_ref,
                out_ref):
    cdt = wf1_ref.dtype
    f = feat_ref[...].astype(cdt)                                 # (B, 512)
    g = jnp.dot(f, wf1_ref[...], preferred_element_type=jnp.float32) + bf1_ref[...]
    g = jnp.maximum(g, 0.0).astype(cdt)                           # (B, 256)
    g = jnp.dot(g, wf2_ref[...], preferred_element_type=jnp.float32) + bf2_ref[...]
    g = jnp.maximum(g, 0.0).astype(cdt)                           # (B, 128)
    out_ref[...] = jnp.dot(g, wf3_ref[...],
                           preferred_element_type=jnp.float32) + bf3_ref[...]


# ----------------------------------------------------------------------------
# Host wrapper: one-off parameter / input packing + the two pallas_calls.
# ----------------------------------------------------------------------------
def stnkd_forward(x_bkn, params, k, *, block_b=None,
                  compute_dtype=jnp.bfloat16, vmem_limit_bytes=None):
    """x_bkn: (B, k, N) float32 in the PyTorch Conv1d NCW layout. Returns (B, k, k)."""
    B, k_in, N = x_bkn.shape
    assert k_in == k
    if block_b is None:
        block_b = B
    assert B % block_b == 0, "B must be divisible by block_b"
    # keep blocks tile-friendly: batch block either covers the whole batch or
    # is sublane-aligned; N multiple of 8 keeps the in-kernel reshape free.
    assert block_b == B or block_b % 8 == 0
    assert N % 8 == 0

    (w1, b1), (w2, b2), (w3, b3), (wf1, bf1), (wf2, bf2), (wf3, bf3) = params
    cdt = compute_dtype

    # --- one-off host-side packing -------------------------------------------
    # x: NCW (B, k, N) -> points-major (B*N, k), pre-cast to the compute dtype
    # (halves the stage-1 input DMA in the bf16 path).
    x_pm = jnp.transpose(x_bkn, (0, 2, 1)).reshape(B * N, k).astype(cdt)
    # conv weights transposed to (in, out); biases as f32 rows.
    w1t, w2t, w3t = w1.T.astype(cdt), w2.T.astype(cdt), w3.T.astype(cdt)
    b1r, b2r, b3r = b1.reshape(1, -1), b2.reshape(1, -1), b3.reshape(1, -1)
    # fc weights transposed to (in, out); identity folded into the fc3 bias.
    wf1t, wf2t, wf3t = wf1.T.astype(cdt), wf2.T.astype(cdt), wf3.T.astype(cdt)
    bf1r, bf2r = bf1.reshape(1, -1), bf2.reshape(1, -1)
    bf3r = bf3.reshape(1, -1) + jnp.eye(k, dtype=jnp.float32).reshape(1, k * k)

    c_out = w3.shape[0]   # 512

    def full_spec(arr):
        nd = arr.ndim
        return pl.BlockSpec(arr.shape, lambda *_g, _nd=nd: (0,) * _nd)

    # --- stage 1: conv MLP + hoisted ReLU / max-pool -> (B, 512) lane-dense ---
    feat = pl.pallas_call(
        conv_pool_kernel,
        out_shape=jax.ShapeDtypeStruct((B, c_out), jnp.float32),
        grid_spec=pltpu.PrefetchScalarGridSpec(
            num_scalar_prefetch=0,
            grid=(B // block_b,),
            in_specs=[pl.BlockSpec((block_b * N, k), lambda b: (b, 0)),
                      full_spec(w1t), full_spec(b1r),
                      full_spec(w2t), full_spec(b2r),
                      full_spec(w3t), full_spec(b3r)],
            out_specs=pl.BlockSpec((block_b, c_out), lambda b: (b, 0)),
        ),
        compiler_params=pltpu.CompilerParams(
            dimension_semantics=("parallel",),
            vmem_limit_bytes=vmem_limit_bytes),
    )(x_pm, w1t, b1r, w2t, b2r, w3t, b3r)

    # --- stage 2: fc head, all B rows in one MXU pass --------------------------
    out = pl.pallas_call(
        head_kernel,
        out_shape=jax.ShapeDtypeStruct((B, k * k), jnp.float32),
        grid_spec=pltpu.PrefetchScalarGridSpec(
            num_scalar_prefetch=0,
            grid=(1,),
            in_specs=[full_spec(feat), full_spec(wf1t), full_spec(bf1r),
                      full_spec(wf2t), full_spec(bf2r),
                      full_spec(wf3t), full_spec(bf3r)],
            out_specs=pl.BlockSpec((B, k * k), lambda i: (0, 0)),
        ),
        compiler_params=pltpu.CompilerParams(
            dimension_semantics=("arbitrary",)),
    )(feat, wf1t, bf1r, wf2t, bf2r, wf3t, bf3r)

    return out.reshape(B, k, k)


# ----------------------------------------------------------------------------
# Deterministic synthetic parameters (mirrors STNkd.__init__), BN folded.
# ----------------------------------------------------------------------------
def fold_bn(w, b, gamma, beta, mean, var, eps=1e-5):
    scale = gamma / jnp.sqrt(var + eps)
    return w * scale[:, None], (b - mean) * scale + beta


def make_params(key, k):
    keys = jax.random.split(key, 32)
    ki = iter(range(32))

    def w(shape, scale=0.05):
        return scale * jax.random.normal(keys[next(ki)], shape, jnp.float32)

    def bn(c):
        gamma = 1.0 + 0.1 * jax.random.normal(keys[next(ki)], (c,), jnp.float32)
        beta = 0.1 * jax.random.normal(keys[next(ki)], (c,), jnp.float32)
        mean = 0.1 * jax.random.normal(keys[next(ki)], (c,), jnp.float32)
        var = 1.0 + 0.1 * jax.random.uniform(keys[next(ki)], (c,), jnp.float32)
        return gamma, beta, mean, var

    conv1 = (w((64, k)), w((64,)))
    conv2 = (w((128, 64)), w((128,)))
    conv3 = (w((512, 128)), w((512,)))
    fc1 = (w((256, 512)), w((256,)))
    fc2 = (w((128, 256)), w((128,)))
    fc3 = (w((k * k, 128)), w((k * k,)))

    c1 = fold_bn(*conv1, *bn(64))
    c2 = fold_bn(*conv2, *bn(128))
    c3 = fold_bn(*conv3, *bn(512))
    f1 = fold_bn(*fc1, *bn(256))
    f2 = fold_bn(*fc2, *bn(128))
    f3 = fc3                                 # no BN after fc3
    return [c1, c2, c3, f1, f2, f3]


# ----------------------------------------------------------------------------
# Pure-JAX reference (same folded parameters, pure f32).
# ----------------------------------------------------------------------------
def stnkd_reference(x_bkn, params, k):
    (w1, b1), (w2, b2), (w3, b3), (wf1, bf1), (wf2, bf2), (wf3, bf3) = params
    x = jnp.transpose(x_bkn, (0, 2, 1))             # (B, N, k)
    h = jax.nn.relu(x @ w1.T + b1)
    h = jax.nn.relu(h @ w2.T + b2)
    h = jax.nn.relu(h @ w3.T + b3)
    feat = jnp.max(h, axis=1)                        # (B, 512)
    f = jax.nn.relu(feat @ wf1.T + bf1)
    f = jax.nn.relu(f @ wf2.T + bf2)
    t = f @ wf3.T + bf3 + jnp.eye(k, dtype=jnp.float32).reshape(1, k * k)
    return t.reshape(-1, k, k)


if __name__ == "__main__":
    # Small shapes: batch=16, k=16 feature dims, 128 points.
    # block_b=8 -> a 2-step "parallel" stage-1 grid with sublane-aligned blocks.
    B, K, N = 16, 16, 128

    key = jax.random.PRNGKey(0)
    k_x, k_p = jax.random.split(key)
    x = jax.random.normal(k_x, (B, K, N), jnp.float32)   # PyTorch Conv1d layout (B, k, N)
    params = make_params(k_p, K)

    ref = stnkd_reference(x, params, K)

    # exact-semantics path (f32 compute everywhere)
    out_f32 = jax.block_until_ready(
        stnkd_forward(x, params, K, block_b=8, compute_dtype=jnp.float32))
    assert out_f32.shape == (B, K, K), out_f32.shape
    assert jnp.allclose(out_f32, ref, atol=1e-3, rtol=1e-3), "f32 kernel mismatch"

    # perf path (bf16 weights/activations, f32 MXU accumulation) — v6e/v7x config
    out_bf16 = jax.block_until_ready(
        stnkd_forward(x, params, K, block_b=8, compute_dtype=jnp.bfloat16))
    assert jnp.allclose(out_bf16, ref, atol=5e-2, rtol=5e-2), "bf16 kernel mismatch"

    print("KERNEL_OK")
</pallas_src>

<mosaic_0001>
module attributes {stable_mosaic.version = 11 : i64} {
  func.func @conv_pool_kernel(%arg0: i32, %arg1: memref<1024x16xf32, #tpu.memory_space<vmem>>, %arg2: memref<16x64xf32, #tpu.memory_space<vmem>>, %arg3: memref<1x64xf32, #tpu.memory_space<vmem>>, %arg4: memref<64x128xf32, #tpu.memory_space<vmem>>, %arg5: memref<1x128xf32, #tpu.memory_space<vmem>>, %arg6: memref<128x512xf32, #tpu.memory_space<vmem>>, %arg7: memref<1x512xf32, #tpu.memory_space<vmem>>, %arg8: memref<8x512xf32, #tpu.memory_space<vmem>>) attributes {dimension_semantics = [#tpu.dimension_semantics<parallel>], iteration_bounds = array<i64: 2>, scalar_prefetch = 0 : i64, scratch_operands = 0 : i64, tpu.core_type = #tpu.core_type<tc>, window_params = [{transform_indices = @transform_0, window_bounds = array<i64: 1024, 16>}, {pipeline_mode = #tpu.pipeline_mode<synchronous>, transform_indices = @transform_1, window_bounds = array<i64: 16, 64>}, {pipeline_mode = #tpu.pipeline_mode<synchronous>, transform_indices = @transform_2, window_bounds = array<i64: 1, 64>}, {pipeline_mode = #tpu.pipeline_mode<synchronous>, transform_indices = @transform_3, window_bounds = array<i64: 64, 128>}, {pipeline_mode = #tpu.pipeline_mode<synchronous>, transform_indices = @transform_4, window_bounds = array<i64: 1, 128>}, {pipeline_mode = #tpu.pipeline_mode<synchronous>, transform_indices = @transform_5, window_bounds = array<i64: 128, 512>}, {pipeline_mode = #tpu.pipeline_mode<synchronous>, transform_indices = @transform_6, window_bounds = array<i64: 1, 512>}, {transform_indices = @transform_7, window_bounds = array<i64: 8, 512>}]} {
    %c0 = arith.constant 0 : index
    %c0_0 = arith.constant 0 : index
    %0 = vector.load %arg1[%c0, %c0_0] : memref<1024x16xf32, #tpu.memory_space<vmem>>, vector<1024x16xf32>
    %c0_1 = arith.constant 0 : index
    %c0_2 = arith.constant 0 : index
    %1 = vector.load %arg2[%c0_1, %c0_2] : memref<16x64xf32, #tpu.memory_space<vmem>>, vector<16x64xf32>
    %cst = arith.constant dense<0.000000e+00> : vector<1024x64xf32>
    %2 = tpu.matmul %0, %1, %cst {dimension_numbers = #tpu.dot_dimension_numbers<[1], [0], [0], [1], [0, 0, 1, 1], [], []>} : vector<1024x16xf32>, vector<16x64xf32>, vector<1024x64xf32> -> vector<1024x64xf32>
    %c0_3 = arith.constant 0 : index
    %c0_4 = arith.constant 0 : index
    %3 = vector.load %arg3[%c0_3, %c0_4] : memref<1x64xf32, #tpu.memory_space<vmem>>, vector<1x64xf32>
    %4 = vector.broadcast %3 : vector<1x64xf32> to vector<1024x64xf32>
    %5 = arith.addf %2, %4 : vector<1024x64xf32>
    %cst_5 = arith.constant 0.000000e+00 : f32
    %6 = vector.broadcast %cst_5 : f32 to vector<1024x64xf32>
    %7 = arith.maximumf %5, %6 : vector<1024x64xf32>
    %c0_6 = arith.constant 0 : index
    %c0_7 = arith.constant 0 : index
    %8 = vector.load %arg4[%c0_6, %c0_7] : memref<64x128xf32, #tpu.memory_space<vmem>>, vector<64x128xf32>
    %cst_8 = arith.constant dense<0.000000e+00> : vector<1024x128xf32>
    %9 = tpu.matmul %7, %8, %cst_8 {dimension_numbers = #tpu.dot_dimension_numbers<[1], [0], [0], [1], [0, 0, 1, 1], [], []>} : vector<1024x64xf32>, vector<64x128xf32>, vector<1024x128xf32> -> vector<1024x128xf32>
    %c0_9 = arith.constant 0 : index
    %c0_10 = arith.constant 0 : index
    %10 = vector.load %arg5[%c0_9, %c0_10] : memref<1x128xf32, #tpu.memory_space<vmem>>, vector<1x128xf32>
    %11 = vector.broadcast %10 : vector<1x128xf32> to vector<1024x128xf32>
    %12 = arith.addf %9, %11 : vector<1024x128xf32>
    %cst_11 = arith.constant 0.000000e+00 : f32
    %13 = vector.broadcast %cst_11 : f32 to vector<1024x128xf32>
    %14 = arith.maximumf %12, %13 : vector<1024x128xf32>
    %c0_12 = arith.constant 0 : index
    %c0_13 = arith.constant 0 : index
    %15 = vector.load %arg6[%c0_12, %c0_13] : memref<128x512xf32, #tpu.memory_space<vmem>>, vector<128x512xf32>
    %cst_14 = arith.constant dense<0.000000e+00> : vector<1024x512xf32>
    %16 = tpu.matmul %14, %15, %cst_14 {dimension_numbers = #tpu.dot_dimension_numbers<[1], [0], [0], [1], [0, 0, 1, 1], [], []>} : vector<1024x128xf32>, vector<128x512xf32>, vector<1024x512xf32> -> vector<1024x512xf32>
    %17 = vector.shape_cast %16 : vector<1024x512xf32> to vector<8x128x512xf32>
    %cst_15 = arith.constant dense<0xFF800000> : vector<8x512xf32>
    %18 = vector.multi_reduction <maximumf>, %17, %cst_15 [1] : vector<8x128x512xf32> to vector<8x512xf32>
    %c0_16 = arith.constant 0 : index
    %c0_17 = arith.constant 0 : index
    %19 = vector.load %arg7[%c0_16, %c0_17] : memref<1x512xf32, #tpu.memory_space<vmem>>, vector<1x512xf32>
    %20 = vector.broadcast %19 : vector<1x512xf32> to vector<8x512xf32>
    %21 = arith.addf %18, %20 : vector<8x512xf32>
    %cst_18 = arith.constant 0.000000e+00 : f32
    %22 = vector.broadcast %cst_18 : f32 to vector<8x512xf32>
    %23 = arith.maximumf %21, %22 : vector<8x512xf32>
    %c0_19 = arith.constant 0 : index
    %c0_20 = arith.constant 0 : index
    %24 = vector.load %arg8[%c0_19, %c0_20] : memref<8x512xf32, #tpu.memory_space<vmem>>, vector<8x512xf32>
    tpu.vector_store %arg8[%c0_19, %c0_20], %23 {strides = array<i32>} : memref<8x512xf32, #tpu.memory_space<vmem>>, vector<8x512xf32>,
    return
  }
  func.func @transform_0(%arg0: i32) -> (i32, i32) {
    %c0_i32 = arith.constant 0 : i32
    %c0_i32_0 = arith.constant 0 : i32
    return %arg0, %c0_i32 : i32, i32
  }
  func.func @transform_1(%arg0: i32) -> (i32, i32) {
    %c0_i32 = arith.constant 0 : i32
    %c0_i32_0 = arith.constant 0 : i32
    %c0_i32_1 = arith.constant 0 : i32
    return %c0_i32, %c0_i32_0 : i32, i32
  }
  func.func @transform_2(%arg0: i32) -> (i32, i32) {
    %c0_i32 = arith.constant 0 : i32
    %c0_i32_0 = arith.constant 0 : i32
    %c0_i32_1 = arith.constant 0 : i32
    return %c0_i32, %c0_i32_0 : i32, i32
  }
  func.func @transform_3(%arg0: i32) -> (i32, i32) {
    %c0_i32 = arith.constant 0 : i32
    %c0_i32_0 = arith.constant 0 : i32
    %c0_i32_1 = arith.constant 0 : i32
    return %c0_i32, %c0_i32_0 : i32, i32
  }
  func.func @transform_4(%arg0: i32) -> (i32, i32) {
    %c0_i32 = arith.constant 0 : i32
    %c0_i32_0 = arith.constant 0 : i32
    %c0_i32_1 = arith.constant 0 : i32
    return %c0_i32, %c0_i32_0 : i32, i32
  }
  func.func @transform_5(%arg0: i32) -> (i32, i32) {
    %c0_i32 = arith.constant 0 : i32
    %c0_i32_0 = arith.constant 0 : i32
    %c0_i32_1 = arith.constant 0 : i32
    return %c0_i32, %c0_i32_0 : i32, i32
  }
  func.func @transform_6(%arg0: i32) -> (i32, i32) {
    %c0_i32 = arith.constant 0 : i32
    %c0_i32_0 = arith.constant 0 : i32
    %c0_i32_1 = arith.constant 0 : i32
    return %c0_i32, %c0_i32_0 : i32, i32
  }
  func.func @transform_7(%arg0: i32) -> (i32, i32) {
    %c0_i32 = arith.constant 0 : i32
    %c0_i32_0 = arith.constant 0 : i32
    return %arg0, %c0_i32 : i32, i32
  }
}

</mosaic_0001>

<llo_original>
// kernel: tpu_custom_call.1
$region0: #{tpu_custom_call.1}
  #allocation0 [shape = 'u32[]', space=smem, size = 0x4, offset = 0x4, fixed_abs, tag = 'smem constant byte address 0x4 - core index']
  #allocation1 [shape = 'u32[144,128]{1,0:T(1,128)}', space=vmem, size = 0x12000, scoped, tag = 'internal scratch']
  %s0 = inlined_call_operand.vmem [shape: f32[2048,16], index: 0, kind: input, shape index: {}]
  %s1 = inlined_call_operand.vmem [shape: f32[16,64], index: 1, kind: input, shape index: {}]
  %s2 = inlined_call_operand.vmem [shape: f32[1,64], index: 2, kind: input, shape index: {}]
  %s3 = inlined_call_operand.vmem [shape: f32[64,128], index: 3, kind: input, shape index: {}]
  %s4 = inlined_call_operand.vmem [shape: f32[1,128], index: 4, kind: input, shape index: {}]
  %s5 = inlined_call_operand.vmem [shape: f32[128,512], index: 5, kind: input, shape index: {}]
  %s6 = inlined_call_operand.vmem [shape: f32[1,512], index: 6, kind: input, shape index: {}]
  %s7 = inlined_call_operand.hbm [shape: f32[16,512], index: 7, kind: output, shape index: {}]
  %s8 = sld [smem:[#allocation0]]
  $region61: #{tpu_custom_call.1} parent=0
    _
  %s10 = ssub.s32 1, %s8
  %s11 = scalar_select 0, %s10, %s8
  $region1: #{tpu_custom_call.1} parent=0
    #allocation2 [shape = 'u8[32768]{0}', space=vmem, size = 0x8000, scoped, tag = 'output window, operand 0']
    #allocation3 [shape = 's32[2]{0}', space=sflag, size = 0x8, scoped, tag = 'scoped memory for tpu_custom_call.1']
    %12 = vsyncpa [#allocation3], 0
    %s13 = scalar_lea.sflag [#allocation3], 1
    %14 = vsyncpa %s13, 0
    loop: start=0, step=1, limit=4
    $region2: #{tpu_custom_call.1} parent=1 // loop_pre_header
      _
    $region3: #{tpu_custom_call.1} parent=1 // loop_header
      %s16 = sphi 0, %s20
      %p17 = scmp.ge.s32.totalorder %s16, 4
      %s26 = sphi 0, %s28
      %s29 = sphi 0, %s26
      %s30 = sphi 0, %s29
      %s46 = sphi 0, %s30
      %s50 = sphi 0, %s50
      %s52 = sphi 0, %s50
      %s53 = sphi 0, %s52
      %s67 = sphi 0, %s53
      %s71 = sphi 0, %s71
      %s73 = sphi 0, %s71
      %s74 = sphi 0, %s73
      %s88 = sphi 0, %s74
      %s92 = sphi 0, %s92
      %s94 = sphi 0, %s92
      %s95 = sphi 0, %s94
      %s109 = sphi 0, %s95
      %s113 = sphi 0, %s113
      %s115 = sphi 0, %s113
      %s116 = sphi 0, %s115
      %s130 = sphi 0, %s116
      %s134 = sphi 0, %s134
      %s136 = sphi 0, %s134
      %s137 = sphi 0, %s136
      %s151 = sphi 0, %s137
      %s155 = sphi 0, %s155
      %s157 = sphi 0, %s155
      %s158 = sphi 0, %s157
      %s172 = sphi 0, %s158
      %s178 = sphi 0, %s180
      %s181 = sphi 0, %s178
      %s182 = sphi 0, %s181
      %s198 = sphi 0, %s182
    $region4: #{tpu_custom_call.1} parent=1 // loop_header_branch
      %19 = sbr.rel (%p17) target = $region8
    $region5: #{tpu_custom_call.1} parent=1 // loop_body
      %s21 = ssub.s32 %s16, 1
      %s22 = ssub.s32 %s16, 2
      %s23 = sadd.s32 %s16, 1
      %s24 = ssub.s32 %s16, %s23
      %p25 = scmp.eq.s32.totalorder %s24, 0
      %s27 = sadd.s32 %s26, 1
      %s28 = scalar_select %p25, %s26, %s27
      %p31 = pneg %p25
      %p32 = scmp.eq.s32.totalorder %s16, 1
      %p33 = por %p31, %p32
      %p34 = scmp.ne.s32.totalorder %s26, %s29
      %p35 = scmp.eq.s32.totalorder %s16, 0
      %p36 = por %p34, %p35
      %p37 = scmp.ne.s32.totalorder %s26, %s29
      %p38 = scmp.eq.s32.totalorder %s21, 1
      %p39 = por %p37, %p38
      %p40 = scmp.ne.s32.totalorder %s29, %s30
      %p41 = scmp.eq.s32.totalorder %s21, 0
      %p42 = por %p40, %p41
      %p43 = scmp.ne.s32.totalorder %s29, %s30
      %p44 = scmp.eq.s32.totalorder %s22, 1
      %p45 = por %p43, %p44
      %p47 = scmp.ne.s32.totalorder %s30, %s46
      %p48 = scmp.eq.s32.totalorder %s22, 0
      %p49 = por %p47, %p48
      %s51 = sadd.s32 %s50, 1
      %p54 = scmp.eq.s32.totalorder %s16, 1
      %p55 = scmp.ne.s32.totalorder %s50, %s52
      %p56 = scmp.eq.s32.totalorder %s16, 0
      %p57 = por %p55, %p56
      %p58 = scmp.ne.s32.totalorder %s50, %s52
      %p59 = scmp.eq.s32.totalorder %s21, 1
      %p60 = por %p58, %p59
      %p61 = scmp.ne.s32.totalorder %s52, %s53
      %p62 = scmp.eq.s32.totalorder %s21, 0
      %p63 = por %p61, %p62
      %p64 = scmp.ne.s32.totalorder %s52, %s53
      %p65 = scmp.eq.s32.totalorder %s22, 1
      %p66 = por %p64, %p65
      %p68 = scmp.ne.s32.totalorder %s53, %s67
      %p69 = scmp.eq.s32.totalorder %s22, 0
      %p70 = por %p68, %p69
      %s72 = sadd.s32 %s71, 1
      %p75 = scmp.eq.s32.totalorder %s16, 1
      %p76 = scmp.ne.s32.totalorder %s71, %s73
      %p77 = scmp.eq.s32.totalorder %s16, 0
      %p78 = por %p76, %p77
      %p79 = scmp.ne.s32.totalorder %s71, %s73
      %p80 = scmp.eq.s32.totalorder %s21, 1
      %p81 = por %p79, %p80
      %p82 = scmp.ne.s32.totalorder %s73, %s74
      %p83 = scmp.eq.s32.totalorder %s21, 0
      %p84 = por %p82, %p83
      %p85 = scmp.ne.s32.totalorder %s73, %s74
      %p86 = scmp.eq.s32.totalorder %s22, 1
      %p87 = por %p85, %p86
      %p89 = scmp.ne.s32.totalorder %s74, %s88
      %p90 = scmp.eq.s32.totalorder %s22, 0
      %p91 = por %p89, %p90
      %s93 = sadd.s32 %s92, 1
      %p96 = scmp.eq.s32.totalorder %s16, 1
      %p97 = scmp.ne.s32.totalorder %s92, %s94
      %p98 = scmp.eq.s32.totalorder %s16, 0
      %p99 = por %p97, %p98
      %p100 = scmp.ne.s32.totalorder %s92, %s94
      %p101 = scmp.eq.s32.totalorder %s21, 1
      %p102 = por %p100, %p101
      %p103 = scmp.ne.s32.totalorder %s94, %s95
      %p104 = scmp.eq.s32.totalorder %s21, 0
      %p105 = por %p103, %p104
      %p106 = scmp.ne.s32.totalorder %s94, %s95
      %p107 = scmp.eq.s32.totalorder %s22, 1
      %p108 = por %p106, %p107
      %p110 = scmp.ne.s32.totalorder %s95, %s109
      %p111 = scmp.eq.s32.totalorder %s22, 0
      %p112 = por %p110, %p111
      %s114 = sadd.s32 %s113, 1
      %p117 = scmp.eq.s32.totalorder %s16, 1
      %p118 = scmp.ne.s32.totalorder %s113, %s115
      %p119 = scmp.eq.s32.totalorder %s16, 0
      %p120 = por %p118, %p119
      %p121 = scmp.ne.s32.totalorder %s113, %s115
      %p122 = scmp.eq.s32.totalorder %s21, 1
      %p123 = por %p121, %p122
      %p124 = scmp.ne.s32.totalorder %s115, %s116
      %p125 = scmp.eq.s32.totalorder %s21, 0
      %p126 = por %p124, %p125
      %p127 = scmp.ne.s32.totalorder %s115, %s116
      %p128 = scmp.eq.s32.totalorder %s22, 1
      %p129 = por %p127, %p128
      %p131 = scmp.ne.s32.totalorder %s116, %s130
      %p132 = scmp.eq.s32.totalorder %s22, 0
      %p133 = por %p131, %p132
      %s135 = sadd.s32 %s134, 1
      %p138 = scmp.eq.s32.totalorder %s16, 1
      %p139 = scmp.ne.s32.totalorder %s134, %s136
      %p140 = scmp.eq.s32.totalorder %s16, 0
      %p141 = por %p139, %p140
      %p142 = scmp.ne.s32.totalorder %s134, %s136
      %p143 = scmp.eq.s32.totalorder %s21, 1
      %p144 = por %p142, %p143
      %p145 = scmp.ne.s32.totalorder %s136, %s137
      %p146 = scmp.eq.s32.totalorder %s21, 0
      %p147 = por %p145, %p146
      %p148 = scmp.ne.s32.totalorder %s136, %s137
      %p149 = scmp.eq.s32.totalorder %s22, 1
      %p150 = por %p148, %p149
      %p152 = scmp.ne.s32.totalorder %s137, %s151
      %p153 = scmp.eq.s32.totalorder %s22, 0
      %p154 = por %p152, %p153
      %s156 = sadd.s32 %s155, 1
      %p159 = scmp.eq.s32.totalorder %s16, 1
      %p160 = scmp.ne.s32.totalorder %s155, %s157
      %p161 = scmp.eq.s32.totalorder %s16, 0
      %p162 = por %p160, %p161
      %p163 = scmp.ne.s32.totalorder %s155, %s157
      %p164 = scmp.eq.s32.totalorder %s21, 1
      %p165 = por %p163, %p164
      %p166 = scmp.ne.s32.totalorder %s157, %s158
      %p167 = scmp.eq.s32.totalorder %s21, 0
      %p168 = por %p166, %p167
      %p169 = scmp.ne.s32.totalorder %s157, %s158
      %p170 = scmp.eq.s32.totalorder %s22, 1
      %p171 = por %p169, %p170
      %p173 = scmp.ne.s32.totalorder %s158, %s172
      %p174 = scmp.eq.s32.totalorder %s22, 0
      %p175 = por %p173, %p174
      %s176 = ssub.s32 %s16, %s23
      %p177 = scmp.eq.s32.totalorder %s176, 0
      %s179 = sadd.s32 %s178, 1
      %s180 = scalar_select %p177, %s178, %s179
      %p183 = pneg %p177
      %p184 = scmp.eq.s32.totalorder %s16, 1
      %p185 = por %p183, %p184
      %p186 = scmp.ne.s32.totalorder %s178, %s181
      %p187 = scmp.eq.s32.totalorder %s16, 0
      %p188 = por %p186, %p187
      %p189 = scmp.ne.s32.totalorder %s178, %s181
      %p190 = scmp.eq.s32.totalorder %s21, 1
      %p191 = por %p189, %p190
      %p192 = scmp.ne.s32.totalorder %s181, %s182
      %p193 = scmp.eq.s32.totalorder %s21, 0
      %p194 = por %p192, %p193
      %p195 = scmp.ne.s32.totalorder %s181, %s182
      %p196 = scmp.eq.s32.totalorder %s22, 1
      %p197 = por %p195, %p196
      %p199 = scmp.ne.s32.totalorder %s182, %s198
      %p200 = scmp.eq.s32.totalorder %s22, 0
      %p201 = por %p199, %p200
      %p202 = scmp.le.s32.totalorder 1, %s16
      %p203 = scmp.lt.s32.totalorder %s16, 3
      %p204 = pnand %p202, %p203
      %p205 = pneg %p204
      // Predicated region
      $region9: #{tpu_custom_call.1} parent=5 // pred_check
        _
      $region10: #{tpu_custom_call.1} parent=5 // pred_check_branch
        %207 = sbr.rel (%p204) target = $region12
      $region11: #{tpu_custom_call.1} parent=5 // pred_region
        %s208 = ssub.s32 %s16, 1
        // Predicated region
        $region13: #{tpu_custom_call.1} parent=11 // pred_check
          %p209 = pneg %p63
        $region14: #{tpu_custom_call.1} parent=11 // pred_check_branch
          %211 = sbr.rel (%p209) target = $region16
        $region15: #{tpu_custom_call.1} parent=11 // pred_region
          _
        $region16: #{tpu_custom_call.1} parent=11 // pred_fallthru
          _
        // Predicated region
        $region17: #{tpu_custom_call.1} parent=11 // pred_check
          %p212 = pneg %p84
        $region18: #{tpu_custom_call.1} parent=11 // pred_check_branch
          %214 = sbr.rel (%p212) target = $region20
        $region19: #{tpu_custom_call.1} parent=11 // pred_region
          _
        $region20: #{tpu_custom_call.1} parent=11 // pred_fallthru
          _
        // Predicated region
        $region21: #{tpu_custom_call.1} parent=11 // pred_check
          %p215 = pneg %p105
        $region22: #{tpu_custom_call.1} parent=11 // pred_check_branch
          %217 = sbr.rel (%p215) target = $region24
        $region23: #{tpu_custom_call.1} parent=11 // pred_region
          _
        $region24: #{tpu_custom_call.1} parent=11 // pred_fallthru
          _
        // Predicated region
        $region25: #{tpu_custom_call.1} parent=11 // pred_check
          %p218 = pneg %p126
        $region26: #{tpu_custom_call.1} parent=11 // pred_check_branch
          %220 = sbr.rel (%p218) target = $region28
        $region27: #{tpu_custom_call.1} parent=11 // pred_region
          _
        $region28: #{tpu_custom_call.1} parent=11 // pred_fallthru
          _
        // Predicated region
        $region29: #{tpu_custom_call.1} parent=11 // pred_check
          %p221 = pneg %p147
        $region30: #{tpu_custom_call.1} parent=11 // pred_check_branch
          %223 = sbr.rel (%p221) target = $region32
        $region31: #{tpu_custom_call.1} parent=11 // pred_region
          _
        $region32: #{tpu_custom_call.1} parent=11 // pred_fallthru
          _
        // Predicated region
        $region33: #{tpu_custom_call.1} parent=11 // pred_check
          %p224 = pneg %p168
        $region34: #{tpu_custom_call.1} parent=11 // pred_check_branch
          %226 = sbr.rel (%p224) target = $region36
        $region35: #{tpu_custom_call.1} parent=11 // pred_region
          _
        $region36: #{tpu_custom_call.1} parent=11 // pred_fallthru
          _
      $region12: #{tpu_custom_call.1} parent=5 // pred_fallthru
        _
      %p227 = scmp.lt.s32.totalorder %s16, 2
      // Predicated region
      $region37: #{tpu_custom_call.1} parent=5 // pred_check
        %p228 = pneg %p227
      $region38: #{tpu_custom_call.1} parent=5 // pred_check_branch
        %230 = sbr.rel (%p228) target = $region40
      $region39: #{tpu_custom_call.1} parent=5 // pred_region
        // Predicated region
        $region41: #{tpu_custom_call.1} parent=39 // pred_check
          %p231 = pneg %p36
        $region42: #{tpu_custom_call.1} parent=39 // pred_check_branch
          %233 = sbr.rel (%p231) target = $region44
        $region43: #{tpu_custom_call.1} parent=39 // pred_region
          %s234 = smul.u32 128, %s16
          %p235 = scmp.lt.s32.totalorder %s234, 255
          %s236 = scalar_select %p235, %s234, 255
          %s237 = smul.addr %s236, 8
          %s238 = scalar_lea.vmem %s0, %s237
          %s239 = smul.u32 128, %s16
        $region44: #{tpu_custom_call.1} parent=39 // pred_fallthru
          _
      $region40: #{tpu_custom_call.1} parent=5 // pred_fallthru
        _
      %p240 = scmp.le.s32.totalorder 1, %s16
      %p241 = scmp.lt.s32.totalorder %s16, 3
      %p242 = pnand %p240, %p241
      %p243 = pneg %p242
      // Predicated region
      $region45: #{tpu_custom_call.1} parent=5 // pred_check
        _
      $region46: #{tpu_custom_call.1} parent=5 // pred_check_branch
        %245 = sbr.rel (%p242) target = $region48
      $region47: #{tpu_custom_call.1} parent=5 // pred_region
        %s246 = ssub.s32 %s16, 1
        %s247 = smul.u32 128, %s21
        %p248 = scmp.lt.s32.totalorder %s247, 255
        %s249 = scalar_select %p248, %s247, 255
        %s250 = smul.addr %s249, 8
        %s251 = scalar_lea.vmem %s0, %s250
        %p252 = pneg %p42
        %p253 = pneg %p39
        %p254 = pneg %p63
        %p255 = pneg %p60
        %p256 = pneg %p84
        %p257 = pneg %p81
        %p258 = pneg %p105
        %p259 = pneg %p102
        %p260 = pneg %p126
        %p261 = pneg %p123
        %p262 = pneg %p147
        %p263 = pneg %p144
        %p264 = pneg %p168
        %p265 = pneg %p165
        %p266 = pneg %p194
        %p267 = pneg %p191
        %s268 = sand.u32 %s181, 1
        %s269 = scalar_lea.sflag [#allocation3], %s268
        %s270 = sand.u32 %s181, 1
        %s271 = smul.addr %s270, 32
        %s272 = scalar_lea.vmem [#allocation2], %s271
        %s273 = smul.u32 128, %s21
        %p274 = scmp.lt.s32.totalorder %s273, 255
        %s275 = scalar_select %p274, %s273, 255
        %s276 = smul.addr %s275, 8
        %s277 = scalar_lea.vmem %s0, %s276
        %s278 = smul.u32 128, %s21
        %v279 = vld [vmem:[%s277] sm:$0xff]
        %v280 = vld [vmem:[%s277 + $0x8] sm:$0xff]
        %v281 = vld [vmem:[%s277 + $0x10] sm:$0xff]
        %v282 = vld [vmem:[%s277 + $0x18] sm:$0xff]
        %v283 = vld [vmem:[%s277 + $0x20] sm:$0xff]
        %v284 = vld [vmem:[%s277 + $0x28] sm:$0xff]
        %v285 = vld [vmem:[%s277 + $0x30] sm:$0xff]
        %v286 = vld [vmem:[%s277 + $0x38] sm:$0xff]
        %v287 = vld [vmem:[%s277 + $0x40] sm:$0xff]
        %v288 = vld [vmem:[%s277 + $0x48] sm:$0xff]
        %v289 = vld [vmem:[%s277 + $0x50] sm:$0xff]
        %v290 = vld [vmem:[%s277 + $0x58] sm:$0xff]
        %v291 = vld [vmem:[%s277 + $0x60] sm:$0xff]
        %v292 = vld [vmem:[%s277 + $0x68] sm:$0xff]
        %v293 = vld [vmem:[%s277 + $0x70] sm:$0xff]
        %v294 = vld [vmem:[%s277 + $0x78] sm:$0xff]
        %v295 = vld [vmem:[%s277 + $0x80] sm:$0xff]
        %v296 = vld [vmem:[%s277 + $0x88] sm:$0xff]
        %v297 = vld [vmem:[%s277 + $0x90] sm:$0xff]
        %v298 = vld [vmem:[%s277 + $0x98] sm:$0xff]
        %v299 = vld [vmem:[%s277 + $0xa0] sm:$0xff]
        %v300 = vld [vmem:[%s277 + $0xa8] sm:$0xff]
        %v301 = vld [vmem:[%s277 + $0xb0] sm:$0xff]
        %v302 = vld [vmem:[%s277 + $0xb8] sm:$0xff]
        %v303 = vld [vmem:[%s277 + $0xc0] sm:$0xff]
        %v304 = vld [vmem:[%s277 + $0xc8] sm:$0xff]
        %v305 = vld [vmem:[%s277 + $0xd0] sm:$0xff]
        %v306 = vld [vmem:[%s277 + $0xd8] sm:$0xff]
        %v307 = vld [vmem:[%s277 + $0xe0] sm:$0xff]
        %v308 = vld [vmem:[%s277 + $0xe8] sm:$0xff]
        %v309 = vld [vmem:[%s277 + $0xf0] sm:$0xff]
        %v310 = vld [vmem:[%s277 + $0xf8] sm:$0xff]
        %v311 = vld [vmem:[%s277 + $0x100] sm:$0xff]
        %v312 = vld [vmem:[%s277 + $0x108] sm:$0xff]
        %v313 = vld [vmem:[%s277 + $0x110] sm:$0xff]
        %v314 = vld [vmem:[%s277 + $0x118] sm:$0xff]
        %v315 = vld [vmem:[%s277 + $0x120] sm:$0xff]
        %v316 = vld [vmem:[%s277 + $0x128] sm:$0xff]
        %v317 = vld [vmem:[%s277 + $0x130] sm:$0xff]
        %v318 = vld [vmem:[%s277 + $0x138] sm:$0xff]
        %v319 = vld [vmem:[%s277 + $0x140] sm:$0xff]
        %v320 = vld [vmem:[%s277 + $0x148] sm:$0xff]
        %v321 = vld [vmem:[%s277 + $0x150] sm:$0xff]
        %v322 = vld [vmem:[%s277 + $0x158] sm:$0xff]
        %v323 = vld [vmem:[%s277 + $0x160] sm:$0xff]
        %v324 = vld [vmem:[%s277 + $0x168] sm:$0xff]
        %v325 = vld [vmem:[%s277 + $0x170] sm:$0xff]
        %v326 = vld [vmem:[%s277 + $0x178] sm:$0xff]
        %v327 = vld [vmem:[%s277 + $0x180] sm:$0xff]
        %v328 = vld [vmem:[%s277 + $0x188] sm:$0xff]
        %v329 = vld [vmem:[%s277 + $0x190] sm:$0xff]
        %v330 = vld [vmem:[%s277 + $0x198] sm:$0xff]
        %v331 = vld [vmem:[%s277 + $0x1a0] sm:$0xff]
        %v332 = vld [vmem:[%s277 + $0x1a8] sm:$0xff]
        %v333 = vld [vmem:[%s277 + $0x1b0] sm:$0xff]
        %v334 = vld [vmem:[%s277 + $0x1b8] sm:$0xff]
        %v335 = vld [vmem:[%s277 + $0x1c0] sm:$0xff]
        %v336 = vld [vmem:[%s277 + $0x1c8] sm:$0xff]
        %v337 = vld [vmem:[%s277 + $0x1d0] sm:$0xff]
        %v338 = vld [vmem:[%s277 + $0x1d8] sm:$0xff]
        %v339 = vld [vmem:[%s277 + $0x1e0] sm:$0xff]
        %v340 = vld [vmem:[%s277 + $0x1e8] sm:$0xff]
        %v341 = vld [vmem:[%s277 + $0x1f0] sm:$0xff]
        %v342 = vld [vmem:[%s277 + $0x1f8] sm:$0xff]
        %v343 = vld [vmem:[%s277 + $0x200] sm:$0xff]
        %v344 = vld [vmem:[%s277 + $0x208] sm:$0xff]
        %v345 = vld [vmem:[%s277 + $0x210] sm:$0xff]
        %v346 = vld [vmem:[%s277 + $0x218] sm:$0xff]
        %v347 = vld [vmem:[%s277 + $0x220] sm:$0xff]
        %v348 = vld [vmem:[%s277 + $0x228] sm:$0xff]
        %v349 = vld [vmem:[%s277 + $0x230] sm:$0xff]
        %v350 = vld [vmem:[%s277 + $0x238] sm:$0xff]
        %v351 = vld [vmem:[%s277 + $0x240] sm:$0xff]
        %v352 = vld [vmem:[%s277 + $0x248] sm:$0xff]
        %v353 = vld [vmem:[%s277 + $0x250] sm:$0xff]
        %v354 = vld [vmem:[%s277 + $0x258] sm:$0xff]
        %v355 = vld [vmem:[%s277 + $0x260] sm:$0xff]
        %v356 = vld [vmem:[%s277 + $0x268] sm:$0xff]
        %v357 = vld [vmem:[%s277 + $0x270] sm:$0xff]
        %v358 = vld [vmem:[%s277 + $0x278] sm:$0xff]
        %v359 = vld [vmem:[%s277 + $0x280] sm:$0xff]
        %v360 = vld [vmem:[%s277 + $0x288] sm:$0xff]
        %v361 = vld [vmem:[%s277 + $0x290] sm:$0xff]
        %v362 = vld [vmem:[%s277 + $0x298] sm:$0xff]
        %v363 = vld [vmem:[%s277 + $0x2a0] sm:$0xff]
        %v364 = vld [vmem:[%s277 + $0x2a8] sm:$0xff]
        %v365 = vld [vmem:[%s277 + $0x2b0] sm:$0xff]
        %v366 = vld [vmem:[%s277 + $0x2b8] sm:$0xff]
        %v367 = vld [vmem:[%s277 + $0x2c0] sm:$0xff]
        %v368 = vld [vmem:[%s277 + $0x2c8] sm:$0xff]
        %v369 = vld [vmem:[%s277 + $0x2d0] sm:$0xff]
        %v370 = vld [vmem:[%s277 + $0x2d8] sm:$0xff]
        %v371 = vld [vmem:[%s277 + $0x2e0] sm:$0xff]
        %v372 = vld [vmem:[%s277 + $0x2e8] sm:$0xff]
        %v373 = vld [vmem:[%s277 + $0x2f0] sm:$0xff]
        %v374 = vld [vmem:[%s277 + $0x2f8] sm:$0xff]
        %v375 = vld [vmem:[%s277 + $0x300] sm:$0xff]
        %v376 = vld [vmem:[%s277 + $0x308] sm:$0xff]
        %v377 = vld [vmem:[%s277 + $0x310] sm:$0xff]
        %v378 = vld [vmem:[%s277 + $0x318] sm:$0xff]
        %v379 = vld [vmem:[%s277 + $0x320] sm:$0xff]
        %v380 = vld [vmem:[%s277 + $0x328] sm:$0xff]
        %v381 = vld [vmem:[%s277 + $0x330] sm:$0xff]
        %v382 = vld [vmem:[%s277 + $0x338] sm:$0xff]
        %v383 = vld [vmem:[%s277 + $0x340] sm:$0xff]
        %v384 = vld [vmem:[%s277 + $0x348] sm:$0xff]
        %v385 = vld [vmem:[%s277 + $0x350] sm:$0xff]
        %v386 = vld [vmem:[%s277 + $0x358] sm:$0xff]
        %v387 = vld [vmem:[%s277 + $0x360] sm:$0xff]
        %v388 = vld [vmem:[%s277 + $0x368] sm:$0xff]
        %v389 = vld [vmem:[%s277 + $0x370] sm:$0xff]
        %v390 = vld [vmem:[%s277 + $0x378] sm:$0xff]
        %v391 = vld [vmem:[%s277 + $0x380] sm:$0xff]
        %v392 = vld [vmem:[%s277 + $0x388] sm:$0xff]
        %v393 = vld [vmem:[%s277 + $0x390] sm:$0xff]
        %v394 = vld [vmem:[%s277 + $0x398] sm:$0xff]
        %v395 = vld [vmem:[%s277 + $0x3a0] sm:$0xff]
        %v396 = vld [vmem:[%s277 + $0x3a8] sm:$0xff]
        %v397 = vld [vmem:[%s277 + $0x3b0] sm:$0xff]
        %v398 = vld [vmem:[%s277 + $0x3b8] sm:$0xff]
        %v399 = vld [vmem:[%s277 + $0x3c0] sm:$0xff]
        %v400 = vld [vmem:[%s277 + $0x3c8] sm:$0xff]
        %v401 = vld [vmem:[%s277 + $0x3d0] sm:$0xff]
        %v402 = vld [vmem:[%s277 + $0x3d8] sm:$0xff]
        %v403 = vld [vmem:[%s277 + $0x3e0] sm:$0xff]
        %v404 = vld [vmem:[%s277 + $0x3e8] sm:$0xff]
        %v405 = vld [vmem:[%s277 + $0x3f0] sm:$0xff]
        %v406 = vld [vmem:[%s277 + $0x3f8] sm:$0xff]
        %v407 = vld [vmem:[%s1] sm:$0xff]
        %v408 = vld [vmem:[%s1 + $0x8] sm:$0xff]
        %v409 = vld [vmem:[%s2] sm:$0x1]
        %v411 = vlaneseq
        %v412 = vshrl.u32 %v411, 7
        %v413 = vsub.s32 0, %v412
        %v414 = vrot.slane %v409, %v413
        %vm416 = vcmask 130048
        %v418 = vsel %vm416, %v279, 0
        %v421 = vsel %vm416, %v280, 0
        %v424 = vsel %vm416, %v281, 0
        %v427 = vsel %vm416, %v282, 0
        %v430 = vsel %vm416, %v283, 0
        %v433 = vsel %vm416, %v284, 0
        %v436 = vsel %vm416, %v285, 0
        %v439 = vsel %vm416, %v286, 0
        %v442 = vsel %vm416, %v287, 0
        %v445 = vsel %vm416, %v288, 0
        %v448 = vsel %vm416, %v289, 0
        %v451 = vsel %vm416, %v290, 0
        %v454 = vsel %vm416, %v291, 0
        %v457 = vsel %vm416, %v292, 0
        %v460 = vsel %vm416, %v293, 0
        %v463 = vsel %vm416, %v294, 0
        %v466 = vsel %vm416, %v295, 0
        %v469 = vsel %vm416, %v296, 0
        %v472 = vsel %vm416, %v297, 0
        %v475 = vsel %vm416, %v298, 0
        %v478 = vsel %vm416, %v299, 0
        %v481 = vsel %vm416, %v300, 0
        %v484 = vsel %vm416, %v301, 0
        %v487 = vsel %vm416, %v302, 0
        %v490 = vsel %vm416, %v303, 0
        %v493 = vsel %vm416, %v304, 0
        %v496 = vsel %vm416, %v305, 0
        %v499 = vsel %vm416, %v306, 0
        %v502 = vsel %vm416, %v307, 0
        %v505 = vsel %vm416, %v308, 0
        %v508 = vsel %vm416, %v309, 0
        %v511 = vsel %vm416, %v310, 0
        %v514 = vsel %vm416, %v311, 0
        %v517 = vsel %vm416, %v312, 0
        %v520 = vsel %vm416, %v313, 0
        %v523 = vsel %vm416, %v314, 0
        %v526 = vsel %vm416, %v315, 0
        %v529 = vsel %vm416, %v316, 0
        %v532 = vsel %vm416, %v317, 0
        %v535 = vsel %vm416, %v318, 0
        %v538 = vsel %vm416, %v319, 0
        %v541 = vsel %vm416, %v320, 0
        %v544 = vsel %vm416, %v321, 0
        %v547 = vsel %vm416, %v322, 0
        %v550 = vsel %vm416, %v323, 0
        %v553 = vsel %vm416, %v324, 0
        %v556 = vsel %vm416, %v325, 0
        %v559 = vsel %vm416, %v326, 0
        %v562 = vsel %vm416, %v327, 0
        %v565 = vsel %vm416, %v328, 0
        %v568 = vsel %vm416, %v329, 0
        %v571 = vsel %vm416, %v330, 0
        %v574 = vsel %vm416, %v331, 0
        %v577 = vsel %vm416, %v332, 0
        %v580 = vsel %vm416, %v333, 0
        %v583 = vsel %vm416, %v334, 0
        %v586 = vsel %vm416, %v335, 0
        %v589 = vsel %vm416, %v336, 0
        %v592 = vsel %vm416, %v337, 0
        %v595 = vsel %vm416, %v338, 0
        %v598 = vsel %vm416, %v339, 0
        %v601 = vsel %vm416, %v340, 0
        %v604 = vsel %vm416, %v341, 0
        %v607 = vsel %vm416, %v342, 0
        %v610 = vsel %vm416, %v343, 0
        %v613 = vsel %vm416, %v344, 0
        %v616 = vsel %vm416, %v345, 0
        %v619 = vsel %vm416, %v346, 0
        %v622 = vsel %vm416, %v347, 0
        %v625 = vsel %vm416, %v348, 0
        %v628 = vsel %vm416, %v349, 0
        %v631 = vsel %vm416, %v350, 0
        %v634 = vsel %vm416, %v351, 0
        %v637 = vsel %vm416, %v352, 0
        %v640 = vsel %vm416, %v353, 0
        %v643 = vsel %vm416, %v354, 0
        %v646 = vsel %vm416, %v355, 0
        %v649 = vsel %vm416, %v356, 0
        %v652 = vsel %vm416, %v357, 0
        %v655 = vsel %vm416, %v358, 0
        %v658 = vsel %vm416, %v359, 0
        %v661 = vsel %vm416, %v360, 0
        %v664 = vsel %vm416, %v361, 0
        %v667 = vsel %vm416, %v362, 0
        %v670 = vsel %vm416, %v363, 0
        %v673 = vsel %vm416, %v364, 0
        %v676 = vsel %vm416, %v365, 0
        %v679 = vsel %vm416, %v366, 0
        %v682 = vsel %vm416, %v367, 0
        %v685 = vsel %vm416, %v368, 0
        %v688 = vsel %vm416, %v369, 0
        %v691 = vsel %vm416, %v370, 0
        %v694 = vsel %vm416, %v371, 0
        %v697 = vsel %vm416, %v372, 0
        %v700 = vsel %vm416, %v373, 0
        %v703 = vsel %vm416, %v374, 0
        %v706 = vsel %vm416, %v375, 0
        %v709 = vsel %vm416, %v376, 0
        %v712 = vsel %vm416, %v377, 0
        %v715 = vsel %vm416, %v378, 0
        %v718 = vsel %vm416, %v379, 0
        %v721 = vsel %vm416, %v380, 0
        %v724 = vsel %vm416, %v381, 0
        %v727 = vsel %vm416, %v382, 0
        %v730 = vsel %vm416, %v383, 0
        %v733 = vsel %vm416, %v384, 0
        %v736 = vsel %vm416, %v385, 0
        %v739 = vsel %vm416, %v386, 0
        %v742 = vsel %vm416, %v387, 0
        %v745 = vsel %vm416, %v388, 0
        %v748 = vsel %vm416, %v389, 0
        %v751 = vsel %vm416, %v390, 0
        %v754 = vsel %vm416, %v391, 0
        %v757 = vsel %vm416, %v392, 0
        %v760 = vsel %vm416, %v393, 0
        %v763 = vsel %vm416, %v394, 0
        %v766 = vsel %vm416, %v395, 0
        %v769 = vsel %vm416, %v396, 0
        %v772 = vsel %vm416, %v397, 0
        %v775 = vsel %vm416, %v398, 0
        %v778 = vsel %vm416, %v399, 0
        %v781 = vsel %vm416, %v400, 0
        %v784 = vsel %vm416, %v401, 0
        %v787 = vsel %vm416, %v402, 0
        %v790 = vsel %vm416, %v403, 0
        %v793 = vsel %vm416, %v404, 0
        %v796 = vsel %vm416, %v405, 0
        %v799 = vsel %vm416, %v406, 0
        %801 = vmatprep.subr.mxu0 0.0
        %802 = vmatpush1.msra.mxu0 %v407
        %803 = vmatprep.subr.mxu0 0.0
        %804 = vmatpush1.msra.mxu0 %v408
        %805 = vmatprep.subr.mxu0 0.0
        %806 = vmatpush1.msra.mxu0 0.0
        %807 = vmatprep.subr.mxu0 0.0
        %808 = vmatpush1.msra.mxu0 0.0
        %809 = vmatprep.subr.mxu0 0.0
        %810 = vmatpush1.msra.mxu0 0.0
        %811 = vmatprep.subr.mxu0 0.0
        %812 = vmatpush1.msra.mxu0 0.0
        %813 = vmatprep.subr.mxu0 0.0
        %814 = vmatpush1.msra.mxu0 0.0
        %815 = vmatprep.subr.mxu0 0.0
        %816 = vmatpush1.msra.mxu0 0.0
        %817 = vmatprep.subr.mxu0 0.0
        %818 = vmatpush1.msra.mxu0 0.0
        %819 = vmatprep.subr.mxu0 0.0
        %820 = vmatpush1.msra.mxu0 0.0
        %821 = vmatprep.subr.mxu0 0.0
        %822 = vmatpush1.msra.mxu0 0.0
        %823 = vmatprep.subr.mxu0 0.0
        %824 = vmatpush1.msra.mxu0 0.0
        %825 = vmatprep.subr.mxu0 0.0
        %826 = vmatpush1.msra.mxu0 0.0
        %827 = vmatprep.subr.mxu0 0.0
        %828 = vmatpush1.msra.mxu0 0.0
        %829 = vmatprep.subr.mxu0 0.0
        %830 = vmatpush1.msra.mxu0 0.0
        %831 = vmatprep.subr.mxu0 0.0
        %832 = vmatpush1.msra.mxu0 0.0
        %833 = vmatprep.subr.mxu0 0.0
        %834 = vmatpush1.msra.mxu0 0.0
        %835 = vmatprep.subr.mxu0 0.0
        %836 = vmatpush1.msra.mxu0 0.0
        %837 = vmatprep.subr.mxu0 0.0
        %838 = vmatpush1.msra.mxu0 0.0
        %839 = vmatprep.subr.mxu0 0.0
        %840 = vmatpush1.msra.mxu0 0.0
        %841 = vmatprep.subr.mxu0 0.0
        %842 = vmatpush1.msra.mxu0 0.0
        %843 = vmatprep.subr.mxu0 0.0
        %844 = vmatpush1.msra.mxu0 0.0
        %845 = vmatprep.subr.mxu0 0.0
        %846 = vmatpush1.msra.mxu0 0.0
        %847 = vmatprep.subr.mxu0 0.0
        %848 = vmatpush1.msra.mxu0 0.0
        %849 = vmatprep.subr.mxu0 0.0
        %850 = vmatpush1.msra.mxu0 0.0
        %851 = vmatprep.subr.mxu0 0.0
        %852 = vmatpush1.msra.mxu0 0.0
        %853 = vmatprep.subr.mxu0 0.0
        %854 = vmatpush1.msra.mxu0 0.0
        %855 = vmatprep.subr.mxu0 0.0
        %856 = vmatpush1.msra.mxu0 0.0
        %857 = vmatprep.subr.mxu0 0.0
        %858 = vmatpush1.msra.mxu0 0.0
        %859 = vmatprep.subr.mxu0 0.0
        %860 = vmatpush1.msra.mxu0 0.0
        %861 = vmatprep.subr.mxu0 0.0
        %862 = vmatpush1.msra.mxu0 0.0
        %863 = vmatprep.subr.mxu0 0.0
        %864 = vmatpush1.msra.mxu0 0.0
        %865 = vmatprep.mubr.f32.mxu0 0.0
        %866 = vmatmul.mubr.f32.gmra.mrb[0].mxu0 %v418
        %v867 = vpop.f32.mrb[0].mxu0
        %v868 = vadd.f32 %v414, %v867
        %v869 = vpop.f32.mrb[0].mxu0
        %870 = vmatprep.mubr.f32.mxu0 0.0
        %871 = vmatmul.mubr.f32.gmra.mrb[0].mxu0 %v421
        %v872 = vpop.f32.mrb[0].mxu0
        %v873 = vadd.f32 %v414, %v872
        %v874 = vpop.f32.mrb[0].mxu0
        %875 = vmatprep.mubr.f32.mxu0 0.0
        %876 = vmatmul.mubr.f32.gmra.mrb[0].mxu0 %v424
        %v877 = vpop.f32.mrb[0].mxu0
        %v878 = vadd.f32 %v414, %v877
        %v879 = vpop.f32.mrb[0].mxu0
        %880 = vmatprep.mubr.f32.mxu0 0.0
        %881 = vmatmul.mubr.f32.gmra.mrb[0].mxu0 %v427
        %v882 = vpop.f32.mrb[0].mxu0
        %v883 = vadd.f32 %v414, %v882
        %v884 = vpop.f32.mrb[0].mxu0
        %885 = vmatprep.mubr.f32.mxu0 0.0
        %886 = vmatmul.mubr.f32.gmra.mrb[0].mxu0 %v430
        %v887 = vpop.f32.mrb[0].mxu0
        %v888 = vadd.f32 %v414, %v887
        %v889 = vpop.f32.mrb[0].mxu0
        %890 = vmatprep.mubr.f32.mxu0 0.0
        %891 = vmatmul.mubr.f32.gmra.mrb[0].mxu0 %v433
        %v892 = vpop.f32.mrb[0].mxu0
        %v893 = vadd.f32 %v414, %v892
        %v894 = vpop.f32.mrb[0].mxu0
        %895 = vmatprep.mubr.f32.mxu0 0.0
        %896 = vmatmul.mubr.f32.gmra.mrb[0].mxu0 %v436
        %v897 = vpop.f32.mrb[0].mxu0
        %v898 = vadd.f32 %v414, %v897
        %v899 = vpop.f32.mrb[0].mxu0
        %900 = vmatprep.mubr.f32.mxu0 0.0
        %901 = vmatmul.mubr.f32.gmra.mrb[0].mxu0 %v439
        %v902 = vpop.f32.mrb[0].mxu0
        %v903 = vadd.f32 %v414, %v902
        %v904 = vpop.f32.mrb[0].mxu0
        %905 = vmatprep.mubr.f32.mxu0 0.0
        %906 = vmatmul.mubr.f32.gmra.mrb[0].mxu0 %v442
        %v907 = vpop.f32.mrb[0].mxu0
        %v908 = vadd.f32 %v414, %v907
        %v909 = vpop.f32.mrb[0].mxu0
        %910 = vmatprep.mubr.f32.mxu0 0.0
        %911 = vmatmul.mubr.f32.gmra.mrb[0].mxu0 %v445
        %v912 = vpop.f32.mrb[0].mxu0
        %v913 = vadd.f32 %v414, %v912
        %v914 = vpop.f32.mrb[0].mxu0
        %915 = vmatprep.mubr.f32.mxu0 0.0
        %916 = vmatmul.mubr.f32.gmra.mrb[0].mxu0 %v448
        %v917 = vpop.f32.mrb[0].mxu0
        %v918 = vadd.f32 %v414, %v917
        %v919 = vpop.f32.mrb[0].mxu0
        %920 = vmatprep.mubr.f32.mxu0 0.0
        %921 = vmatmul.mubr.f32.gmra.mrb[0].mxu0 %v451
        %v922 = vpop.f32.mrb[0].mxu0
        %v923 = vadd.f32 %v414, %v922
        %v924 = vpop.f32.mrb[0].mxu0
        %925 = vmatprep.mubr.f32.mxu0 0.0
        %926 = vmatmul.mubr.f32.gmra.mrb[0].mxu0 %v454
        %v927 = vpop.f32.mrb[0].mxu0
        %v928 = vadd.f32 %v414, %v927
        %v929 = vpop.f32.mrb[0].mxu0
        %930 = vmatprep.mubr.f32.mxu0 0.0
        %931 = vmatmul.mubr.f32.gmra.mrb[0].mxu0 %v457
        %v932 = vpop.f32.mrb[0].mxu0
        %v933 = vadd.f32 %v414, %v932
        %v934 = vpop.f32.mrb[0].mxu0
        %935 = vmatprep.mubr.f32.mxu0 0.0
        %936 = vmatmul.mubr.f32.gmra.mrb[0].mxu0 %v460
        %v937 = vpop.f32.mrb[0].mxu0
        %v938 = vadd.f32 %v414, %v937
        %v939 = vpop.f32.mrb[0].mxu0
        %940 = vmatprep.mubr.f32.mxu0 0.0
        %941 = vmatmul.mubr.f32.gmra.mrb[0].mxu0 %v463
        %v942 = vpop.f32.mrb[0].mxu0
        %v943 = vadd.f32 %v414, %v942
        %v944 = vpop.f32.mrb[0].mxu0
        %945 = vmatprep.mubr.f32.mxu0 0.0
        %946 = vmatmul.mubr.f32.gmra.mrb[0].mxu0 %v466
        %v947 = vpop.f32.mrb[0].mxu0
        %v948 = vadd.f32 %v414, %v947
        %v949 = vpop.f32.mrb[0].mxu0
        %950 = vmatprep.mubr.f32.mxu0 0.0
        %951 = vmatmul.mubr.f32.gmra.mrb[0].mxu0 %v469
        %v952 = vpop.f32.mrb[0].mxu0
        %v953 = vadd.f32 %v414, %v952
        %v954 = vpop.f32.mrb[0].mxu0
        %955 = vmatprep.mubr.f32.mxu0 0.0
        %956 = vmatmul.mubr.f32.gmra.mrb[0].mxu0 %v472
        %v957 = vpop.f32.mrb[0].mxu0
        %v958 = vadd.f32 %v414, %v957
        %v959 = vpop.f32.mrb[0].mxu0
        %960 = vmatprep.mubr.f32.mxu0 0.0
        %961 = vmatmul.mubr.f32.gmra.mrb[0].mxu0 %v475
        %v962 = vpop.f32.mrb[0].mxu0
        %v963 = vadd.f32 %v414, %v962
        %v964 = vpop.f32.mrb[0].mxu0
        %965 = vmatprep.mubr.f32.mxu0 0.0
        %966 = vmatmul.mubr.f32.gmra.mrb[0].mxu0 %v478
        %v967 = vpop.f32.mrb[0].mxu0
        %v968 = vadd.f32 %v414, %v967
        %v969 = vpop.f32.mrb[0].mxu0
        %970 = vmatprep.mubr.f32.mxu0 0.0
        %971 = vmatmul.mubr.f32.gmra.mrb[0].mxu0 %v481
        %v972 = vpop.f32.mrb[0].mxu0
        %v973 = vadd.f32 %v414, %v972
        %v974 = vpop.f32.mrb[0].mxu0
        %975 = vmatprep.mubr.f32.mxu0 0.0
        %976 = vmatmul.mubr.f32.gmra.mrb[0].mxu0 %v484
        %v977 = vpop.f32.mrb[0].mxu0
        %v978 = vadd.f32 %v414, %v977
        %v979 = vpop.f32.mrb[0].mxu0
        %980 = vmatprep.mubr.f32.mxu0 0.0
        %981 = vmatmul.mubr.f32.gmra.mrb[0].mxu0 %v487
        %v982 = vpop.f32.mrb[0].mxu0
        %v983 = vadd.f32 %v414, %v982
        %v984 = vpop.f32.mrb[0].mxu0
        %985 = vmatprep.mubr.f32.mxu0 0.0
        %986 = vmatmul.mubr.f32.gmra.mrb[0].mxu0 %v490
        %v987 = vpop.f32.mrb[0].mxu0
        %v988 = vadd.f32 %v414, %v987
        %v989 = vpop.f32.mrb[0].mxu0
        %990 = vmatprep.mubr.f32.mxu0 0.0
        %991 = vmatmul.mubr.f32.gmra.mrb[0].mxu0 %v493
        %v992 = vpop.f32.mrb[0].mxu0
        %v993 = vadd.f32 %v414, %v992
        %v994 = vpop.f32.mrb[0].mxu0
        %995 = vmatprep.mubr.f32.mxu0 0.0
        %996 = vmatmul.mubr.f32.gmra.mrb[0].mxu0 %v496
        %v997 = vpop.f32.mrb[0].mxu0
        %v998 = vadd.f32 %v414, %v997
        %v999 = vpop.f32.mrb[0].mxu0
        %1000 = vmatprep.mubr.f32.mxu0 0.0
        %1001 = vmatmul.mubr.f32.gmra.mrb[0].mxu0 %v499
        %v1002 = vpop.f32.mrb[0].mxu0
        %v1003 = vadd.f32 %v414, %v1002
        %v1004 = vpop.f32.mrb[0].mxu0
        %1005 = vmatprep.mubr.f32.mxu0 0.0
        %1006 = vmatmul.mubr.f32.gmra.mrb[0].mxu0 %v502
        %v1007 = vpop.f32.mrb[0].mxu0
        %v1008 = vadd.f32 %v414, %v1007
        %v1009 = vpop.f32.mrb[0].mxu0
        %1010 = vmatprep.mubr.f32.mxu0 0.0
        %1011 = vmatmul.mubr.f32.gmra.mrb[0].mxu0 %v505
        %v1012 = vpop.f32.mrb[0].mxu0
        %v1013 = vadd.f32 %v414, %v1012
        %v1014 = vpop.f32.mrb[0].mxu0
        %1015 = vmatprep.mubr.f32.mxu0 0.0
        %1016 = vmatmul.mubr.f32.gmra.mrb[0].mxu0 %v508
        %v1017 = vpop.f32.mrb[0].mxu0
        %v1018 = vadd.f32 %v414, %v1017
        %v1019 = vpop.f32.mrb[0].mxu0
        %1020 = vmatprep.mubr.f32.mxu0 0.0
        %1021 = vmatmul.mubr.f32.gmra.mrb[0].mxu0 %v511
        %v1022 = vpop.f32.mrb[0].mxu0
        %v1023 = vadd.f32 %v414, %v1022
        %v1024 = vpop.f32.mrb[0].mxu0
        %1025 = vmatprep.mubr.f32.mxu0 0.0
        %1026 = vmatmul.mubr.f32.gmra.mrb[0].mxu0 %v514
        %v1027 = vpop.f32.mrb[0].mxu0
        %v1028 = vadd.f32 %v414, %v1027
        %v1029 = vpop.f32.mrb[0].mxu0
        %1030 = vmatprep.mubr.f32.mxu0 0.0
        %1031 = vmatmul.mubr.f32.gmra.mrb[0].mxu0 %v517
        %v1032 = vpop.f32.mrb[0].mxu0
        %v1033 = vadd.f32 %v414, %v1032
        %v1034 = vpop.f32.mrb[0].mxu0
        %1035 = vmatprep.mubr.f32.mxu0 0.0
        %1036 = vmatmul.mubr.f32.gmra.mrb[0].mxu0 %v520
        %v1037 = vpop.f32.mrb[0].mxu0
        %v1038 = vadd.f32 %v414, %v1037
        %v1039 = vpop.f32.mrb[0].mxu0
        %1040 = vmatprep.mubr.f32.mxu0 0.0
        %1041 = vmatmul.mubr.f32.gmra.mrb[0].mxu0 %v523
        %v1042 = vpop.f32.mrb[0].mxu0
        %v1043 = vadd.f32 %v414, %v1042
        %v1044 = vpop.f32.mrb[0].mxu0
        %1045 = vmatprep.mubr.f32.mxu0 0.0
        %1046 = vmatmul.mubr.f32.gmra.mrb[0].mxu0 %v526
        %v1047 = vpop.f32.mrb[0].mxu0
        %v1048 = vadd.f32 %v414, %v1047
        %v1049 = vpop.f32.mrb[0].mxu0
        %1050 = vmatprep.mubr.f32.mxu0 0.0
        %1051 = vmatmul.mubr.f32.gmra.mrb[0].mxu0 %v529
        %v1052 = vpop.f32.mrb[0].mxu0
        %v1053 = vadd.f32 %v414, %v1052
        %v1054 = vpop.f32.mrb[0].mxu0
        %1055 = vmatprep.mubr.f32.mxu0 0.0
        %1056 = vmatmul.mubr.f32.gmra.mrb[0].mxu0 %v532
        %v1057 = vpop.f32.mrb[0].mxu0
        %v1058 = vadd.f32 %v414, %v1057
        %v1059 = vpop.f32.mrb[0].mxu0
        %1060 = vmatprep.mubr.f32.mxu0 0.0
        %1061 = vmatmul.mubr.f32.gmra.mrb[0].mxu0 %v535
        %v1062 = vpop.f32.mrb[0].mxu0
        %v1063 = vadd.f32 %v414, %v1062
        %v1064 = vpop.f32.mrb[0].mxu0
        %1065 = vmatprep.mubr.f32.mxu0 0.0
        %1066 = vmatmul.mubr.f32.gmra.mrb[0].mxu0 %v538
        %v1067 = vpop.f32.mrb[0].mxu0
        %v1068 = vadd.f32 %v414, %v1067
        %v1069 = vpop.f32.mrb[0].mxu0
        %1070 = vmatprep.mubr.f32.mxu0 0.0
        %1071 = vmatmul.mubr.f32.gmra.mrb[0].mxu0 %v541
        %v1072 = vpop.f32.mrb[0].mxu0
        %v1073 = vadd.f32 %v414, %v1072
        %v1074 = vpop.f32.mrb[0].mxu0
        %1075 = vmatprep.mubr.f32.mxu0 0.0
        %1076 = vmatmul.mubr.f32.gmra.mrb[0].mxu0 %v544
        %v1077 = vpop.f32.mrb[0].mxu0
        %v1078 = vadd.f32 %v414, %v1077
        %v1079 = vpop.f32.mrb[0].mxu0
        %1080 = vmatprep.mubr.f32.mxu0 0.0
        %1081 = vmatmul.mubr.f32.gmra.mrb[0].mxu0 %v547
        %v1082 = vpop.f32.mrb[0].mxu0
        %v1083 = vadd.f32 %v414, %v1082
        %v1084 = vpop.f32.mrb[0].mxu0
        %1085 = vmatprep.mubr.f32.mxu0 0.0
        %1086 = vmatmul.mubr.f32.gmra.mrb[0].mxu0 %v550
        %v1087 = vpop.f32.mrb[0].mxu0
        %v1088 = vadd.f32 %v414, %v1087
        %v1089 = vpop.f32.mrb[0].mxu0
        %1090 = vmatprep.mubr.f32.mxu0 0.0
        %1091 = vmatmul.mubr.f32.gmra.mrb[0].mxu0 %v553
        %v1092 = vpop.f32.mrb[0].mxu0
        %v1093 = vadd.f32 %v414, %v1092
        %v1094 = vpop.f32.mrb[0].mxu0
        %1095 = vmatprep.mubr.f32.mxu0 0.0
        %1096 = vmatmul.mubr.f32.gmra.mrb[0].mxu0 %v556
        %v1097 = vpop.f32.mrb[0].mxu0
        %v1098 = vadd.f32 %v414, %v1097
        %v1099 = vpop.f32.mrb[0].mxu0
        %1100 = vmatprep.mubr.f32.mxu0 0.0
        %1101 = vmatmul.mubr.f32.gmra.mrb[0].mxu0 %v559
        %v1102 = vpop.f32.mrb[0].mxu0
        %v1103 = vadd.f32 %v414, %v1102
        %v1104 = vpop.f32.mrb[0].mxu0
        %1105 = vmatprep.mubr.f32.mxu0 0.0
        %1106 = vmatmul.mubr.f32.gmra.mrb[0].mxu0 %v562
        %v1107 = vpop.f32.mrb[0].mxu0
        %v1108 = vadd.f32 %v414, %v1107
        %v1109 = vpop.f32.mrb[0].mxu0
        %1110 = vmatprep.mubr.f32.mxu0 0.0
        %1111 = vmatmul.mubr.f32.gmra.mrb[0].mxu0 %v565
        %v1112 = vpop.f32.mrb[0].mxu0
        %v1113 = vadd.f32 %v414, %v1112
        %v1114 = vpop.f32.mrb[0].mxu0
        %1115 = vmatprep.mubr.f32.mxu0 0.0
        %1116 = vmatmul.mubr.f32.gmra.mrb[0].mxu0 %v568
        %v1117 = vpop.f32.mrb[0].mxu0
        %v1118 = vadd.f32 %v414, %v1117
        %v1119 = vpop.f32.mrb[0].mxu0
        %1120 = vmatprep.mubr.f32.mxu0 0.0
        %1121 = vmatmul.mubr.f32.gmra.mrb[0].mxu0 %v571
        %v1122 = vpop.f32.mrb[0].mxu0
        %v1123 = vadd.f32 %v414, %v1122
        %v1124 = vpop.f32.mrb[0].mxu0
        %1125 = vmatprep.mubr.f32.mxu0 0.0
        %1126 = vmatmul.mubr.f32.gmra.mrb[0].mxu0 %v574
        %v1127 = vpop.f32.mrb[0].mxu0
        %v1128 = vadd.f32 %v414, %v1127
        %v1129 = vpop.f32.mrb[0].mxu0
        %1130 = vmatprep.mubr.f32.mxu0 0.0
        %1131 = vmatmul.mubr.f32.gmra.mrb[0].mxu0 %v577
        %v1132 = vpop.f32.mrb[0].mxu0
        %v1133 = vadd.f32 %v414, %v1132
        %v1134 = vpop.f32.mrb[0].mxu0
        %1135 = vmatprep.mubr.f32.mxu0 0.0
        %1136 = vmatmul.mubr.f32.gmra.mrb[0].mxu0 %v580
        %v1137 = vpop.f32.mrb[0].mxu0
        %v1138 = vadd.f32 %v414, %v1137
        %v1139 = vpop.f32.mrb[0].mxu0
        %1140 = vmatprep.mubr.f32.mxu0 0.0
        %1141 = vmatmul.mubr.f32.gmra.mrb[0].mxu0 %v583
        %v1142 = vpop.f32.mrb[0].mxu0
        %v1143 = vadd.f32 %v414, %v1142
        %v1144 = vpop.f32.mrb[0].mxu0
        %1145 = vmatprep.mubr.f32.mxu0 0.0
        %1146 = vmatmul.mubr.f32.gmra.mrb[0].mxu0 %v586
        %v1147 = vpop.f32.mrb[0].mxu0
        %v1148 = vadd.f32 %v414, %v1147
        %v1149 = vpop.f32.mrb[0].mxu0
        %1150 = vmatprep.mubr.f32.mxu0 0.0
        %1151 = vmatmul.mubr.f32.gmra.mrb[0].mxu0 %v589
        %v1152 = vpop.f32.mrb[0].mxu0
        %v1153 = vadd.f32 %v414, %v1152
        %v1154 = vpop.f32.mrb[0].mxu0
        %1155 = vmatprep.mubr.f32.mxu0 0.0
        %1156 = vmatmul.mubr.f32.gmra.mrb[0].mxu0 %v592
        %v1157 = vpop.f32.mrb[0].mxu0
        %v1158 = vadd.f32 %v414, %v1157
        %v1159 = vpop.f32.mrb[0].mxu0
        %1160 = vmatprep.mubr.f32.mxu0 0.0
        %1161 = vmatmul.mubr.f32.gmra.mrb[0].mxu0 %v595
        %v1162 = vpop.f32.mrb[0].mxu0
        %v1163 = vadd.f32 %v414, %v1162
        %v1164 = vpop.f32.mrb[0].mxu0
        %1165 = vmatprep.mubr.f32.mxu0 0.0
        %1166 = vmatmul.mubr.f32.gmra.mrb[0].mxu0 %v598
        %v1167 = vpop.f32.mrb[0].mxu0
        %v1168 = vadd.f32 %v414, %v1167
        %v1169 = vpop.f32.mrb[0].mxu0
        %1170 = vmatprep.mubr.f32.mxu0 0.0
        %1171 = vmatmul.mubr.f32.gmra.mrb[0].mxu0 %v601
        %v1172 = vpop.f32.mrb[0].mxu0
        %v1173 = vadd.f32 %v414, %v1172
        %v1174 = vpop.f32.mrb[0].mxu0
        %1175 = vmatprep.mubr.f32.mxu0 0.0
        %1176 = vmatmul.mubr.f32.gmra.mrb[0].mxu0 %v604
        %v1177 = vpop.f32.mrb[0].mxu0
        %v1178 = vadd.f32 %v414, %v1177
        %v1179 = vpop.f32.mrb[0].mxu0
        %1180 = vmatprep.mubr.f32.mxu0 0.0
        %1181 = vmatmul.mubr.f32.gmra.mrb[0].mxu0 %v607
        %v1182 = vpop.f32.mrb[0].mxu0
        %v1183 = vadd.f32 %v414, %v1182
        %v1184 = vpop.f32.mrb[0].mxu0
        %1185 = vmatprep.mubr.f32.mxu0 0.0
        %1186 = vmatmul.mubr.f32.gmra.mrb[0].mxu0 %v610
        %v1187 = vpop.f32.mrb[0].mxu0
        %v1188 = vadd.f32 %v414, %v1187
        %v1189 = vpop.f32.mrb[0].mxu0
        %1190 = vmatprep.mubr.f32.mxu0 0.0
        %1191 = vmatmul.mubr.f32.gmra.mrb[0].mxu0 %v613
        %v1192 = vpop.f32.mrb[0].mxu0
        %v1193 = vadd.f32 %v414, %v1192
        %v1194 = vpop.f32.mrb[0].mxu0
        %1195 = vmatprep.mubr.f32.mxu0 0.0
        %1196 = vmatmul.mubr.f32.gmra.mrb[0].mxu0 %v616
        %v1197 = vpop.f32.mrb[0].mxu0
        %v1198 = vadd.f32 %v414, %v1197
        %v1199 = vpop.f32.mrb[0].mxu0
        %1200 = vmatprep.mubr.f32.mxu0 0.0
        %1201 = vmatmul.mubr.f32.gmra.mrb[0].mxu0 %v619
        %v1202 = vpop.f32.mrb[0].mxu0
        %v1203 = vadd.f32 %v414, %v1202
        %v1204 = vpop.f32.mrb[0].mxu0
        %1205 = vmatprep.mubr.f32.mxu0 0.0
        %1206 = vmatmul.mubr.f32.gmra.mrb[0].mxu0 %v622
        %v1207 = vpop.f32.mrb[0].mxu0
        %v1208 = vadd.f32 %v414, %v1207
        %v1209 = vpop.f32.mrb[0].mxu0
        %1210 = vmatprep.mubr.f32.mxu0 0.0
        %1211 = vmatmul.mubr.f32.gmra.mrb[0].mxu0 %v625
        %v1212 = vpop.f32.mrb[0].mxu0
        %v1213 = vadd.f32 %v414, %v1212
        %v1214 = vpop.f32.mrb[0].mxu0
        %1215 = vmatprep.mubr.f32.mxu0 0.0
        %1216 = vmatmul.mubr.f32.gmra.mrb[0].mxu0 %v628
        %v1217 = vpop.f32.mrb[0].mxu0
        %v1218 = vadd.f32 %v414, %v1217
        %v1219 = vpop.f32.mrb[0].mxu0
        %1220 = vmatprep.mubr.f32.mxu0 0.0
        %1221 = vmatmul.mubr.f32.gmra.mrb[0].mxu0 %v631
        %v1222 = vpop.f32.mrb[0].mxu0
        %v1223 = vadd.f32 %v414, %v1222
        %v1224 = vpop.f32.mrb[0].mxu0
        %1225 = vmatprep.mubr.f32.mxu0 0.0
        %1226 = vmatmul.mubr.f32.gmra.mrb[0].mxu0 %v634
        %v1227 = vpop.f32.mrb[0].mxu0
        %v1228 = vadd.f32 %v414, %v1227
        %v1229 = vpop.f32.mrb[0].mxu0
        %1230 = vmatprep.mubr.f32.mxu0 0.0
        %1231 = vmatmul.mubr.f32.gmra.mrb[0].mxu0 %v637
        %v1232 = vpop.f32.mrb[0].mxu0
        %v1233 = vadd.f32 %v414, %v1232
        %v1234 = vpop.f32.mrb[0].mxu0
        %1235 = vmatprep.mubr.f32.mxu0 0.0
        %1236 = vmatmul.mubr.f32.gmra.mrb[0].mxu0 %v640
        %v1237 = vpop.f32.mrb[0].mxu0
        %v1238 = vadd.f32 %v414, %v1237
        %v1239 = vpop.f32.mrb[0].mxu0
        %1240 = vmatprep.mubr.f32.mxu0 0.0
        %1241 = vmatmul.mubr.f32.gmra.mrb[0].mxu0 %v643
        %v1242 = vpop.f32.mrb[0].mxu0
        %v1243 = vadd.f32 %v414, %v1242
        %v1244 = vpop.f32.mrb[0].mxu0
        %1245 = vmatprep.mubr.f32.mxu0 0.0
        %1246 = vmatmul.mubr.f32.gmra.mrb[0].mxu0 %v646
        %v1247 = vpop.f32.mrb[0].mxu0
        %v1248 = vadd.f32 %v414, %v1247
        %v1249 = vpop.f32.mrb[0].mxu0
        %1250 = vmatprep.mubr.f32.mxu0 0.0
        %1251 = vmatmul.mubr.f32.gmra.mrb[0].mxu0 %v649
        %v1252 = vpop.f32.mrb[0].mxu0
        %v1253 = vadd.f32 %v414, %v1252
        %v1254 = vpop.f32.mrb[0].mxu0
        %1255 = vmatprep.mubr.f32.mxu0 0.0
        %1256 = vmatmul.mubr.f32.gmra.mrb[0].mxu0 %v652
        %v1257 = vpop.f32.mrb[0].mxu0
        %v1258 = vadd.f32 %v414, %v1257
        %v1259 = vpop.f32.mrb[0].mxu0
        %1260 = vmatprep.mubr.f32.mxu0 0.0
        %1261 = vmatmul.mubr.f32.gmra.mrb[0].mxu0 %v655
        %v1262 = vpop.f32.mrb[0].mxu0
        %v1263 = vadd.f32 %v414, %v1262
        %v1264 = vpop.f32.mrb[0].mxu0
        %1265 = vmatprep.mubr.f32.mxu0 0.0
        %1266 = vmatmul.mubr.f32.gmra.mrb[0].mxu0 %v658
        %v1267 = vpop.f32.mrb[0].mxu0
        %v1268 = vadd.f32 %v414, %v1267
        %v1269 = vpop.f32.mrb[0].mxu0
        %1270 = vmatprep.mubr.f32.mxu0 0.0
        %1271 = vmatmul.mubr.f32.gmra.mrb[0].mxu0 %v661
        %v1272 = vpop.f32.mrb[0].mxu0
        %v1273 = vadd.f32 %v414, %v1272
        %v1274 = vpop.f32.mrb[0].mxu0
        %1275 = vmatprep.mubr.f32.mxu0 0.0
        %1276 = vmatmul.mubr.f32.gmra.mrb[0].mxu0 %v664
        %v1277 = vpop.f32.mrb[0].mxu0
        %v1278 = vadd.f32 %v414, %v1277
        %v1279 = vpop.f32.mrb[0].mxu0
        %1280 = vmatprep.mubr.f32.mxu0 0.0
        %1281 = vmatmul.mubr.f32.gmra.mrb[0].mxu0 %v667
        %v1282 = vpop.f32.mrb[0].mxu0
        %v1283 = vadd.f32 %v414, %v1282
        %v1284 = vpop.f32.mrb[0].mxu0
        %1285 = vmatprep.mubr.f32.mxu0 0.0
        %1286 = vmatmul.mubr.f32.gmra.mrb[0].mxu0 %v670
        %v1287 = vpop.f32.mrb[0].mxu0
        %v1288 = vadd.f32 %v414, %v1287
        %v1289 = vpop.f32.mrb[0].mxu0
        %1290 = vmatprep.mubr.f32.mxu0 0.0
        %1291 = vmatmul.mubr.f32.gmra.mrb[0].mxu0 %v673
        %v1292 = vpop.f32.mrb[0].mxu0
        %v1293 = vadd.f32 %v414, %v1292
        %v1294 = vpop.f32.mrb[0].mxu0
        %1295 = vmatprep.mubr.f32.mxu0 0.0
        %1296 = vmatmul.mubr.f32.gmra.mrb[0].mxu0 %v676
        %v1297 = vpop.f32.mrb[0].mxu0
        %v1298 = vadd.f32 %v414, %v1297
        %v1299 = vpop.f32.mrb[0].mxu0
        %1300 = vmatprep.mubr.f32.mxu0 0.0
        %1301 = vmatmul.mubr.f32.gmra.mrb[0].mxu0 %v679
        %v1302 = vpop.f32.mrb[0].mxu0
        %v1303 = vadd.f32 %v414, %v1302
        %v1304 = vpop.f32.mrb[0].mxu0
        %1305 = vmatprep.mubr.f32.mxu0 0.0
        %1306 = vmatmul.mubr.f32.gmra.mrb[0].mxu0 %v682
        %v1307 = vpop.f32.mrb[0].mxu0
        %v1308 = vadd.f32 %v414, %v1307
        %v1309 = vpop.f32.mrb[0].mxu0
        %1310 = vmatprep.mubr.f32.mxu0 0.0
        %1311 = vmatmul.mubr.f32.gmra.mrb[0].mxu0 %v685
        %v1312 = vpop.f32.mrb[0].mxu0
        %v1313 = vadd.f32 %v414, %v1312
        %v1314 = vpop.f32.mrb[0].mxu0
        %1315 = vmatprep.mubr.f32.mxu0 0.0
        %1316 = vmatmul.mubr.f32.gmra.mrb[0].mxu0 %v688
        %v1317 = vpop.f32.mrb[0].mxu0
        %v1318 = vadd.f32 %v414, %v1317
        %v1319 = vpop.f32.mrb[0].mxu0
        %1320 = vmatprep.mubr.f32.mxu0 0.0
        %1321 = vmatmul.mubr.f32.gmra.mrb[0].mxu0 %v691
        %v1322 = vpop.f32.mrb[0].mxu0
        %v1323 = vadd.f32 %v414, %v1322
        %v1324 = vpop.f32.mrb[0].mxu0
        %1325 = vmatprep.mubr.f32.mxu0 0.0
        %1326 = vmatmul.mubr.f32.gmra.mrb[0].mxu0 %v694
        %v1327 = vpop.f32.mrb[0].mxu0
        %v1328 = vadd.f32 %v414, %v1327
        %v1329 = vpop.f32.mrb[0].mxu0
        %1330 = vmatprep.mubr.f32.mxu0 0.0
        %1331 = vmatmul.mubr.f32.gmra.mrb[0].mxu0 %v697
        %v1332 = vpop.f32.mrb[0].mxu0
        %v1333 = vadd.f32 %v414, %v1332
        %v1334 = vpop.f32.mrb[0].mxu0
        %1335 = vmatprep.mubr.f32.mxu0 0.0
        %1336 = vmatmul.mubr.f32.gmra.mrb[0].mxu0 %v700
        %v1337 = vpop.f32.mrb[0].mxu0
        %v1338 = vadd.f32 %v414, %v1337
        %v1339 = vpop.f32.mrb[0].mxu0
        %1340 = vmatprep.mubr.f32.mxu0 0.0
        %1341 = vmatmul.mubr.f32.gmra.mrb[0].mxu0 %v703
        %v1342 = vpop.f32.mrb[0].mxu0
        %v1343 = vadd.f32 %v414, %v1342
        %v1344 = vpop.f32.mrb[0].mxu0
        %1345 = vmatprep.mubr.f32.mxu0 0.0
        %1346 = vmatmul.mubr.f32.gmra.mrb[0].mxu0 %v706
        %v1347 = vpop.f32.mrb[0].mxu0
        %v1348 = vadd.f32 %v414, %v1347
        %v1349 = vpop.f32.mrb[0].mxu0
        %1350 = vmatprep.mubr.f32.mxu0 0.0
        %1351 = vmatmul.mubr.f32.gmra.mrb[0].mxu0 %v709
        %v1352 = vpop.f32.mrb[0].mxu0
        %v1353 = vadd.f32 %v414, %v1352
        %v1354 = vpop.f32.mrb[0].mxu0
        %1355 = vmatprep.mubr.f32.mxu0 0.0
        %1356 = vmatmul.mubr.f32.gmra.mrb[0].mxu0 %v712
        %v1357 = vpop.f32.mrb[0].mxu0
        %v1358 = vadd.f32 %v414, %v1357
        %v1359 = vpop.f32.mrb[0].mxu0
        %1360 = vmatprep.mubr.f32.mxu0 0.0
        %1361 = vmatmul.mubr.f32.gmra.mrb[0].mxu0 %v715
        %v1362 = vpop.f32.mrb[0].mxu0
        %v1363 = vadd.f32 %v414, %v1362
        %v1364 = vpop.f32.mrb[0].mxu0
        %1365 = vmatprep.mubr.f32.mxu0 0.0
        %1366 = vmatmul.mubr.f32.gmra.mrb[0].mxu0 %v718
        %v1367 = vpop.f32.mrb[0].mxu0
        %v1368 = vadd.f32 %v414, %v1367
        %v1369 = vpop.f32.mrb[0].mxu0
        %1370 = vmatprep.mubr.f32.mxu0 0.0
        %1371 = vmatmul.mubr.f32.gmra.mrb[0].mxu0 %v721
        %v1372 = vpop.f32.mrb[0].mxu0
        %v1373 = vadd.f32 %v414, %v1372
        %v1374 = vpop.f32.mrb[0].mxu0
        %1375 = vmatprep.mubr.f32.mxu0 0.0
        %1376 = vmatmul.mubr.f32.gmra.mrb[0].mxu0 %v724
        %v1377 = vpop.f32.mrb[0].mxu0
        %v1378 = vadd.f32 %v414, %v1377
        %v1379 = vpop.f32.mrb[0].mxu0
        %1380 = vmatprep.mubr.f32.mxu0 0.0
        %1381 = vmatmul.mubr.f32.gmra.mrb[0].mxu0 %v727
        %v1382 = vpop.f32.mrb[0].mxu0
        %v1383 = vadd.f32 %v414, %v1382
        %v1384 = vpop.f32.mrb[0].mxu0
        %1385 = vmatprep.mubr.f32.mxu0 0.0
        %1386 = vmatmul.mubr.f32.gmra.mrb[0].mxu0 %v730
        %v1387 = vpop.f32.mrb[0].mxu0
        %v1388 = vadd.f32 %v414, %v1387
        %v1389 = vpop.f32.mrb[0].mxu0
        %1390 = vmatprep.mubr.f32.mxu0 0.0
        %1391 = vmatmul.mubr.f32.gmra.mrb[0].mxu0 %v733
        %v1392 = vpop.f32.mrb[0].mxu0
        %v1393 = vadd.f32 %v414, %v1392
        %v1394 = vpop.f32.mrb[0].mxu0
        %1395 = vmatprep.mubr.f32.mxu0 0.0
        %1396 = vmatmul.mubr.f32.gmra.mrb[0].mxu0 %v736
        %v1397 = vpop.f32.mrb[0].mxu0
        %v1398 = vadd.f32 %v414, %v1397
        %v1399 = vpop.f32.mrb[0].mxu0
        %1400 = vmatprep.mubr.f32.mxu0 0.0
        %1401 = vmatmul.mubr.f32.gmra.mrb[0].mxu0 %v739
        %v1402 = vpop.f32.mrb[0].mxu0
        %v1403 = vadd.f32 %v414, %v1402
        %v1404 = vpop.f32.mrb[0].mxu0
        %1405 = vmatprep.mubr.f32.mxu0 0.0
        %1406 = vmatmul.mubr.f32.gmra.mrb[0].mxu0 %v742
        %v1407 = vpop.f32.mrb[0].mxu0
        %v1408 = vadd.f32 %v414, %v1407
        %v1409 = vpop.f32.mrb[0].mxu0
        %1410 = vmatprep.mubr.f32.mxu0 0.0
        %1411 = vmatmul.mubr.f32.gmra.mrb[0].mxu0 %v745
        %v1412 = vpop.f32.mrb[0].mxu0
        %v1413 = vadd.f32 %v414, %v1412
        %v1414 = vpop.f32.mrb[0].mxu0
        %1415 = vmatprep.mubr.f32.mxu0 0.0
        %1416 = vmatmul.mubr.f32.gmra.mrb[0].mxu0 %v748
        %v1417 = vpop.f32.mrb[0].mxu0
        %v1418 = vadd.f32 %v414, %v1417
        %v1419 = vpop.f32.mrb[0].mxu0
        %1420 = vmatprep.mubr.f32.mxu0 0.0
        %1421 = vmatmul.mubr.f32.gmra.mrb[0].mxu0 %v751
        %v1422 = vpop.f32.mrb[0].mxu0
        %v1423 = vadd.f32 %v414, %v1422
        %v1424 = vpop.f32.mrb[0].mxu0
        %1425 = vmatprep.mubr.f32.mxu0 0.0
        %1426 = vmatmul.mubr.f32.gmra.mrb[0].mxu0 %v754
        %v1427 = vpop.f32.mrb[0].mxu0
        %v1428 = vadd.f32 %v414, %v1427
        %v1429 = vpop.f32.mrb[0].mxu0
        %1430 = vmatprep.mubr.f32.mxu0 0.0
        %1431 = vmatmul.mubr.f32.gmra.mrb[0].mxu0 %v757
        %v1432 = vpop.f32.mrb[0].mxu0
        %v1433 = vadd.f32 %v414, %v1432
        %v1434 = vpop.f32.mrb[0].mxu0
        %1435 = vmatprep.mubr.f32.mxu0 0.0
        %1436 = vmatmul.mubr.f32.gmra.mrb[0].mxu0 %v760
        %v1437 = vpop.f32.mrb[0].mxu0
        %v1438 = vadd.f32 %v414, %v1437
        %v1439 = vpop.f32.mrb[0].mxu0
        %1440 = vmatprep.mubr.f32.mxu0 0.0
        %1441 = vmatmul.mubr.f32.gmra.mrb[0].mxu0 %v763
        %v1442 = vpop.f32.mrb[0].mxu0
        %v1443 = vadd.f32 %v414, %v1442
        %v1444 = vpop.f32.mrb[0].mxu0
        %1445 = vmatprep.mubr.f32.mxu0 0.0
        %1446 = vmatmul.mubr.f32.gmra.mrb[0].mxu0 %v766
        %v1447 = vpop.f32.mrb[0].mxu0
        %v1448 = vadd.f32 %v414, %v1447
        %v1449 = vpop.f32.mrb[0].mxu0
        %1450 = vmatprep.mubr.f32.mxu0 0.0
        %1451 = vmatmul.mubr.f32.gmra.mrb[0].mxu0 %v769
        %v1452 = vpop.f32.mrb[0].mxu0
        %v1453 = vadd.f32 %v414, %v1452
        %v1454 = vpop.f32.mrb[0].mxu0
        %1455 = vmatprep.mubr.f32.mxu0 0.0
        %1456 = vmatmul.mubr.f32.gmra.mrb[0].mxu0 %v772
        %v1457 = vpop.f32.mrb[0].mxu0
        %v1458 = vadd.f32 %v414, %v1457
        %v1459 = vpop.f32.mrb[0].mxu0
        %1460 = vmatprep.mubr.f32.mxu0 0.0
        %1461 = vmatmul.mubr.f32.gmra.mrb[0].mxu0 %v775
        %v1462 = vpop.f32.mrb[0].mxu0
        %v1463 = vadd.f32 %v414, %v1462
        %v1464 = vpop.f32.mrb[0].mxu0
        %1465 = vmatprep.mubr.f32.mxu0 0.0
        %1466 = vmatmul.mubr.f32.gmra.mrb[0].mxu0 %v778
        %v1467 = vpop.f32.mrb[0].mxu0
        %v1468 = vadd.f32 %v414, %v1467
        %v1469 = vpop.f32.mrb[0].mxu0
        %1470 = vmatprep.mubr.f32.mxu0 0.0
        %1471 = vmatmul.mubr.f32.gmra.mrb[0].mxu0 %v781
        %v1472 = vpop.f32.mrb[0].mxu0
        %v1473 = vadd.f32 %v414, %v1472
        %v1474 = vpop.f32.mrb[0].mxu0
        %1475 = vmatprep.mubr.f32.mxu0 0.0
        %1476 = vmatmul.mubr.f32.gmra.mrb[0].mxu0 %v784
        %v1477 = vpop.f32.mrb[0].mxu0
        %v1478 = vadd.f32 %v414, %v1477
        %v1479 = vpop.f32.mrb[0].mxu0
        %1480 = vmatprep.mubr.f32.mxu0 0.0
        %1481 = vmatmul.mubr.f32.gmra.mrb[0].mxu0 %v787
        %v1482 = vpop.f32.mrb[0].mxu0
        %v1483 = vadd.f32 %v414, %v1482
        %v1484 = vpop.f32.mrb[0].mxu0
        %1485 = vmatprep.mubr.f32.mxu0 0.0
        %1486 = vmatmul.mubr.f32.gmra.mrb[0].mxu0 %v790
        %v1487 = vpop.f32.mrb[0].mxu0
        %v1488 = vadd.f32 %v414, %v1487
        %v1489 = vpop.f32.mrb[0].mxu0
        %1490 = vmatprep.mubr.f32.mxu0 0.0
        %1491 = vmatmul.mubr.f32.gmra.mrb[0].mxu0 %v793
        %v1492 = vpop.f32.mrb[0].mxu0
        %v1493 = vadd.f32 %v414, %v1492
        %v1494 = vpop.f32.mrb[0].mxu0
        %1495 = vmatprep.mubr.f32.mxu0 0.0
        %1496 = vmatmul.mubr.f32.gmra.mrb[0].mxu0 %v796
        %v1497 = vpop.f32.mrb[0].mxu0
        %v1498 = vadd.f32 %v414, %v1497
        %v1499 = vpop.f32.mrb[0].mxu0
        %1500 = vmatprep.mubr.f32.mxu0 0.0
        %1501 = vmatmul.mubr.f32.gmra.mrb[0].mxu0 %v799
        %v1502 = vpop.f32.mrb[0].mxu0
        %v1503 = vadd.f32 %v414, %v1502
        %v1504 = vpop.f32.mrb[0].mxu0
        %1505 = vdwg.mxu0
        %v1506 = vmax.f32 %v868, 0.0
        %v1507 = vmax.f32 %v873, 0.0
        %v1508 = vmax.f32 %v878, 0.0
        %v1509 = vmax.f32 %v883, 0.0
        %v1510 = vmax.f32 %v888, 0.0
        %v1511 = vmax.f32 %v893, 0.0
        %v1512 = vmax.f32 %v898, 0.0
        %v1513 = vmax.f32 %v903, 0.0
        %v1514 = vmax.f32 %v908, 0.0
        %v1515 = vmax.f32 %v913, 0.0
        %v1516 = vmax.f32 %v918, 0.0
        %v1517 = vmax.f32 %v923, 0.0
        %v1518 = vmax.f32 %v928, 0.0
        %v1519 = vmax.f32 %v933, 0.0
        %v1520 = vmax.f32 %v938, 0.0
        %v1521 = vmax.f32 %v943, 0.0
        %v1522 = vmax.f32 %v948, 0.0
        %v1523 = vmax.f32 %v953, 0.0
        %v1524 = vmax.f32 %v958, 0.0
        %v1525 = vmax.f32 %v963, 0.0
        %v1526 = vmax.f32 %v968, 0.0
        %v1527 = vmax.f32 %v973, 0.0
        %v1528 = vmax.f32 %v978, 0.0
        %v1529 = vmax.f32 %v983, 0.0
        %v1530 = vmax.f32 %v988, 0.0
        %v1531 = vmax.f32 %v993, 0.0
        %v1532 = vmax.f32 %v998, 0.0
        %v1533 = vmax.f32 %v1003, 0.0
        %v1534 = vmax.f32 %v1008, 0.0
        %v1535 = vmax.f32 %v1013, 0.0
        %v1536 = vmax.f32 %v1018, 0.0
        %v1537 = vmax.f32 %v1023, 0.0
        %v1538 = vmax.f32 %v1028, 0.0
        %v1539 = vmax.f32 %v1033, 0.0
        %v1540 = vmax.f32 %v1038, 0.0
        %v1541 = vmax.f32 %v1043, 0.0
        %v1542 = vmax.f32 %v1048, 0.0
        %v1543 = vmax.f32 %v1053, 0.0
        %v1544 = vmax.f32 %v1058, 0.0
        %v1545 = vmax.f32 %v1063, 0.0
        %v1546 = vmax.f32 %v1068, 0.0
        %v1547 = vmax.f32 %v1073, 0.0
        %v1548 = vmax.f32 %v1078, 0.0
        %v1549 = vmax.f32 %v1083, 0.0
        %v1550 = vmax.f32 %v1088, 0.0
        %v1551 = vmax.f32 %v1093, 0.0
        %v1552 = vmax.f32 %v1098, 0.0
        %v1553 = vmax.f32 %v1103, 0.0
        %v1554 = vmax.f32 %v1108, 0.0
        %v1555 = vmax.f32 %v1113, 0.0
        %v1556 = vmax.f32 %v1118, 0.0
        %v1557 = vmax.f32 %v1123, 0.0
        %v1558 = vmax.f32 %v1128, 0.0
        %v1559 = vmax.f32 %v1133, 0.0
        %v1560 = vmax.f32 %v1138, 0.0
        %v1561 = vmax.f32 %v1143, 0.0
        %v1562 = vmax.f32 %v1148, 0.0
        %v1563 = vmax.f32 %v1153, 0.0
        %v1564 = vmax.f32 %v1158, 0.0
        %v1565 = vmax.f32 %v1163, 0.0
        %v1566 = vmax.f32 %v1168, 0.0
        %v1567 = vmax.f32 %v1173, 0.0
        %v1568 = vmax.f32 %v1178, 0.0
        %v1569 = vmax.f32 %v1183, 0.0
        %v1570 = vmax.f32 %v1188, 0.0
        %v1571 = vmax.f32 %v1193, 0.0
        %v1572 = vmax.f32 %v1198, 0.0
        %v1573 = vmax.f32 %v1203, 0.0
        %v1574 = vmax.f32 %v1208, 0.0
        %v1575 = vmax.f32 %v1213, 0.0
        %v1576 = vmax.f32 %v1218, 0.0
        %v1577 = vmax.f32 %v1223, 0.0
        %v1578 = vmax.f32 %v1228, 0.0
        %v1579 = vmax.f32 %v1233, 0.0
        %v1580 = vmax.f32 %v1238, 0.0
        %v1581 = vmax.f32 %v1243, 0.0
        %v1582 = vmax.f32 %v1248, 0.0
        %v1583 = vmax.f32 %v1253, 0.0
        %v1584 = vmax.f32 %v1258, 0.0
        %v1585 = vmax.f32 %v1263, 0.0
        %v1586 = vmax.f32 %v1268, 0.0
        %v1587 = vmax.f32 %v1273, 0.0
        %v1588 = vmax.f32 %v1278, 0.0
        %v1589 = vmax.f32 %v1283, 0.0
        %v1590 = vmax.f32 %v1288, 0.0
        %v1591 = vmax.f32 %v1293, 0.0
        %v1592 = vmax.f32 %v1298, 0.0
        %v1593 = vmax.f32 %v1303, 0.0
        %v1594 = vmax.f32 %v1308, 0.0
        %v1595 = vmax.f32 %v1313, 0.0
        %v1596 = vmax.f32 %v1318, 0.0
        %v1597 = vmax.f32 %v1323, 0.0
        %v1598 = vmax.f32 %v1328, 0.0
        %v1599 = vmax.f32 %v1333, 0.0
        %v1600 = vmax.f32 %v1338, 0.0
        %v1601 = vmax.f32 %v1343, 0.0
        %v1602 = vmax.f32 %v1348, 0.0
        %v1603 = vmax.f32 %v1353, 0.0
        %v1604 = vmax.f32 %v1358, 0.0
        %v1605 = vmax.f32 %v1363, 0.0
        %v1606 = vmax.f32 %v1368, 0.0
        %v1607 = vmax.f32 %v1373, 0.0
        %v1608 = vmax.f32 %v1378, 0.0
        %v1609 = vmax.f32 %v1383, 0.0
        %v1610 = vmax.f32 %v1388, 0.0
        %v1611 = vmax.f32 %v1393, 0.0
        %v1612 = vmax.f32 %v1398, 0.0
        %v1613 = vmax.f32 %v1403, 0.0
        %v1614 = vmax.f32 %v1408, 0.0
        %v1615 = vmax.f32 %v1413, 0.0
        %v1616 = vmax.f32 %v1418, 0.0
        %v1617 = vmax.f32 %v1423, 0.0
        %v1618 = vmax.f32 %v1428, 0.0
        %v1619 = vmax.f32 %v1433, 0.0
        %v1620 = vmax.f32 %v1438, 0.0
        %v1621 = vmax.f32 %v1443, 0.0
        %v1622 = vmax.f32 %v1448, 0.0
        %v1623 = vmax.f32 %v1453, 0.0
        %v1624 = vmax.f32 %v1458, 0.0
        %v1625 = vmax.f32 %v1463, 0.0
        %v1626 = vmax.f32 %v1468, 0.0
        %v1627 = vmax.f32 %v1473, 0.0
        %v1628 = vmax.f32 %v1478, 0.0
        %v1629 = vmax.f32 %v1483, 0.0
        %v1630 = vmax.f32 %v1488, 0.0
        %v1631 = vmax.f32 %v1493, 0.0
        %v1632 = vmax.f32 %v1498, 0.0
        %v1633 = vmax.f32 %v1503, 0.0
        %v1634 = vld [vmem:[%s3] sm:$0xff]
        %v1635 = vld [vmem:[%s3 + $0x8] sm:$0xff]
        %v1636 = vld [vmem:[%s3 + $0x10] sm:$0xff]
        %v1637 = vld [vmem:[%s3 + $0x18] sm:$0xff]
        %v1638 = vld [vmem:[%s3 + $0x20] sm:$0xff]
        %v1639 = vld [vmem:[%s3 + $0x28] sm:$0xff]
        %v1640 = vld [vmem:[%s3 + $0x30] sm:$0xff]
        %v1641 = vld [vmem:[%s3 + $0x38] sm:$0xff]
        %v1642 = vld [vmem:[%s4] sm:$0x1]
        %v1644 = vlaneseq
        %v1645 = vshrl.u32 %v1644, 7
        %v1646 = vsub.s32 0, %v1645
        %v1647 = vrot.slane %v1642, %v1646
        %vm1649 = vcmask 523264
        %v1651 = vsel %vm1649, %v1506, 0
        %v1654 = vsel %vm1649, %v1507, 0
        %v1657 = vsel %vm1649, %v1508, 0
        %v1660 = vsel %vm1649, %v1509, 0
        %v1663 = vsel %vm1649, %v1510, 0
        %v1666 = vsel %vm1649, %v1511, 0
        %v1669 = vsel %vm1649, %v1512, 0
        %v1672 = vsel %vm1649, %v1513, 0
        %v1675 = vsel %vm1649, %v1514, 0
        %v1678 = vsel %vm1649, %v1515, 0
        %v1681 = vsel %vm1649, %v1516, 0
        %v1684 = vsel %vm1649, %v1517, 0
        %v1687 = vsel %vm1649, %v1518, 0
        %v1690 = vsel %vm1649, %v1519, 0
        %v1693 = vsel %vm1649, %v1520, 0
        %v1696 = vsel %vm1649, %v1521, 0
        %v1699 = vsel %vm1649, %v1522, 0
        %v1702 = vsel %vm1649, %v1523, 0
        %v1705 = vsel %vm1649, %v1524, 0
        %v1708 = vsel %vm1649, %v1525, 0
        %v1711 = vsel %vm1649, %v1526, 0
        %v1714 = vsel %vm1649, %v1527, 0
        %v1717 = vsel %vm1649, %v1528, 0
        %v1720 = vsel %vm1649, %v1529, 0
        %v1723 = vsel %vm1649, %v1530, 0
        %v1726 = vsel %vm1649, %v1531, 0
        %v1729 = vsel %vm1649, %v1532, 0
        %v1732 = vsel %vm1649, %v1533, 0
        %v1735 = vsel %vm1649, %v1534, 0
        %v1738 = vsel %vm1649, %v1535, 0
        %v1741 = vsel %vm1649, %v1536, 0
        %v1744 = vsel %vm1649, %v1537, 0
        %v1747 = vsel %vm1649, %v1538, 0
        %v1750 = vsel %vm1649, %v1539, 0
        %v1753 = vsel %vm1649, %v1540, 0
        %v1756 = vsel %vm1649, %v1541, 0
        %v1759 = vsel %vm1649, %v1542, 0
        %v1762 = vsel %vm1649, %v1543, 0
        %v1765 = vsel %vm1649, %v1544, 0
        %v1768 = vsel %vm1649, %v1545, 0
        %v1771 = vsel %vm1649, %v1546, 0
        %v1774 = vsel %vm1649, %v1547, 0
        %v1777 = vsel %vm1649, %v1548, 0
        %v1780 = vsel %vm1649, %v1549, 0
        %v1783 = vsel %vm1649, %v1550, 0
        %v1786 = vsel %vm1649, %v1551, 0
        %v1789 = vsel %vm1649, %v1552, 0
        %v1792 = vsel %vm1649, %v1553, 0
        %v1795 = vsel %vm1649, %v1554, 0
        %v1798 = vsel %vm1649, %v1555, 0
        %v1801 = vsel %vm1649, %v1556, 0
        %v1804 = vsel %vm1649, %v1557, 0
        %v1807 = vsel %vm1649, %v1558, 0
        %v1810 = vsel %vm1649, %v1559, 0
        %v1813 = vsel %vm1649, %v1560, 0
        %v1816 = vsel %vm1649, %v1561, 0
        %v1819 = vsel %vm1649, %v1562, 0
        %v1822 = vsel %vm1649, %v1563, 0
        %v1825 = vsel %vm1649, %v1564, 0
        %v1828 = vsel %vm1649, %v1565, 0
        %v1831 = vsel %vm1649, %v1566, 0
        %v1834 = vsel %vm1649, %v1567, 0
        %v1837 = vsel %vm1649, %v1568, 0
        %v1840 = vsel %vm1649, %v1569, 0
        %v1843 = vsel %vm1649, %v1570, 0
        %v1846 = vsel %vm1649, %v1571, 0
        %v1849 = vsel %vm1649, %v1572, 0
        %v1852 = vsel %vm1649, %v1573, 0
        %v1855 = vsel %vm1649, %v1574, 0
        %v1858 = vsel %vm1649, %v1575, 0
        %v1861 = vsel %vm1649, %v1576, 0
        %v1864 = vsel %vm1649, %v1577, 0
        %v1867 = vsel %vm1649, %v1578, 0
        %v1870 = vsel %vm1649, %v1579, 0
        %v1873 = vsel %vm1649, %v1580, 0
        %v1876 = vsel %vm1649, %v1581, 0
        %v1879 = vsel %vm1649, %v1582, 0
        %v1882 = vsel %vm1649, %v1583, 0
        %v1885 = vsel %vm1649, %v1584, 0
        %v1888 = vsel %vm1649, %v1585, 0
        %v1891 = vsel %vm1649, %v1586, 0
        %v1894 = vsel %vm1649, %v1587, 0
        %v1897 = vsel %vm1649, %v1588, 0
        %v1900 = vsel %vm1649, %v1589, 0
        %v1903 = vsel %vm1649, %v1590, 0
        %v1906 = vsel %vm1649, %v1591, 0
        %v1909 = vsel %vm1649, %v1592, 0
        %v1912 = vsel %vm1649, %v1593, 0
        %v1915 = vsel %vm1649, %v1594, 0
        %v1918 = vsel %vm1649, %v1595, 0
        %v1921 = vsel %vm1649, %v1596, 0
        %v1924 = vsel %vm1649, %v1597, 0
        %v1927 = vsel %vm1649, %v1598, 0
        %v1930 = vsel %vm1649, %v1599, 0
        %v1933 = vsel %vm1649, %v1600, 0
        %v1936 = vsel %vm1649, %v1601, 0
        %v1939 = vsel %vm1649, %v1602, 0
        %v1942 = vsel %vm1649, %v1603, 0
        %v1945 = vsel %vm1649, %v1604, 0
        %v1948 = vsel %vm1649, %v1605, 0
        %v1951 = vsel %vm1649, %v1606, 0
        %v1954 = vsel %vm1649, %v1607, 0
        %v1957 = vsel %vm1649, %v1608, 0
        %v1960 = vsel %vm1649, %v1609, 0
        %v1963 = vsel %vm1649, %v1610, 0
        %v1966 = vsel %vm1649, %v1611, 0
        %v1969 = vsel %vm1649, %v1612, 0
        %v1972 = vsel %vm1649, %v1613, 0
        %v1975 = vsel %vm1649, %v1614, 0
        %v1978 = vsel %vm1649, %v1615, 0
        %v1981 = vsel %vm1649, %v1616, 0
        %v1984 = vsel %vm1649, %v1617, 0
        %v1987 = vsel %vm1649, %v1618, 0
        %v1990 = vsel %vm1649, %v1619, 0
        %v1993 = vsel %vm1649, %v1620, 0
        %v1996 = vsel %vm1649, %v1621, 0
        %v1999 = vsel %vm1649, %v1622, 0
        %v2002 = vsel %vm1649, %v1623, 0
        %v2005 = vsel %vm1649, %v1624, 0
        %v2008 = vsel %vm1649, %v1625, 0
        %v2011 = vsel %vm1649, %v1626, 0
        %v2014 = vsel %vm1649, %v1627, 0
        %v2017 = vsel %vm1649, %v1628, 0
        %v2020 = vsel %vm1649, %v1629, 0
        %v2023 = vsel %vm1649, %v1630, 0
        %v2026 = vsel %vm1649, %v1631, 0
        %v2029 = vsel %vm1649, %v1632, 0
        %v2032 = vsel %vm1649, %v1633, 0
        %2034 = vmatprep.subr.mxu0 0.0
        %2035 = vmatpush1.msra.mxu0 %v1634
        %2036 = vmatprep.subr.mxu0 0.0
        %2037 = vmatpush1.msra.mxu0 %v1635
        %2038 = vmatprep.subr.mxu0 0.0
        %2039 = vmatpush1.msra.mxu0 %v1636
        %2040 = vmatprep.subr.mxu0 0.0
        %2041 = vmatpush1.msra.mxu0 %v1637
        %2042 = vmatprep.subr.mxu0 0.0
        %2043 = vmatpush1.msra.mxu0 %v1638
        %2044 = vmatprep.subr.mxu0 0.0
        %2045 = vmatpush1.msra.mxu0 %v1639
        %2046 = vmatprep.subr.mxu0 0.0
        %2047 = vmatpush1.msra.mxu0 %v1640
        %2048 = vmatprep.subr.mxu0 0.0
        %2049 = vmatpush1.msra.mxu0 %v1641
        %2050 = vmatprep.subr.mxu0 0.0
        %2051 = vmatpush1.msra.mxu0 0.0
        %2052 = vmatprep.subr.mxu0 0.0
        %2053 = vmatpush1.msra.mxu0 0.0
        %2054 = vmatprep.subr.mxu0 0.0
        %2055 = vmatpush1.msra.mxu0 0.0
        %2056 = vmatprep.subr.mxu0 0.0
        %2057 = vmatpush1.msra.mxu0 0.0
        %2058 = vmatprep.subr.mxu0 0.0
        %2059 = vmatpush1.msra.mxu0 0.0
        %2060 = vmatprep.subr.mxu0 0.0
        %2061 = vmatpush1.msra.mxu0 0.0
        %2062 = vmatprep.subr.mxu0 0.0
        %2063 = vmatpush1.msra.mxu0 0.0
        %2064 = vmatprep.subr.mxu0 0.0
        %2065 = vmatpush1.msra.mxu0 0.0
        %2066 = vmatprep.subr.mxu0 0.0
        %2067 = vmatpush1.msra.mxu0 0.0
        %2068 = vmatprep.subr.mxu0 0.0
        %2069 = vmatpush1.msra.mxu0 0.0
        %2070 = vmatprep.subr.mxu0 0.0
        %2071 = vmatpush1.msra.mxu0 0.0
        %2072 = vmatprep.subr.mxu0 0.0
        %2073 = vmatpush1.msra.mxu0 0.0
        %2074 = vmatprep.subr.mxu0 0.0
        %2075 = vmatpush1.msra.mxu0 0.0
        %2076 = vmatprep.subr.mxu0 0.0
        %2077 = vmatpush1.msra.mxu0 0.0
        %2078 = vmatprep.subr.mxu0 0.0
        %2079 = vmatpush1.msra.mxu0 0.0
        %2080 = vmatprep.subr.mxu0 0.0
        %2081 = vmatpush1.msra.mxu0 0.0
        %2082 = vmatprep.subr.mxu0 0.0
        %2083 = vmatpush1.msra.mxu0 0.0
        %2084 = vmatprep.subr.mxu0 0.0
        %2085 = vmatpush1.msra.mxu0 0.0
        %2086 = vmatprep.subr.mxu0 0.0
        %2087 = vmatpush1.msra.mxu0 0.0
        %2088 = vmatprep.subr.mxu0 0.0
        %2089 = vmatpush1.msra.mxu0 0.0
        %2090 = vmatprep.subr.mxu0 0.0
        %2091 = vmatpush1.msra.mxu0 0.0
        %2092 = vmatprep.subr.mxu0 0.0
        %2093 = vmatpush1.msra.mxu0 0.0
        %2094 = vmatprep.subr.mxu0 0.0
        %2095 = vmatpush1.msra.mxu0 0.0
        %2096 = vmatprep.subr.mxu0 0.0
        %2097 = vmatpush1.msra.mxu0 0.0
        %2098 = vmatprep.mubr.f32.mxu0 0.0
        %2099 = vmatmul.mubr.f32.gmra.mrb[0].mxu0 %v1651
        %v2100 = vpop.f32.mrb[0].mxu0
        %v2101 = vadd.f32 %v1647, %v2100
        %v2102 = vpop.f32.mrb[0].mxu0
        %2103 = vmatprep.mubr.f32.mxu0 0.0
        %2104 = vmatmul.mubr.f32.gmra.mrb[0].mxu0 %v1654
        %v2105 = vpop.f32.mrb[0].mxu0
        %v2106 = vadd.f32 %v1647, %v2105
        %v2107 = vpop.f32.mrb[0].mxu0
        %2108 = vmatprep.mubr.f32.mxu0 0.0
        %2109 = vmatmul.mubr.f32.gmra.mrb[0].mxu0 %v1657
        %v2110 = vpop.f32.mrb[0].mxu0
        %v2111 = vadd.f32 %v1647, %v2110
        %v2112 = vpop.f32.mrb[0].mxu0
        %2113 = vmatprep.mubr.f32.mxu0 0.0
        %2114 = vmatmul.mubr.f32.gmra.mrb[0].mxu0 %v1660
        %v2115 = vpop.f32.mrb[0].mxu0
        %v2116 = vadd.f32 %v1647, %v2115
        %v2117 = vpop.f32.mrb[0].mxu0
        %2118 = vmatprep.mubr.f32.mxu0 0.0
        %2119 = vmatmul.mubr.f32.gmra.mrb[0].mxu0 %v1663
        %v2120 = vpop.f32.mrb[0].mxu0
        %v2121 = vadd.f32 %v1647, %v2120
        %v2122 = vpop.f32.mrb[0].mxu0
        %2123 = vmatprep.mubr.f32.mxu0 0.0
        %2124 = vmatmul.mubr.f32.gmra.mrb[0].mxu0 %v1666
        %v2125 = vpop.f32.mrb[0].mxu0
        %v2126 = vadd.f32 %v1647, %v2125
        %v2127 = vpop.f32.mrb[0].mxu0
        %2128 = vmatprep.mubr.f32.mxu0 0.0
        %2129 = vmatmul.mubr.f32.gmra.mrb[0].mxu0 %v1669
        %v2130 = vpop.f32.mrb[0].mxu0
        %v2131 = vadd.f32 %v1647, %v2130
        %v2132 = vpop.f32.mrb[0].mxu0
        %2133 = vmatprep.mubr.f32.mxu0 0.0
        %2134 = vmatmul.mubr.f32.gmra.mrb[0].mxu0 %v1672
        %v2135 = vpop.f32.mrb[0].mxu0
        %v2136 = vadd.f32 %v1647, %v2135
        %v2137 = vpop.f32.mrb[0].mxu0
        %2138 = vmatprep.mubr.f32.mxu0 0.0
        %2139 = vmatmul.mubr.f32.gmra.mrb[0].mxu0 %v1675
        %v2140 = vpop.f32.mrb[0].mxu0
        %v2141 = vadd.f32 %v1647, %v2140
        %v2142 = vpop.f32.mrb[0].mxu0
        %2143 = vmatprep.mubr.f32.mxu0 0.0
        %2144 = vmatmul.mubr.f32.gmra.mrb[0].mxu0 %v1678
        %v2145 = vpop.f32.mrb[0].mxu0
        %v2146 = vadd.f32 %v1647, %v2145
        %v2147 = vpop.f32.mrb[0].mxu0
        %2148 = vmatprep.mubr.f32.mxu0 0.0
        %2149 = vmatmul.mubr.f32.gmra.mrb[0].mxu0 %v1681
        %v2150 = vpop.f32.mrb[0].mxu0
        %v2151 = vadd.f32 %v1647, %v2150
        %v2152 = vpop.f32.mrb[0].mxu0
        %2153 = vmatprep.mubr.f32.mxu0 0.0
        %2154 = vmatmul.mubr.f32.gmra.mrb[0].mxu0 %v1684
        %v2155 = vpop.f32.mrb[0].mxu0
        %v2156 = vadd.f32 %v1647, %v2155
        %v2157 = vpop.f32.mrb[0].mxu0
        %2158 = vmatprep.mubr.f32.mxu0 0.0
        %2159 = vmatmul.mubr.f32.gmra.mrb[0].mxu0 %v1687
        %v2160 = vpop.f32.mrb[0].mxu0
        %v2161 = vadd.f32 %v1647, %v2160
        %v2162 = vpop.f32.mrb[0].mxu0
        %2163 = vmatprep.mubr.f32.mxu0 0.0
        %2164 = vmatmul.mubr.f32.gmra.mrb[0].mxu0 %v1690
        %v2165 = vpop.f32.mrb[0].mxu0
        %v2166 = vadd.f32 %v1647, %v2165
        %v2167 = vpop.f32.mrb[0].mxu0
        %2168 = vmatprep.mubr.f32.mxu0 0.0
        %2169 = vmatmul.mubr.f32.gmra.mrb[0].mxu0 %v1693
        %v2170 = vpop.f32.mrb[0].mxu0
        %v2171 = vadd.f32 %v1647, %v2170
        %v2172 = vpop.f32.mrb[0].mxu0
        %2173 = vmatprep.mubr.f32.mxu0 0.0
        %2174 = vmatmul.mubr.f32.gmra.mrb[0].mxu0 %v1696
        %v2175 = vpop.f32.mrb[0].mxu0
        %v2176 = vadd.f32 %v1647, %v2175
        %v2177 = vpop.f32.mrb[0].mxu0
        %2178 = vmatprep.mubr.f32.mxu0 0.0
        %2179 = vmatmul.mubr.f32.gmra.mrb[0].mxu0 %v1699
        %v2180 = vpop.f32.mrb[0].mxu0
        %v2181 = vadd.f32 %v1647, %v2180
        %v2182 = vpop.f32.mrb[0].mxu0
        %2183 = vmatprep.mubr.f32.mxu0 0.0
        %2184 = vmatmul.mubr.f32.gmra.mrb[0].mxu0 %v1702
        %v2185 = vpop.f32.mrb[0].mxu0
        %v2186 = vadd.f32 %v1647, %v2185
        %v2187 = vpop.f32.mrb[0].mxu0
        %2188 = vmatprep.mubr.f32.mxu0 0.0
        %2189 = vmatmul.mubr.f32.gmra.mrb[0].mxu0 %v1705
        %v2190 = vpop.f32.mrb[0].mxu0
        %v2191 = vadd.f32 %v1647, %v2190
        %v2192 = vpop.f32.mrb[0].mxu0
        %2193 = vmatprep.mubr.f32.mxu0 0.0
        %2194 = vmatmul.mubr.f32.gmra.mrb[0].mxu0 %v1708
        %v2195 = vpop.f32.mrb[0].mxu0
        %v2196 = vadd.f32 %v1647, %v2195
        %v2197 = vpop.f32.mrb[0].mxu0
        %2198 = vmatprep.mubr.f32.mxu0 0.0
        %2199 = vmatmul.mubr.f32.gmra.mrb[0].mxu0 %v1711
        %v2200 = vpop.f32.mrb[0].mxu0
        %v2201 = vadd.f32 %v1647, %v2200
        %v2202 = vpop.f32.mrb[0].mxu0
        %2203 = vmatprep.mubr.f32.mxu0 0.0
        %2204 = vmatmul.mubr.f32.gmra.mrb[0].mxu0 %v1714
        %v2205 = vpop.f32.mrb[0].mxu0
        %v2206 = vadd.f32 %v1647, %v2205
        %v2207 = vpop.f32.mrb[0].mxu0
        %2208 = vmatprep.mubr.f32.mxu0 0.0
        %2209 = vmatmul.mubr.f32.gmra.mrb[0].mxu0 %v1717
        %v2210 = vpop.f32.mrb[0].mxu0
        %v2211 = vadd.f32 %v1647, %v2210
        %v2212 = vpop.f32.mrb[0].mxu0
        %2213 = vmatprep.mubr.f32.mxu0 0.0
        %2214 = vmatmul.mubr.f32.gmra.mrb[0].mxu0 %v1720
        %v2215 = vpop.f32.mrb[0].mxu0
        %v2216 = vadd.f32 %v1647, %v2215
        %v2217 = vpop.f32.mrb[0].mxu0
        %2218 = vmatprep.mubr.f32.mxu0 0.0
        %2219 = vmatmul.mubr.f32.gmra.mrb[0].mxu0 %v1723
        %v2220 = vpop.f32.mrb[0].mxu0
        %v2221 = vadd.f32 %v1647, %v2220
        %v2222 = vpop.f32.mrb[0].mxu0
        %2223 = vmatprep.mubr.f32.mxu0 0.0
        %2224 = vmatmul.mubr.f32.gmra.mrb[0].mxu0 %v1726
        %v2225 = vpop.f32.mrb[0].mxu0
        %v2226 = vadd.f32 %v1647, %v2225
        %v2227 = vpop.f32.mrb[0].mxu0
        %2228 = vmatprep.mubr.f32.mxu0 0.0
        %2229 = vmatmul.mubr.f32.gmra.mrb[0].mxu0 %v1729
        %v2230 = vpop.f32.mrb[0].mxu0
        %v2231 = vadd.f32 %v1647, %v2230
        %v2232 = vpop.f32.mrb[0].mxu0
        %2233 = vmatprep.mubr.f32.mxu0 0.0
        %2234 = vmatmul.mubr.f32.gmra.mrb[0].mxu0 %v1732
        %v2235 = vpop.f32.mrb[0].mxu0
        %v2236 = vadd.f32 %v1647, %v2235
        %v2237 = vpop.f32.mrb[0].mxu0
        %2238 = vmatprep.mubr.f32.mxu0 0.0
        %2239 = vmatmul.mubr.f32.gmra.mrb[0].mxu0 %v1735
        %v2240 = vpop.f32.mrb[0].mxu0
        %v2241 = vadd.f32 %v1647, %v2240
        %v2242 = vpop.f32.mrb[0].mxu0
        %2243 = vmatprep.mubr.f32.mxu0 0.0
        %2244 = vmatmul.mubr.f32.gmra.mrb[0].mxu0 %v1738
        %v2245 = vpop.f32.mrb[0].mxu0
        %v2246 = vadd.f32 %v1647, %v2245
        %v2247 = vpop.f32.mrb[0].mxu0
        %2248 = vmatprep.mubr.f32.mxu0 0.0
        %2249 = vmatmul.mubr.f32.gmra.mrb[0].mxu0 %v1741
        %v2250 = vpop.f32.mrb[0].mxu0
        %v2251 = vadd.f32 %v1647, %v2250
        %v2252 = vpop.f32.mrb[0].mxu0
        %2253 = vmatprep.mubr.f32.mxu0 0.0
        %2254 = vmatmul.mubr.f32.gmra.mrb[0].mxu0 %v1744
        %v2255 = vpop.f32.mrb[0].mxu0
        %v2256 = vadd.f32 %v1647, %v2255
        %v2257 = vpop.f32.mrb[0].mxu0
        %2258 = vmatprep.mubr.f32.mxu0 0.0
        %2259 = vmatmul.mubr.f32.gmra.mrb[0].mxu0 %v1747
        %v2260 = vpop.f32.mrb[0].mxu0
        %v2261 = vadd.f32 %v1647, %v2260
        %v2262 = vpop.f32.mrb[0].mxu0
        %2263 = vmatprep.mubr.f32.mxu0 0.0
        %2264 = vmatmul.mubr.f32.gmra.mrb[0].mxu0 %v1750
        %v2265 = vpop.f32.mrb[0].mxu0
        %v2266 = vadd.f32 %v1647, %v2265
        %v2267 = vpop.f32.mrb[0].mxu0
        %2268 = vmatprep.mubr.f32.mxu0 0.0
        %2269 = vmatmul.mubr.f32.gmra.mrb[0].mxu0 %v1753
        %v2270 = vpop.f32.mrb[0].mxu0
        %v2271 = vadd.f32 %v1647, %v2270
        %v2272 = vpop.f32.mrb[0].mxu0
        %2273 = vmatprep.mubr.f32.mxu0 0.0
        %2274 = vmatmul.mubr.f32.gmra.mrb[0].mxu0 %v1756
        %v2275 = vpop.f32.mrb[0].mxu0
        %v2276 = vadd.f32 %v1647, %v2275
        %v2277 = vpop.f32.mrb[0].mxu0
        %2278 = vmatprep.mubr.f32.mxu0 0.0
        %2279 = vmatmul.mubr.f32.gmra.mrb[0].mxu0 %v1759
        %v2280 = vpop.f32.mrb[0].mxu0
        %v2281 = vadd.f32 %v1647, %v2280
        %v2282 = vpop.f32.mrb[0].mxu0
        %2283 = vmatprep.mubr.f32.mxu0 0.0
        %2284 = vmatmul.mubr.f32.gmra.mrb[0].mxu0 %v1762
        %v2285 = vpop.f32.mrb[0].mxu0
        %v2286 = vadd.f32 %v1647, %v2285
        %v2287 = vpop.f32.mrb[0].mxu0
        %2288 = vmatprep.mubr.f32.mxu0 0.0
        %2289 = vmatmul.mubr.f32.gmra.mrb[0].mxu0 %v1765
        %v2290 = vpop.f32.mrb[0].mxu0
        %v2291 = vadd.f32 %v1647, %v2290
        %v2292 = vpop.f32.mrb[0].mxu0
        %2293 = vmatprep.mubr.f32.mxu0 0.0
        %2294 = vmatmul.mubr.f32.gmra.mrb[0].mxu0 %v1768
        %v2295 = vpop.f32.mrb[0].mxu0
        %v2296 = vadd.f32 %v1647, %v2295
        %v2297 = vpop.f32.mrb[0].mxu0
        %2298 = vmatprep.mubr.f32.mxu0 0.0
        %2299 = vmatmul.mubr.f32.gmra.mrb[0].mxu0 %v1771
        %v2300 = vpop.f32.mrb[0].mxu0
        %v2301 = vadd.f32 %v1647, %v2300
        %v2302 = vpop.f32.mrb[0].mxu0
        %2303 = vmatprep.mubr.f32.mxu0 0.0
        %2304 = vmatmul.mubr.f32.gmra.mrb[0].mxu0 %v1774
        %v2305 = vpop.f32.mrb[0].mxu0
        %v2306 = vadd.f32 %v1647, %v2305
        %v2307 = vpop.f32.mrb[0].mxu0
        %2308 = vmatprep.mubr.f32.mxu0 0.0
        %2309 = vmatmul.mubr.f32.gmra.mrb[0].mxu0 %v1777
        %v2310 = vpop.f32.mrb[0].mxu0
        %v2311 = vadd.f32 %v1647, %v2310
        %v2312 = vpop.f32.mrb[0].mxu0
        %2313 = vmatprep.mubr.f32.mxu0 0.0
        %2314 = vmatmul.mubr.f32.gmra.mrb[0].mxu0 %v1780
        %v2315 = vpop.f32.mrb[0].mxu0
        %v2316 = vadd.f32 %v1647, %v2315
        %v2317 = vpop.f32.mrb[0].mxu0
        %2318 = vmatprep.mubr.f32.mxu0 0.0
        %2319 = vmatmul.mubr.f32.gmra.mrb[0].mxu0 %v1783
        %v2320 = vpop.f32.mrb[0].mxu0
        %v2321 = vadd.f32 %v1647, %v2320
        %v2322 = vpop.f32.mrb[0].mxu0
        %2323 = vmatprep.mubr.f32.mxu0 0.0
        %2324 = vmatmul.mubr.f32.gmra.mrb[0].mxu0 %v1786
        %v2325 = vpop.f32.mrb[0].mxu0
        %v2326 = vadd.f32 %v1647, %v2325
        %v2327 = vpop.f32.mrb[0].mxu0
        %2328 = vmatprep.mubr.f32.mxu0 0.0
        %2329 = vmatmul.mubr.f32.gmra.mrb[0].mxu0 %v1789
        %v2330 = vpop.f32.mrb[0].mxu0
        %v2331 = vadd.f32 %v1647, %v2330
        %v2332 = vpop.f32.mrb[0].mxu0
        %2333 = vmatprep.mubr.f32.mxu0 0.0
        %2334 = vmatmul.mubr.f32.gmra.mrb[0].mxu0 %v1792
        %v2335 = vpop.f32.mrb[0].mxu0
        %v2336 = vadd.f32 %v1647, %v2335
        %v2337 = vpop.f32.mrb[0].mxu0
        %2338 = vmatprep.mubr.f32.mxu0 0.0
        %2339 = vmatmul.mubr.f32.gmra.mrb[0].mxu0 %v1795
        %v2340 = vpop.f32.mrb[0].mxu0
        %v2341 = vadd.f32 %v1647, %v2340
        %v2342 = vpop.f32.mrb[0].mxu0
        %2343 = vmatprep.mubr.f32.mxu0 0.0
        %2344 = vmatmul.mubr.f32.gmra.mrb[0].mxu0 %v1798
        %v2345 = vpop.f32.mrb[0].mxu0
        %v2346 = vadd.f32 %v1647, %v2345
        %v2347 = vpop.f32.mrb[0].mxu0
        %2348 = vmatprep.mubr.f32.mxu0 0.0
        %2349 = vmatmul.mubr.f32.gmra.mrb[0].mxu0 %v1801
        %v2350 = vpop.f32.mrb[0].mxu0
        %v2351 = vadd.f32 %v1647, %v2350
        %v2352 = vpop.f32.mrb[0].mxu0
        %2353 = vmatprep.mubr.f32.mxu0 0.0
        %2354 = vmatmul.mubr.f32.gmra.mrb[0].mxu0 %v1804
        %v2355 = vpop.f32.mrb[0].mxu0
        %v2356 = vadd.f32 %v1647, %v2355
        %v2357 = vpop.f32.mrb[0].mxu0
        %2358 = vmatprep.mubr.f32.mxu0 0.0
        %2359 = vmatmul.mubr.f32.gmra.mrb[0].mxu0 %v1807
        %v2360 = vpop.f32.mrb[0].mxu0
        %v2361 = vadd.f32 %v1647, %v2360
        %v2362 = vpop.f32.mrb[0].mxu0
        %2363 = vmatprep.mubr.f32.mxu0 0.0
        %2364 = vmatmul.mubr.f32.gmra.mrb[0].mxu0 %v1810
        %v2365 = vpop.f32.mrb[0].mxu0
        %v2366 = vadd.f32 %v1647, %v2365
        %v2367 = vpop.f32.mrb[0].mxu0
        %2368 = vmatprep.mubr.f32.mxu0 0.0
        %2369 = vmatmul.mubr.f32.gmra.mrb[0].mxu0 %v1813
        %v2370 = vpop.f32.mrb[0].mxu0
        %v2371 = vadd.f32 %v1647, %v2370
        %v2372 = vpop.f32.mrb[0].mxu0
        %2373 = vmatprep.mubr.f32.mxu0 0.0
        %2374 = vmatmul.mubr.f32.gmra.mrb[0].mxu0 %v1816
        %v2375 = vpop.f32.mrb[0].mxu0
        %v2376 = vadd.f32 %v1647, %v2375
        %v2377 = vpop.f32.mrb[0].mxu0
        %2378 = vmatprep.mubr.f32.mxu0 0.0
        %2379 = vmatmul.mubr.f32.gmra.mrb[0].mxu0 %v1819
        %v2380 = vpop.f32.mrb[0].mxu0
        %v2381 = vadd.f32 %v1647, %v2380
        %v2382 = vpop.f32.mrb[0].mxu0
        %2383 = vmatprep.mubr.f32.mxu0 0.0
        %2384 = vmatmul.mubr.f32.gmra.mrb[0].mxu0 %v1822
        %v2385 = vpop.f32.mrb[0].mxu0
        %v2386 = vadd.f32 %v1647, %v2385
        %v2387 = vpop.f32.mrb[0].mxu0
        %2388 = vmatprep.mubr.f32.mxu0 0.0
        %2389 = vmatmul.mubr.f32.gmra.mrb[0].mxu0 %v1825
        %v2390 = vpop.f32.mrb[0].mxu0
        %v2391 = vadd.f32 %v1647, %v2390
        %v2392 = vpop.f32.mrb[0].mxu0
        %2393 = vmatprep.mubr.f32.mxu0 0.0
        %2394 = vmatmul.mubr.f32.gmra.mrb[0].mxu0 %v1828
        %v2395 = vpop.f32.mrb[0].mxu0
        %v2396 = vadd.f32 %v1647, %v2395
        %v2397 = vpop.f32.mrb[0].mxu0
        %2398 = vmatprep.mubr.f32.mxu0 0.0
        %2399 = vmatmul.mubr.f32.gmra.mrb[0].mxu0 %v1831
        %v2400 = vpop.f32.mrb[0].mxu0
        %v2401 = vadd.f32 %v1647, %v2400
        %v2402 = vpop.f32.mrb[0].mxu0
        %2403 = vmatprep.mubr.f32.mxu0 0.0
        %2404 = vmatmul.mubr.f32.gmra.mrb[0].mxu0 %v1834
        %v2405 = vpop.f32.mrb[0].mxu0
        %v2406 = vadd.f32 %v1647, %v2405
        %v2407 = vpop.f32.mrb[0].mxu0
        %2408 = vmatprep.mubr.f32.mxu0 0.0
        %2409 = vmatmul.mubr.f32.gmra.mrb[0].mxu0 %v1837
        %v2410 = vpop.f32.mrb[0].mxu0
        %v2411 = vadd.f32 %v1647, %v2410
        %v2412 = vpop.f32.mrb[0].mxu0
        %2413 = vmatprep.mubr.f32.mxu0 0.0
        %2414 = vmatmul.mubr.f32.gmra.mrb[0].mxu0 %v1840
        %v2415 = vpop.f32.mrb[0].mxu0
        %v2416 = vadd.f32 %v1647, %v2415
        %v2417 = vpop.f32.mrb[0].mxu0
        %2418 = vmatprep.mubr.f32.mxu0 0.0
        %2419 = vmatmul.mubr.f32.gmra.mrb[0].mxu0 %v1843
        %v2420 = vpop.f32.mrb[0].mxu0
        %v2421 = vadd.f32 %v1647, %v2420
        %v2422 = vpop.f32.mrb[0].mxu0
        %2423 = vmatprep.mubr.f32.mxu0 0.0
        %2424 = vmatmul.mubr.f32.gmra.mrb[0].mxu0 %v1846
        %v2425 = vpop.f32.mrb[0].mxu0
        %v2426 = vadd.f32 %v1647, %v2425
        %v2427 = vpop.f32.mrb[0].mxu0
        %2428 = vmatprep.mubr.f32.mxu0 0.0
        %2429 = vmatmul.mubr.f32.gmra.mrb[0].mxu0 %v1849
        %v2430 = vpop.f32.mrb[0].mxu0
        %v2431 = vadd.f32 %v1647, %v2430
        %v2432 = vpop.f32.mrb[0].mxu0
        %2433 = vmatprep.mubr.f32.mxu0 0.0
        %2434 = vmatmul.mubr.f32.gmra.mrb[0].mxu0 %v1852
        %v2435 = vpop.f32.mrb[0].mxu0
        %v2436 = vadd.f32 %v1647, %v2435
        %v2437 = vpop.f32.mrb[0].mxu0
        %2438 = vmatprep.mubr.f32.mxu0 0.0
        %2439 = vmatmul.mubr.f32.gmra.mrb[0].mxu0 %v1855
        %v2440 = vpop.f32.mrb[0].mxu0
        %v2441 = vadd.f32 %v1647, %v2440
        %v2442 = vpop.f32.mrb[0].mxu0
        %2443 = vmatprep.mubr.f32.mxu0 0.0
        %2444 = vmatmul.mubr.f32.gmra.mrb[0].mxu0 %v1858
        %v2445 = vpop.f32.mrb[0].mxu0
        %v2446 = vadd.f32 %v1647, %v2445
        %v2447 = vpop.f32.mrb[0].mxu0
        %2448 = vmatprep.mubr.f32.mxu0 0.0
        %2449 = vmatmul.mubr.f32.gmra.mrb[0].mxu0 %v1861
        %v2450 = vpop.f32.mrb[0].mxu0
        %v2451 = vadd.f32 %v1647, %v2450
        %v2452 = vpop.f32.mrb[0].mxu0
        %2453 = vmatprep.mubr.f32.mxu0 0.0
        %2454 = vmatmul.mubr.f32.gmra.mrb[0].mxu0 %v1864
        %v2455 = vpop.f32.mrb[0].mxu0
        %v2456 = vadd.f32 %v1647, %v2455
        %v2457 = vpop.f32.mrb[0].mxu0
        %2458 = vmatprep.mubr.f32.mxu0 0.0
        %2459 = vmatmul.mubr.f32.gmra.mrb[0].mxu0 %v1867
        %v2460 = vpop.f32.mrb[0].mxu0
        %v2461 = vadd.f32 %v1647, %v2460
        %v2462 = vpop.f32.mrb[0].mxu0
        %2463 = vmatprep.mubr.f32.mxu0 0.0
        %2464 = vmatmul.mubr.f32.gmra.mrb[0].mxu0 %v1870
        %v2465 = vpop.f32.mrb[0].mxu0
        %v2466 = vadd.f32 %v1647, %v2465
        %v2467 = vpop.f32.mrb[0].mxu0
        %2468 = vmatprep.mubr.f32.mxu0 0.0
        %2469 = vmatmul.mubr.f32.gmra.mrb[0].mxu0 %v1873
        %v2470 = vpop.f32.mrb[0].mxu0
        %v2471 = vadd.f32 %v1647, %v2470
        %v2472 = vpop.f32.mrb[0].mxu0
        %2473 = vmatprep.mubr.f32.mxu0 0.0
        %2474 = vmatmul.mubr.f32.gmra.mrb[0].mxu0 %v1876
        %v2475 = vpop.f32.mrb[0].mxu0
        %v2476 = vadd.f32 %v1647, %v2475
        %v2477 = vpop.f32.mrb[0].mxu0
        %2478 = vmatprep.mubr.f32.mxu0 0.0
        %2479 = vmatmul.mubr.f32.gmra.mrb[0].mxu0 %v1879
        %v2480 = vpop.f32.mrb[0].mxu0
        %v2481 = vadd.f32 %v1647, %v2480
        %v2482 = vpop.f32.mrb[0].mxu0
        %2483 = vmatprep.mubr.f32.mxu0 0.0
        %2484 = vmatmul.mubr.f32.gmra.mrb[0].mxu0 %v1882
        %v2485 = vpop.f32.mrb[0].mxu0
        %v2486 = vadd.f32 %v1647, %v2485
        %v2487 = vpop.f32.mrb[0].mxu0
        %2488 = vmatprep.mubr.f32.mxu0 0.0
        %2489 = vmatmul.mubr.f32.gmra.mrb[0].mxu0 %v1885
        %v2490 = vpop.f32.mrb[0].mxu0
        %v2491 = vadd.f32 %v1647, %v2490
        %v2492 = vpop.f32.mrb[0].mxu0
        %2493 = vmatprep.mubr.f32.mxu0 0.0
        %2494 = vmatmul.mubr.f32.gmra.mrb[0].mxu0 %v1888
        %v2495 = vpop.f32.mrb[0].mxu0
        %v2496 = vadd.f32 %v1647, %v2495
        %v2497 = vpop.f32.mrb[0].mxu0
        %2498 = vmatprep.mubr.f32.mxu0 0.0
        %2499 = vmatmul.mubr.f32.gmra.mrb[0].mxu0 %v1891
        %v2500 = vpop.f32.mrb[0].mxu0
        %v2501 = vadd.f32 %v1647, %v2500
        %v2502 = vpop.f32.mrb[0].mxu0
        %2503 = vmatprep.mubr.f32.mxu0 0.0
        %2504 = vmatmul.mubr.f32.gmra.mrb[0].mxu0 %v1894
        %v2505 = vpop.f32.mrb[0].mxu0
        %v2506 = vadd.f32 %v1647, %v2505
        %v2507 = vpop.f32.mrb[0].mxu0
        %2508 = vmatprep.mubr.f32.mxu0 0.0
        %2509 = vmatmul.mubr.f32.gmra.mrb[0].mxu0 %v1897
        %v2510 = vpop.f32.mrb[0].mxu0
        %v2511 = vadd.f32 %v1647, %v2510
        %v2512 = vpop.f32.mrb[0].mxu0
        %2513 = vmatprep.mubr.f32.mxu0 0.0
        %2514 = vmatmul.mubr.f32.gmra.mrb[0].mxu0 %v1900
        %v2515 = vpop.f32.mrb[0].mxu0
        %v2516 = vadd.f32 %v1647, %v2515
        %v2517 = vpop.f32.mrb[0].mxu0
        %2518 = vmatprep.mubr.f32.mxu0 0.0
        %2519 = vmatmul.mubr.f32.gmra.mrb[0].mxu0 %v1903
        %v2520 = vpop.f32.mrb[0].mxu0
        %v2521 = vadd.f32 %v1647, %v2520
        %v2522 = vpop.f32.mrb[0].mxu0
        %2523 = vmatprep.mubr.f32.mxu0 0.0
        %2524 = vmatmul.mubr.f32.gmra.mrb[0].mxu0 %v1906
        %v2525 = vpop.f32.mrb[0].mxu0
        %v2526 = vadd.f32 %v1647, %v2525
        %v2527 = vpop.f32.mrb[0].mxu0
        %2528 = vmatprep.mubr.f32.mxu0 0.0
        %2529 = vmatmul.mubr.f32.gmra.mrb[0].mxu0 %v1909
        %v2530 = vpop.f32.mrb[0].mxu0
        %v2531 = vadd.f32 %v1647, %v2530
        %v2532 = vpop.f32.mrb[0].mxu0
        %2533 = vmatprep.mubr.f32.mxu0 0.0
        %2534 = vmatmul.mubr.f32.gmra.mrb[0].mxu0 %v1912
        %v2535 = vpop.f32.mrb[0].mxu0
        %v2536 = vadd.f32 %v1647, %v2535
        %v2537 = vpop.f32.mrb[0].mxu0
        %2538 = vmatprep.mubr.f32.mxu0 0.0
        %2539 = vmatmul.mubr.f32.gmra.mrb[0].mxu0 %v1915
        %v2540 = vpop.f32.mrb[0].mxu0
        %v2541 = vadd.f32 %v1647, %v2540
        %v2542 = vpop.f32.mrb[0].mxu0
        %2543 = vmatprep.mubr.f32.mxu0 0.0
        %2544 = vmatmul.mubr.f32.gmra.mrb[0].mxu0 %v1918
        %v2545 = vpop.f32.mrb[0].mxu0
        %v2546 = vadd.f32 %v1647, %v2545
        %v2547 = vpop.f32.mrb[0].mxu0
        %2548 = vmatprep.mubr.f32.mxu0 0.0
        %2549 = vmatmul.mubr.f32.gmra.mrb[0].mxu0 %v1921
        %v2550 = vpop.f32.mrb[0].mxu0
        %v2551 = vadd.f32 %v1647, %v2550
        %v2552 = vpop.f32.mrb[0].mxu0
        %2553 = vmatprep.mubr.f32.mxu0 0.0
        %2554 = vmatmul.mubr.f32.gmra.mrb[0].mxu0 %v1924
        %v2555 = vpop.f32.mrb[0].mxu0
        %v2556 = vadd.f32 %v1647, %v2555
        %v2557 = vpop.f32.mrb[0].mxu0
        %2558 = vmatprep.mubr.f32.mxu0 0.0
        %2559 = vmatmul.mubr.f32.gmra.mrb[0].mxu0 %v1927
        %v2560 = vpop.f32.mrb[0].mxu0
        %v2561 = vadd.f32 %v1647, %v2560
        %v2562 = vpop.f32.mrb[0].mxu0
        %2563 = vmatprep.mubr.f32.mxu0 0.0
        %2564 = vmatmul.mubr.f32.gmra.mrb[0].mxu0 %v1930
        %v2565 = vpop.f32.mrb[0].mxu0
        %v2566 = vadd.f32 %v1647, %v2565
        %v2567 = vpop.f32.mrb[0].mxu0
        %2568 = vmatprep.mubr.f32.mxu0 0.0
        %2569 = vmatmul.mubr.f32.gmra.mrb[0].mxu0 %v1933
        %v2570 = vpop.f32.mrb[0].mxu0
        %v2571 = vadd.f32 %v1647, %v2570
        %v2572 = vpop.f32.mrb[0].mxu0
        %2573 = vmatprep.mubr.f32.mxu0 0.0
        %2574 = vmatmul.mubr.f32.gmra.mrb[0].mxu0 %v1936
        %v2575 = vpop.f32.mrb[0].mxu0
        %v2576 = vadd.f32 %v1647, %v2575
        %v2577 = vpop.f32.mrb[0].mxu0
        %2578 = vmatprep.mubr.f32.mxu0 0.0
        %2579 = vmatmul.mubr.f32.gmra.mrb[0].mxu0 %v1939
        %v2580 = vpop.f32.mrb[0].mxu0
        %v2581 = vadd.f32 %v1647, %v2580
        %v2582 = vpop.f32.mrb[0].mxu0
        %2583 = vmatprep.mubr.f32.mxu0 0.0
        %2584 = vmatmul.mubr.f32.gmra.mrb[0].mxu0 %v1942
        %v2585 = vpop.f32.mrb[0].mxu0
        %v2586 = vadd.f32 %v1647, %v2585
        %v2587 = vpop.f32.mrb[0].mxu0
        %2588 = vmatprep.mubr.f32.mxu0 0.0
        %2589 = vmatmul.mubr.f32.gmra.mrb[0].mxu0 %v1945
        %v2590 = vpop.f32.mrb[0].mxu0
        %v2591 = vadd.f32 %v1647, %v2590
        %v2592 = vpop.f32.mrb[0].mxu0
        %2593 = vmatprep.mubr.f32.mxu0 0.0
        %2594 = vmatmul.mubr.f32.gmra.mrb[0].mxu0 %v1948
        %v2595 = vpop.f32.mrb[0].mxu0
        %v2596 = vadd.f32 %v1647, %v2595
        %v2597 = vpop.f32.mrb[0].mxu0
        %2598 = vmatprep.mubr.f32.mxu0 0.0
        %2599 = vmatmul.mubr.f32.gmra.mrb[0].mxu0 %v1951
        %v2600 = vpop.f32.mrb[0].mxu0
        %v2601 = vadd.f32 %v1647, %v2600
        %v2602 = vpop.f32.mrb[0].mxu0
        %2603 = vmatprep.mubr.f32.mxu0 0.0
        %2604 = vmatmul.mubr.f32.gmra.mrb[0].mxu0 %v1954
        %v2605 = vpop.f32.mrb[0].mxu0
        %v2606 = vadd.f32 %v1647, %v2605
        %v2607 = vpop.f32.mrb[0].mxu0
        %2608 = vmatprep.mubr.f32.mxu0 0.0
        %2609 = vmatmul.mubr.f32.gmra.mrb[0].mxu0 %v1957
        %v2610 = vpop.f32.mrb[0].mxu0
        %v2611 = vadd.f32 %v1647, %v2610
        %v2612 = vpop.f32.mrb[0].mxu0
        %2613 = vmatprep.mubr.f32.mxu0 0.0
        %2614 = vmatmul.mubr.f32.gmra.mrb[0].mxu0 %v1960
        %v2615 = vpop.f32.mrb[0].mxu0
        %v2616 = vadd.f32 %v1647, %v2615
        %v2617 = vpop.f32.mrb[0].mxu0
        %2618 = vmatprep.mubr.f32.mxu0 0.0
        %2619 = vmatmul.mubr.f32.gmra.mrb[0].mxu0 %v1963
        %v2620 = vpop.f32.mrb[0].mxu0
        %v2621 = vadd.f32 %v1647, %v2620
        %v2622 = vpop.f32.mrb[0].mxu0
        %2623 = vmatprep.mubr.f32.mxu0 0.0
        %2624 = vmatmul.mubr.f32.gmra.mrb[0].mxu0 %v1966
        %v2625 = vpop.f32.mrb[0].mxu0
        %v2626 = vadd.f32 %v1647, %v2625
        %v2627 = vpop.f32.mrb[0].mxu0
        %2628 = vmatprep.mubr.f32.mxu0 0.0
        %2629 = vmatmul.mubr.f32.gmra.mrb[0].mxu0 %v1969
        %v2630 = vpop.f32.mrb[0].mxu0
        %v2631 = vadd.f32 %v1647, %v2630
        %v2632 = vpop.f32.mrb[0].mxu0
        %2633 = vmatprep.mubr.f32.mxu0 0.0
        %2634 = vmatmul.mubr.f32.gmra.mrb[0].mxu0 %v1972
        %v2635 = vpop.f32.mrb[0].mxu0
        %v2636 = vadd.f32 %v1647, %v2635
        %v2637 = vpop.f32.mrb[0].mxu0
        %2638 = vmatprep.mubr.f32.mxu0 0.0
        %2639 = vmatmul.mubr.f32.gmra.mrb[0].mxu0 %v1975
        %v2640 = vpop.f32.mrb[0].mxu0
        %v2641 = vadd.f32 %v1647, %v2640
        %v2642 = vpop.f32.mrb[0].mxu0
        %2643 = vmatprep.mubr.f32.mxu0 0.0
        %2644 = vmatmul.mubr.f32.gmra.mrb[0].mxu0 %v1978
        %v2645 = vpop.f32.mrb[0].mxu0
        %v2646 = vadd.f32 %v1647, %v2645
        %v2647 = vpop.f32.mrb[0].mxu0
        %2648 = vmatprep.mubr.f32.mxu0 0.0
        %2649 = vmatmul.mubr.f32.gmra.mrb[0].mxu0 %v1981
        %v2650 = vpop.f32.mrb[0].mxu0
        %v2651 = vadd.f32 %v1647, %v2650
        %v2652 = vpop.f32.mrb[0].mxu0
        %2653 = vmatprep.mubr.f32.mxu0 0.0
        %2654 = vmatmul.mubr.f32.gmra.mrb[0].mxu0 %v1984
        %v2655 = vpop.f32.mrb[0].mxu0
        %v2656 = vadd.f32 %v1647, %v2655
        %v2657 = vpop.f32.mrb[0].mxu0
        %2658 = vmatprep.mubr.f32.mxu0 0.0
        %2659 = vmatmul.mubr.f32.gmra.mrb[0].mxu0 %v1987
        %v2660 = vpop.f32.mrb[0].mxu0
        %v2661 = vadd.f32 %v1647, %v2660
        %v2662 = vpop.f32.mrb[0].mxu0
        %2663 = vmatprep.mubr.f32.mxu0 0.0
        %2664 = vmatmul.mubr.f32.gmra.mrb[0].mxu0 %v1990
        %v2665 = vpop.f32.mrb[0].mxu0
        %v2666 = vadd.f32 %v1647, %v2665
        %v2667 = vpop.f32.mrb[0].mxu0
        %2668 = vmatprep.mubr.f32.mxu0 0.0
        %2669 = vmatmul.mubr.f32.gmra.mrb[0].mxu0 %v1993
        %v2670 = vpop.f32.mrb[0].mxu0
        %v2671 = vadd.f32 %v1647, %v2670
        %v2672 = vpop.f32.mrb[0].mxu0
        %2673 = vmatprep.mubr.f32.mxu0 0.0
        %2674 = vmatmul.mubr.f32.gmra.mrb[0].mxu0 %v1996
        %v2675 = vpop.f32.mrb[0].mxu0
        %v2676 = vadd.f32 %v1647, %v2675
        %v2677 = vpop.f32.mrb[0].mxu0
        %2678 = vmatprep.mubr.f32.mxu0 0.0
        %2679 = vmatmul.mubr.f32.gmra.mrb[0].mxu0 %v1999
        %v2680 = vpop.f32.mrb[0].mxu0
        %v2681 = vadd.f32 %v1647, %v2680
        %v2682 = vpop.f32.mrb[0].mxu0
        %2683 = vmatprep.mubr.f32.mxu0 0.0
        %2684 = vmatmul.mubr.f32.gmra.mrb[0].mxu0 %v2002
        %v2685 = vpop.f32.mrb[0].mxu0
        %v2686 = vadd.f32 %v1647, %v2685
        %v2687 = vpop.f32.mrb[0].mxu0
        %2688 = vmatprep.mubr.f32.mxu0 0.0
        %2689 = vmatmul.mubr.f32.gmra.mrb[0].mxu0 %v2005
        %v2690 = vpop.f32.mrb[0].mxu0
        %v2691 = vadd.f32 %v1647, %v2690
        %v2692 = vpop.f32.mrb[0].mxu0
        %2693 = vmatprep.mubr.f32.mxu0 0.0
        %2694 = vmatmul.mubr.f32.gmra.mrb[0].mxu0 %v2008
        %v2695 = vpop.f32.mrb[0].mxu0
        %v2696 = vadd.f32 %v1647, %v2695
        %v2697 = vpop.f32.mrb[0].mxu0
        %2698 = vmatprep.mubr.f32.mxu0 0.0
        %2699 = vmatmul.mubr.f32.gmra.mrb[0].mxu0 %v2011
        %v2700 = vpop.f32.mrb[0].mxu0
        %v2701 = vadd.f32 %v1647, %v2700
        %v2702 = vpop.f32.mrb[0].mxu0
        %2703 = vmatprep.mubr.f32.mxu0 0.0
        %2704 = vmatmul.mubr.f32.gmra.mrb[0].mxu0 %v2014
        %v2705 = vpop.f32.mrb[0].mxu0
        %v2706 = vadd.f32 %v1647, %v2705
        %v2707 = vpop.f32.mrb[0].mxu0
        %2708 = vmatprep.mubr.f32.mxu0 0.0
        %2709 = vmatmul.mubr.f32.gmra.mrb[0].mxu0 %v2017
        %v2710 = vpop.f32.mrb[0].mxu0
        %v2711 = vadd.f32 %v1647, %v2710
        %v2712 = vpop.f32.mrb[0].mxu0
        %2713 = vmatprep.mubr.f32.mxu0 0.0
        %2714 = vmatmul.mubr.f32.gmra.mrb[0].mxu0 %v2020
        %v2715 = vpop.f32.mrb[0].mxu0
        %v2716 = vadd.f32 %v1647, %v2715
        %v2717 = vpop.f32.mrb[0].mxu0
        %2718 = vmatprep.mubr.f32.mxu0 0.0
        %2719 = vmatmul.mubr.f32.gmra.mrb[0].mxu0 %v2023
        %v2720 = vpop.f32.mrb[0].mxu0
        %v2721 = vadd.f32 %v1647, %v2720
        %v2722 = vpop.f32.mrb[0].mxu0
        %2723 = vmatprep.mubr.f32.mxu0 0.0
        %2724 = vmatmul.mubr.f32.gmra.mrb[0].mxu0 %v2026
        %v2725 = vpop.f32.mrb[0].mxu0
        %v2726 = vadd.f32 %v1647, %v2725
        %v2727 = vpop.f32.mrb[0].mxu0
        %2728 = vmatprep.mubr.f32.mxu0 0.0
        %2729 = vmatmul.mubr.f32.gmra.mrb[0].mxu0 %v2029
        %v2730 = vpop.f32.mrb[0].mxu0
        %v2731 = vadd.f32 %v1647, %v2730
        %v2732 = vpop.f32.mrb[0].mxu0
        %2733 = vmatprep.mubr.f32.mxu0 0.0
        %2734 = vmatmul.mubr.f32.gmra.mrb[0].mxu0 %v2032
        %v2735 = vpop.f32.mrb[0].mxu0
        %v2736 = vadd.f32 %v1647, %v2735
        %v2737 = vpop.f32.mrb[0].mxu0
        %2738 = vdwg.mxu0
        %v2739 = vmax.f32 %v2101, 0.0
        %v2740 = vmax.f32 %v2106, 0.0
        %v2741 = vmax.f32 %v2111, 0.0
        %v2742 = vmax.f32 %v2116, 0.0
        %v2743 = vmax.f32 %v2121, 0.0
        %v2744 = vmax.f32 %v2126, 0.0
        %v2745 = vmax.f32 %v2131, 0.0
        %v2746 = vmax.f32 %v2136, 0.0
        %v2747 = vmax.f32 %v2141, 0.0
        %v2748 = vmax.f32 %v2146, 0.0
        %v2749 = vmax.f32 %v2151, 0.0
        %v2750 = vmax.f32 %v2156, 0.0
        %v2751 = vmax.f32 %v2161, 0.0
        %v2752 = vmax.f32 %v2166, 0.0
        %v2753 = vmax.f32 %v2171, 0.0
        %v2754 = vmax.f32 %v2176, 0.0
        %v2755 = vmax.f32 %v2181, 0.0
        %v2756 = vmax.f32 %v2186, 0.0
        %v2757 = vmax.f32 %v2191, 0.0
        %v2758 = vmax.f32 %v2196, 0.0
        %v2759 = vmax.f32 %v2201, 0.0
        %v2760 = vmax.f32 %v2206, 0.0
        %v2761 = vmax.f32 %v2211, 0.0
        %v2762 = vmax.f32 %v2216, 0.0
        %v2763 = vmax.f32 %v2221, 0.0
        %v2764 = vmax.f32 %v2226, 0.0
        %v2765 = vmax.f32 %v2231, 0.0
        %v2766 = vmax.f32 %v2236, 0.0
        %v2767 = vmax.f32 %v2241, 0.0
        %v2768 = vmax.f32 %v2246, 0.0
        %v2769 = vmax.f32 %v2251, 0.0
        %v2770 = vmax.f32 %v2256, 0.0
        %v2771 = vmax.f32 %v2261, 0.0
        %v2772 = vmax.f32 %v2266, 0.0
        %v2773 = vmax.f32 %v2271, 0.0
        %v2774 = vmax.f32 %v2276, 0.0
        %v2775 = vmax.f32 %v2281, 0.0
        %v2776 = vmax.f32 %v2286, 0.0
        %v2777 = vmax.f32 %v2291, 0.0
        %v2778 = vmax.f32 %v2296, 0.0
        %v2779 = vmax.f32 %v2301, 0.0
        %v2780 = vmax.f32 %v2306, 0.0
        %v2781 = vmax.f32 %v2311, 0.0
        %v2782 = vmax.f32 %v2316, 0.0
        %v2783 = vmax.f32 %v2321, 0.0
        %v2784 = vmax.f32 %v2326, 0.0
        %v2785 = vmax.f32 %v2331, 0.0
        %v2786 = vmax.f32 %v2336, 0.0
        %v2787 = vmax.f32 %v2341, 0.0
        %v2788 = vmax.f32 %v2346, 0.0
        %v2789 = vmax.f32 %v2351, 0.0
        %v2790 = vmax.f32 %v2356, 0.0
        %v2791 = vmax.f32 %v2361, 0.0
        %v2792 = vmax.f32 %v2366, 0.0
        %v2793 = vmax.f32 %v2371, 0.0
        %v2794 = vmax.f32 %v2376, 0.0
        %v2795 = vmax.f32 %v2381, 0.0
        %v2796 = vmax.f32 %v2386, 0.0
        %v2797 = vmax.f32 %v2391, 0.0
        %v2798 = vmax.f32 %v2396, 0.0
        %v2799 = vmax.f32 %v2401, 0.0
        %v2800 = vmax.f32 %v2406, 0.0
        %v2801 = vmax.f32 %v2411, 0.0
        %v2802 = vmax.f32 %v2416, 0.0
        %v2803 = vmax.f32 %v2421, 0.0
        %v2804 = vmax.f32 %v2426, 0.0
        %v2805 = vmax.f32 %v2431, 0.0
        %v2806 = vmax.f32 %v2436, 0.0
        %v2807 = vmax.f32 %v2441, 0.0
        %v2808 = vmax.f32 %v2446, 0.0
        %v2809 = vmax.f32 %v2451, 0.0
        %v2810 = vmax.f32 %v2456, 0.0
        %v2811 = vmax.f32 %v2461, 0.0
        %v2812 = vmax.f32 %v2466, 0.0
        %v2813 = vmax.f32 %v2471, 0.0
        %v2814 = vmax.f32 %v2476, 0.0
        %v2815 = vmax.f32 %v2481, 0.0
        %v2816 = vmax.f32 %v2486, 0.0
        %v2817 = vmax.f32 %v2491, 0.0
        %v2818 = vmax.f32 %v2496, 0.0
        %v2819 = vmax.f32 %v2501, 0.0
        %v2820 = vmax.f32 %v2506, 0.0
        %v2821 = vmax.f32 %v2511, 0.0
        %v2822 = vmax.f32 %v2516, 0.0
        %v2823 = vmax.f32 %v2521, 0.0
        %v2824 = vmax.f32 %v2526, 0.0
        %v2825 = vmax.f32 %v2531, 0.0
        %v2826 = vmax.f32 %v2536, 0.0
        %v2827 = vmax.f32 %v2541, 0.0
        %v2828 = vmax.f32 %v2546, 0.0
        %v2829 = vmax.f32 %v2551, 0.0
        %v2830 = vmax.f32 %v2556, 0.0
        %v2831 = vmax.f32 %v2561, 0.0
        %v2832 = vmax.f32 %v2566, 0.0
        %v2833 = vmax.f32 %v2571, 0.0
        %v2834 = vmax.f32 %v2576, 0.0
        %v2835 = vmax.f32 %v2581, 0.0
        %v2836 = vmax.f32 %v2586, 0.0
        %v2837 = vmax.f32 %v2591, 0.0
        %v2838 = vmax.f32 %v2596, 0.0
        %v2839 = vmax.f32 %v2601, 0.0
        %v2840 = vmax.f32 %v2606, 0.0
        %v2841 = vmax.f32 %v2611, 0.0
        %v2842 = vmax.f32 %v2616, 0.0
        %v2843 = vmax.f32 %v2621, 0.0
        %v2844 = vmax.f32 %v2626, 0.0
        %v2845 = vmax.f32 %v2631, 0.0
        %v2846 = vmax.f32 %v2636, 0.0
        %v2847 = vmax.f32 %v2641, 0.0
        %v2848 = vmax.f32 %v2646, 0.0
        %v2849 = vmax.f32 %v2651, 0.0
        %v2850 = vmax.f32 %v2656, 0.0
        %v2851 = vmax.f32 %v2661, 0.0
        %v2852 = vmax.f32 %v2666, 0.0
        %v2853 = vmax.f32 %v2671, 0.0
        %v2854 = vmax.f32 %v2676, 0.0
        %v2855 = vmax.f32 %v2681, 0.0
        %v2856 = vmax.f32 %v2686, 0.0
        %v2857 = vmax.f32 %v2691, 0.0
        %v2858 = vmax.f32 %v2696, 0.0
        %v2859 = vmax.f32 %v2701, 0.0
        %v2860 = vmax.f32 %v2706, 0.0
        %v2861 = vmax.f32 %v2711, 0.0
        %v2862 = vmax.f32 %v2716, 0.0
        %v2863 = vmax.f32 %v2721, 0.0
        %v2864 = vmax.f32 %v2726, 0.0
        %v2865 = vmax.f32 %v2731, 0.0
        %v2866 = vmax.f32 %v2736, 0.0
        %v2867 = vld [vmem:[%s5] sm:$0xff]
        %v2868 = vld [vmem:[%s5 + $0x8] sm:$0xff]
        %v2869 = vld [vmem:[%s5 + $0x10] sm:$0xff]
        %v2870 = vld [vmem:[%s5 + $0x18] sm:$0xff]
        %v2871 = vld [vmem:[%s5 + $0x20] sm:$0xff]
        %v2872 = vld [vmem:[%s5 + $0x28] sm:$0xff]
        %v2873 = vld [vmem:[%s5 + $0x30] sm:$0xff]
        %v2874 = vld [vmem:[%s5 + $0x38] sm:$0xff]
        %v2875 = vld [vmem:[%s5 + $0x40] sm:$0xff]
        %v2876 = vld [vmem:[%s5 + $0x48] sm:$0xff]
        %v2877 = vld [vmem:[%s5 + $0x50] sm:$0xff]
        %v2878 = vld [vmem:[%s5 + $0x58] sm:$0xff]
        %v2879 = vld [vmem:[%s5 + $0x60] sm:$0xff]
        %v2880 = vld [vmem:[%s5 + $0x68] sm:$0xff]
        %v2881 = vld [vmem:[%s5 + $0x70] sm:$0xff]
        %v2882 = vld [vmem:[%s5 + $0x78] sm:$0xff]
        %v2883 = vld [vmem:[%s5 + $0x80] sm:$0xff]
        %v2884 = vld [vmem:[%s5 + $0x88] sm:$0xff]
        %v2885 = vld [vmem:[%s5 + $0x90] sm:$0xff]
        %v2886 = vld [vmem:[%s5 + $0x98] sm:$0xff]
        %v2887 = vld [vmem:[%s5 + $0xa0] sm:$0xff]
        %v2888 = vld [vmem:[%s5 + $0xa8] sm:$0xff]
        %v2889 = vld [vmem:[%s5 + $0xb0] sm:$0xff]
        %v2890 = vld [vmem:[%s5 + $0xb8] sm:$0xff]
        %v2891 = vld [vmem:[%s5 + $0xc0] sm:$0xff]
        %v2892 = vld [vmem:[%s5 + $0xc8] sm:$0xff]
        %v2893 = vld [vmem:[%s5 + $0xd0] sm:$0xff]
        %v2894 = vld [vmem:[%s5 + $0xd8] sm:$0xff]
        %v2895 = vld [vmem:[%s5 + $0xe0] sm:$0xff]
        %v2896 = vld [vmem:[%s5 + $0xe8] sm:$0xff]
        %v2897 = vld [vmem:[%s5 + $0xf0] sm:$0xff]
        %v2898 = vld [vmem:[%s5 + $0xf8] sm:$0xff]
        %v2899 = vld [vmem:[%s5 + $0x100] sm:$0xff]
        %v2900 = vld [vmem:[%s5 + $0x108] sm:$0xff]
        %v2901 = vld [vmem:[%s5 + $0x110] sm:$0xff]
        %v2902 = vld [vmem:[%s5 + $0x118] sm:$0xff]
        %v2903 = vld [vmem:[%s5 + $0x120] sm:$0xff]
        %v2904 = vld [vmem:[%s5 + $0x128] sm:$0xff]
        %v2905 = vld [vmem:[%s5 + $0x130] sm:$0xff]
        %v2906 = vld [vmem:[%s5 + $0x138] sm:$0xff]
        %v2907 = vld [vmem:[%s5 + $0x140] sm:$0xff]
        %v2908 = vld [vmem:[%s5 + $0x148] sm:$0xff]
        %v2909 = vld [vmem:[%s5 + $0x150] sm:$0xff]
        %v2910 = vld [vmem:[%s5 + $0x158] sm:$0xff]
        %v2911 = vld [vmem:[%s5 + $0x160] sm:$0xff]
        %v2912 = vld [vmem:[%s5 + $0x168] sm:$0xff]
        %v2913 = vld [vmem:[%s5 + $0x170] sm:$0xff]
        %v2914 = vld [vmem:[%s5 + $0x178] sm:$0xff]
        %v2915 = vld [vmem:[%s5 + $0x180] sm:$0xff]
        %v2916 = vld [vmem:[%s5 + $0x188] sm:$0xff]
        %v2917 = vld [vmem:[%s5 + $0x190] sm:$0xff]
        %v2918 = vld [vmem:[%s5 + $0x198] sm:$0xff]
        %v2919 = vld [vmem:[%s5 + $0x1a0] sm:$0xff]
        %v2920 = vld [vmem:[%s5 + $0x1a8] sm:$0xff]
        %v2921 = vld [vmem:[%s5 + $0x1b0] sm:$0xff]
        %v2922 = vld [vmem:[%s5 + $0x1b8] sm:$0xff]
        %v2923 = vld [vmem:[%s5 + $0x1c0] sm:$0xff]
        %v2924 = vld [vmem:[%s5 + $0x1c8] sm:$0xff]
        %v2925 = vld [vmem:[%s5 + $0x1d0] sm:$0xff]
        %v2926 = vld [vmem:[%s5 + $0x1d8] sm:$0xff]
        %v2927 = vld [vmem:[%s5 + $0x1e0] sm:$0xff]
        %v2928 = vld [vmem:[%s5 + $0x1e8] sm:$0xff]
        %v2929 = vld [vmem:[%s5 + $0x1f0] sm:$0xff]
        %v2930 = vld [vmem:[%s5 + $0x1f8] sm:$0xff]
        %2931 = vmatprep.subr.mxu0 %v2868
        %2932 = vmatpush1.msra.mxu0 %v2867
        %2933 = vmatprep.subr.mxu0 %v2872
        %2934 = vmatpush1.msra.mxu0 %v2871
        %2935 = vmatprep.subr.mxu0 %v2876
        %2936 = vmatpush1.msra.mxu0 %v2875
        %2937 = vmatprep.subr.mxu0 %v2880
        %2938 = vmatpush1.msra.mxu0 %v2879
        %2939 = vmatprep.subr.mxu0 %v2884
        %2940 = vmatpush1.msra.mxu0 %v2883
        %2941 = vmatprep.subr.mxu0 %v2888
        %2942 = vmatpush1.msra.mxu0 %v2887
        %2943 = vmatprep.subr.mxu0 %v2892
        %2944 = vmatpush1.msra.mxu0 %v2891
        %2945 = vmatprep.subr.mxu0 %v2896
        %2946 = vmatpush1.msra.mxu0 %v2895
        %2947 = vmatprep.subr.mxu0 %v2900
        %2948 = vmatpush1.msra.mxu0 %v2899
        %2949 = vmatprep.subr.mxu0 %v2904
        %2950 = vmatpush1.msra.mxu0 %v2903
        %2951 = vmatprep.subr.mxu0 %v2908
        %2952 = vmatpush1.msra.mxu0 %v2907
        %2953 = vmatprep.subr.mxu0 %v2912
        %2954 = vmatpush1.msra.mxu0 %v2911
        %2955 = vmatprep.subr.mxu0 %v2916
        %2956 = vmatpush1.msra.mxu0 %v2915
        %2957 = vmatprep.subr.mxu0 %v2920
        %2958 = vmatpush1.msra.mxu0 %v2919
        %2959 = vmatprep.subr.mxu0 %v2924
        %2960 = vmatpush1.msra.mxu0 %v2923
        %2961 = vmatprep.subr.mxu0 %v2928
        %2962 = vmatpush1.msra.mxu0 %v2927
        %2963 = vmatprep.subr.mxu0 0.0
        %2964 = vmatpush1.msra.mxu0 0.0
        %2965 = vmatprep.subr.mxu0 0.0
        %2966 = vmatpush1.msra.mxu0 0.0
        %2967 = vmatprep.subr.mxu0 0.0
        %2968 = vmatpush1.msra.mxu0 0.0
        %2969 = vmatprep.subr.mxu0 0.0
        %2970 = vmatpush1.msra.mxu0 0.0
        %2971 = vmatprep.subr.mxu0 0.0
        %2972 = vmatpush1.msra.mxu0 0.0
        %2973 = vmatprep.subr.mxu0 0.0
        %2974 = vmatpush1.msra.mxu0 0.0
        %2975 = vmatprep.subr.mxu0 0.0
        %2976 = vmatpush1.msra.mxu0 0.0
        %2977 = vmatprep.subr.mxu0 0.0
        %2978 = vmatpush1.msra.mxu0 0.0
        %2979 = vmatprep.subr.mxu0 0.0
        %2980 = vmatpush1.msra.mxu0 0.0
        %2981 = vmatprep.subr.mxu0 0.0
        %2982 = vmatpush1.msra.mxu0 0.0
        %2983 = vmatprep.subr.mxu0 0.0
        %2984 = vmatpush1.msra.mxu0 0.0
        %2985 = vmatprep.subr.mxu0 0.0
        %2986 = vmatpush1.msra.mxu0 0.0
        %2987 = vmatprep.subr.mxu0 0.0
        %2988 = vmatpush1.msra.mxu0 0.0
        %2989 = vmatprep.subr.mxu0 0.0
        %2990 = vmatpush1.msra.mxu0 0.0
        %2991 = vmatprep.subr.mxu0 0.0
        %2992 = vmatpush1.msra.mxu0 0.0
        %2993 = vmatprep.subr.mxu0 0.0
        %2994 = vmatpush1.msra.mxu0 0.0
        %2995 = vmatprep.mubr.f32.mxu0 0.0
        %2996 = vmatmul.mubr.f32.gmra.mrb[0].mxu0 %v2739
        %v2997 = vpop.f32.mrb[0].mxu0
        %v2998 = vadd.f32 0.0, %v2997
        %v2999 = vpop.f32.mrb[0].mxu0
        %v3000 = vadd.f32 0.0, %v2999
        %3001 = vmatprep.mubr.f32.mxu0 0.0
        %3002 = vmatmul.mubr.f32.gmra.mrb[0].mxu0 %v2740
        %v3003 = vpop.f32.mrb[0].mxu0
        %v3004 = vadd.f32 0.0, %v3003
        %v3005 = vpop.f32.mrb[0].mxu0
        %v3006 = vadd.f32 0.0, %v3005
        %3007 = vmatprep.mubr.f32.mxu0 0.0
        %3008 = vmatmul.mubr.f32.gmra.mrb[0].mxu0 %v2741
        %v3009 = vpop.f32.mrb[0].mxu0
        %v3010 = vadd.f32 0.0, %v3009
        %v3011 = vpop.f32.mrb[0].mxu0
        %v3012 = vadd.f32 0.0, %v3011
        %3013 = vmatprep.mubr.f32.mxu0 0.0
        %3014 = vmatmul.mubr.f32.gmra.mrb[0].mxu0 %v2742
        %v3015 = vpop.f32.mrb[0].mxu0
        %v3016 = vadd.f32 0.0, %v3015
        %v3017 = vpop.f32.mrb[0].mxu0
        %v3018 = vadd.f32 0.0, %v3017
        %3019 = vmatprep.mubr.f32.mxu0 0.0
        %3020 = vmatmul.mubr.f32.gmra.mrb[0].mxu0 %v2743
        %v3021 = vpop.f32.mrb[0].mxu0
        %v3022 = vadd.f32 0.0, %v3021
        %v3023 = vpop.f32.mrb[0].mxu0
        %v3024 = vadd.f32 0.0, %v3023
        %3025 = vmatprep.mubr.f32.mxu0 0.0
        %3026 = vmatmul.mubr.f32.gmra.mrb[0].mxu0 %v2744
        %v3027 = vpop.f32.mrb[0].mxu0
        %v3028 = vadd.f32 0.0, %v3027
        %v3029 = vpop.f32.mrb[0].mxu0
        %v3030 = vadd.f32 0.0, %v3029
        %3031 = vmatprep.mubr.f32.mxu0 0.0
        %3032 = vmatmul.mubr.f32.gmra.mrb[0].mxu0 %v2745
        %v3033 = vpop.f32.mrb[0].mxu0
        %v3034 = vadd.f32 0.0, %v3033
        %v3035 = vpop.f32.mrb[0].mxu0
        %v3036 = vadd.f32 0.0, %v3035
        %3037 = vmatprep.mubr.f32.mxu0 0.0
        %3038 = vmatmul.mubr.f32.gmra.mrb[0].mxu0 %v2746
        %v3039 = vpop.f32.mrb[0].mxu0
        %v3040 = vadd.f32 0.0, %v3039
        %v3041 = vpop.f32.mrb[0].mxu0
        %v3042 = vadd.f32 0.0, %v3041
        %3043 = vmatprep.mubr.f32.mxu0 0.0
        %3044 = vmatmul.mubr.f32.gmra.mrb[0].mxu0 %v2747
        %v3045 = vpop.f32.mrb[0].mxu0
        %v3046 = vadd.f32 0.0, %v3045
        %v3047 = vpop.f32.mrb[0].mxu0
        %v3048 = vadd.f32 0.0, %v3047
        %3049 = vmatprep.mubr.f32.mxu0 0.0
        %3050 = vmatmul.mubr.f32.gmra.mrb[0].mxu0 %v2748
        %v3051 = vpop.f32.mrb[0].mxu0
        %v3052 = vadd.f32 0.0, %v3051
        %v3053 = vpop.f32.mrb[0].mxu0
        %v3054 = vadd.f32 0.0, %v3053
        %3055 = vmatprep.mubr.f32.mxu0 0.0
        %3056 = vmatmul.mubr.f32.gmra.mrb[0].mxu0 %v2749
        %v3057 = vpop.f32.mrb[0].mxu0
        %v3058 = vadd.f32 0.0, %v3057
        %v3059 = vpop.f32.mrb[0].mxu0
        %v3060 = vadd.f32 0.0, %v3059
        %3061 = vmatprep.mubr.f32.mxu0 0.0
        %3062 = vmatmul.mubr.f32.gmra.mrb[0].mxu0 %v2750
        %v3063 = vpop.f32.mrb[0].mxu0
        %v3064 = vadd.f32 0.0, %v3063
        %v3065 = vpop.f32.mrb[0].mxu0
        %v3066 = vadd.f32 0.0, %v3065
        %3067 = vmatprep.mubr.f32.mxu0 0.0
        %3068 = vmatmul.mubr.f32.gmra.mrb[0].mxu0 %v2751
        %v3069 = vpop.f32.mrb[0].mxu0
        %v3070 = vadd.f32 0.0, %v3069
        %v3071 = vpop.f32.mrb[0].mxu0
        %v3072 = vadd.f32 0.0, %v3071
        %3073 = vmatprep.mubr.f32.mxu0 0.0
        %3074 = vmatmul.mubr.f32.gmra.mrb[0].mxu0 %v2752
        %v3075 = vpop.f32.mrb[0].mxu0
        %v3076 = vadd.f32 0.0, %v3075
        %v3077 = vpop.f32.mrb[0].mxu0
        %v3078 = vadd.f32 0.0, %v3077
        %3079 = vmatprep.mubr.f32.mxu0 0.0
        %3080 = vmatmul.mubr.f32.gmra.mrb[0].mxu0 %v2753
        %v3081 = vpop.f32.mrb[0].mxu0
        %v3082 = vadd.f32 0.0, %v3081
        %v3083 = vpop.f32.mrb[0].mxu0
        %v3084 = vadd.f32 0.0, %v3083
        %3085 = vmatprep.mubr.f32.mxu0 0.0
        %3086 = vmatmul.mubr.f32.gmra.mrb[0].mxu0 %v2754
        %v3087 = vpop.f32.mrb[0].mxu0
        %v3088 = vadd.f32 0.0, %v3087
        %v3089 = vpop.f32.mrb[0].mxu0
        %v3090 = vadd.f32 0.0, %v3089
        %3091 = vmatprep.mubr.f32.mxu0 0.0
        %3092 = vmatmul.mubr.f32.gmra.mrb[0].mxu0 %v2755
        %v3093 = vpop.f32.mrb[0].mxu0
        %v3094 = vadd.f32 0.0, %v3093
        %v3095 = vpop.f32.mrb[0].mxu0
        %v3096 = vadd.f32 0.0, %v3095
        %3097 = vmatprep.mubr.f32.mxu0 0.0
        %3098 = vmatmul.mubr.f32.gmra.mrb[0].mxu0 %v2756
        %v3099 = vpop.f32.mrb[0].mxu0
        %v3100 = vadd.f32 0.0, %v3099
        %v3101 = vpop.f32.mrb[0].mxu0
        %v3102 = vadd.f32 0.0, %v3101
        %3103 = vmatprep.mubr.f32.mxu0 0.0
        %3104 = vmatmul.mubr.f32.gmra.mrb[0].mxu0 %v2757
        %v3105 = vpop.f32.mrb[0].mxu0
        %v3106 = vadd.f32 0.0, %v3105
        %v3107 = vpop.f32.mrb[0].mxu0
        %v3108 = vadd.f32 0.0, %v3107
        %3109 = vmatprep.mubr.f32.mxu0 0.0
        %3110 = vmatmul.mubr.f32.gmra.mrb[0].mxu0 %v2758
        %v3111 = vpop.f32.mrb[0].mxu0
        %v3112 = vadd.f32 0.0, %v3111
        %v3113 = vpop.f32.mrb[0].mxu0
        %v3114 = vadd.f32 0.0, %v3113
        %3115 = vmatprep.mubr.f32.mxu0 0.0
        %3116 = vmatmul.mubr.f32.gmra.mrb[0].mxu0 %v2759
        %v3117 = vpop.f32.mrb[0].mxu0
        %v3118 = vadd.f32 0.0, %v3117
        %v3119 = vpop.f32.mrb[0].mxu0
        %v3120 = vadd.f32 0.0, %v3119
        %3121 = vmatprep.mubr.f32.mxu0 0.0
        %3122 = vmatmul.mubr.f32.gmra.mrb[0].mxu0 %v2760
        %v3123 = vpop.f32.mrb[0].mxu0
        %v3124 = vadd.f32 0.0, %v3123
        %v3125 = vpop.f32.mrb[0].mxu0
        %v3126 = vadd.f32 0.0, %v3125
        %3127 = vmatprep.mubr.f32.mxu0 0.0
        %3128 = vmatmul.mubr.f32.gmra.mrb[0].mxu0 %v2761
        %v3129 = vpop.f32.mrb[0].mxu0
        %v3130 = vadd.f32 0.0, %v3129
        %v3131 = vpop.f32.mrb[0].mxu0
        %v3132 = vadd.f32 0.0, %v3131
        %3133 = vmatprep.mubr.f32.mxu0 0.0
        %3134 = vmatmul.mubr.f32.gmra.mrb[0].mxu0 %v2762
        %v3135 = vpop.f32.mrb[0].mxu0
        %v3136 = vadd.f32 0.0, %v3135
        %v3137 = vpop.f32.mrb[0].mxu0
        %v3138 = vadd.f32 0.0, %v3137
        %3139 = vmatprep.mubr.f32.mxu0 0.0
        %3140 = vmatmul.mubr.f32.gmra.mrb[0].mxu0 %v2763
        %v3141 = vpop.f32.mrb[0].mxu0
        %v3142 = vadd.f32 0.0, %v3141
        %v3143 = vpop.f32.mrb[0].mxu0
        %v3144 = vadd.f32 0.0, %v3143
        %3145 = vmatprep.mubr.f32.mxu0 0.0
        %3146 = vmatmul.mubr.f32.gmra.mrb[0].mxu0 %v2764
        %v3147 = vpop.f32.mrb[0].mxu0
        %v3148 = vadd.f32 0.0, %v3147
        %v3149 = vpop.f32.mrb[0].mxu0
        %v3150 = vadd.f32 0.0, %v3149
        %3151 = vmatprep.mubr.f32.mxu0 0.0
        %3152 = vmatmul.mubr.f32.gmra.mrb[0].mxu0 %v2765
        %v3153 = vpop.f32.mrb[0].mxu0
        %v3154 = vadd.f32 0.0, %v3153
        %v3155 = vpop.f32.mrb[0].mxu0
        %v3156 = vadd.f32 0.0, %v3155
        %3157 = vmatprep.mubr.f32.mxu0 0.0
        %3158 = vmatmul.mubr.f32.gmra.mrb[0].mxu0 %v2766
        %v3159 = vpop.f32.mrb[0].mxu0
        %v3160 = vadd.f32 0.0, %v3159
        %v3161 = vpop.f32.mrb[0].mxu0
        %v3162 = vadd.f32 0.0, %v3161
        %3163 = vmatprep.mubr.f32.mxu0 0.0
        %3164 = vmatmul.mubr.f32.gmra.mrb[0].mxu0 %v2767
        %v3165 = vpop.f32.mrb[0].mxu0
        %v3166 = vadd.f32 0.0, %v3165
        %v3167 = vpop.f32.mrb[0].mxu0
        %v3168 = vadd.f32 0.0, %v3167
        %3169 = vmatprep.mubr.f32.mxu0 0.0
        %3170 = vmatmul.mubr.f32.gmra.mrb[0].mxu0 %v2768
        %v3171 = vpop.f32.mrb[0].mxu0
        %v3172 = vadd.f32 0.0, %v3171
        %v3173 = vpop.f32.mrb[0].mxu0
        %v3174 = vadd.f32 0.0, %v3173
        %3175 = vmatprep.mubr.f32.mxu0 0.0
        %3176 = vmatmul.mubr.f32.gmra.mrb[0].mxu0 %v2769
        %v3177 = vpop.f32.mrb[0].mxu0
        %v3178 = vadd.f32 0.0, %v3177
        %v3179 = vpop.f32.mrb[0].mxu0
        %v3180 = vadd.f32 0.0, %v3179
        %3181 = vmatprep.mubr.f32.mxu0 0.0
        %3182 = vmatmul.mubr.f32.gmra.mrb[0].mxu0 %v2770
        %v3183 = vpop.f32.mrb[0].mxu0
        %v3184 = vadd.f32 0.0, %v3183
        %v3185 = vpop.f32.mrb[0].mxu0
        %v3186 = vadd.f32 0.0, %v3185
        %3187 = vmatprep.mubr.f32.mxu0 0.0
        %3188 = vmatmul.mubr.f32.gmra.mrb[0].mxu0 %v2771
        %v3189 = vpop.f32.mrb[0].mxu0
        %v3190 = vadd.f32 0.0, %v3189
        %v3191 = vpop.f32.mrb[0].mxu0
        %v3192 = vadd.f32 0.0, %v3191
        %3193 = vmatprep.mubr.f32.mxu0 0.0
        %3194 = vmatmul.mubr.f32.gmra.mrb[0].mxu0 %v2772
        %v3195 = vpop.f32.mrb[0].mxu0
        %v3196 = vadd.f32 0.0, %v3195
        %v3197 = vpop.f32.mrb[0].mxu0
        %v3198 = vadd.f32 0.0, %v3197
        %3199 = vmatprep.mubr.f32.mxu0 0.0
        %3200 = vmatmul.mubr.f32.gmra.mrb[0].mxu0 %v2773
        %v3201 = vpop.f32.mrb[0].mxu0
        %v3202 = vadd.f32 0.0, %v3201
        %v3203 = vpop.f32.mrb[0].mxu0
        %v3204 = vadd.f32 0.0, %v3203
        %3205 = vmatprep.mubr.f32.mxu0 0.0
        %3206 = vmatmul.mubr.f32.gmra.mrb[0].mxu0 %v2774
        %v3207 = vpop.f32.mrb[0].mxu0
        %v3208 = vadd.f32 0.0, %v3207
        %v3209 = vpop.f32.mrb[0].mxu0
        %v3210 = vadd.f32 0.0, %v3209
        %3211 = vmatprep.mubr.f32.mxu0 0.0
        %3212 = vmatmul.mubr.f32.gmra.mrb[0].mxu0 %v2775
        %v3213 = vpop.f32.mrb[0].mxu0
        %v3214 = vadd.f32 0.0, %v3213
        %v3215 = vpop.f32.mrb[0].mxu0
        %v3216 = vadd.f32 0.0, %v3215
        %3217 = vmatprep.mubr.f32.mxu0 0.0
        %3218 = vmatmul.mubr.f32.gmra.mrb[0].mxu0 %v2776
        %v3219 = vpop.f32.mrb[0].mxu0
        %v3220 = vadd.f32 0.0, %v3219
        %v3221 = vpop.f32.mrb[0].mxu0
        %v3222 = vadd.f32 0.0, %v3221
        %3223 = vmatprep.mubr.f32.mxu0 0.0
        %3224 = vmatmul.mubr.f32.gmra.mrb[0].mxu0 %v2777
        %v3225 = vpop.f32.mrb[0].mxu0
        %v3226 = vadd.f32 0.0, %v3225
        %v3227 = vpop.f32.mrb[0].mxu0
        %v3228 = vadd.f32 0.0, %v3227
        %3229 = vmatprep.mubr.f32.mxu0 0.0
        %3230 = vmatmul.mubr.f32.gmra.mrb[0].mxu0 %v2778
        %v3231 = vpop.f32.mrb[0].mxu0
        %v3232 = vadd.f32 0.0, %v3231
        %v3233 = vpop.f32.mrb[0].mxu0
        %v3234 = vadd.f32 0.0, %v3233
        %3235 = vmatprep.mubr.f32.mxu0 0.0
        %3236 = vmatmul.mubr.f32.gmra.mrb[0].mxu0 %v2779
        %v3237 = vpop.f32.mrb[0].mxu0
        %v3238 = vadd.f32 0.0, %v3237
        %v3239 = vpop.f32.mrb[0].mxu0
        %v3240 = vadd.f32 0.0, %v3239
        %3241 = vmatprep.mubr.f32.mxu0 0.0
        %3242 = vmatmul.mubr.f32.gmra.mrb[0].mxu0 %v2780
        %v3243 = vpop.f32.mrb[0].mxu0
        %v3244 = vadd.f32 0.0, %v3243
        %v3245 = vpop.f32.mrb[0].mxu0
        %v3246 = vadd.f32 0.0, %v3245
        %3247 = vmatprep.mubr.f32.mxu0 0.0
        %3248 = vmatmul.mubr.f32.gmra.mrb[0].mxu0 %v2781
        %v3249 = vpop.f32.mrb[0].mxu0
        %v3250 = vadd.f32 0.0, %v3249
        %v3251 = vpop.f32.mrb[0].mxu0
        %v3252 = vadd.f32 0.0, %v3251
        %3253 = vmatprep.mubr.f32.mxu0 0.0
        %3254 = vmatmul.mubr.f32.gmra.mrb[0].mxu0 %v2782
        %v3255 = vpop.f32.mrb[0].mxu0
        %v3256 = vadd.f32 0.0, %v3255
        %v3257 = vpop.f32.mrb[0].mxu0
        %v3258 = vadd.f32 0.0, %v3257
        %3259 = vmatprep.mubr.f32.mxu0 0.0
        %3260 = vmatmul.mubr.f32.gmra.mrb[0].mxu0 %v2783
        %v3261 = vpop.f32.mrb[0].mxu0
        %v3262 = vadd.f32 0.0, %v3261
        %v3263 = vpop.f32.mrb[0].mxu0
        %v3264 = vadd.f32 0.0, %v3263
        %3265 = vmatprep.mubr.f32.mxu0 0.0
        %3266 = vmatmul.mubr.f32.gmra.mrb[0].mxu0 %v2784
        %v3267 = vpop.f32.mrb[0].mxu0
        %v3268 = vadd.f32 0.0, %v3267
        %v3269 = vpop.f32.mrb[0].mxu0
        %v3270 = vadd.f32 0.0, %v3269
        %3271 = vmatprep.mubr.f32.mxu0 0.0
        %3272 = vmatmul.mubr.f32.gmra.mrb[0].mxu0 %v2785
        %v3273 = vpop.f32.mrb[0].mxu0
        %v3274 = vadd.f32 0.0, %v3273
        %v3275 = vpop.f32.mrb[0].mxu0
        %v3276 = vadd.f32 0.0, %v3275
        %3277 = vmatprep.mubr.f32.mxu0 0.0
        %3278 = vmatmul.mubr.f32.gmra.mrb[0].mxu0 %v2786
        %v3279 = vpop.f32.mrb[0].mxu0
        %v3280 = vadd.f32 0.0, %v3279
        %v3281 = vpop.f32.mrb[0].mxu0
        %v3282 = vadd.f32 0.0, %v3281
        %3283 = vmatprep.mubr.f32.mxu0 0.0
        %3284 = vmatmul.mubr.f32.gmra.mrb[0].mxu0 %v2787
        %v3285 = vpop.f32.mrb[0].mxu0
        %v3286 = vadd.f32 0.0, %v3285
        %v3287 = vpop.f32.mrb[0].mxu0
        %v3288 = vadd.f32 0.0, %v3287
        %3289 = vmatprep.mubr.f32.mxu0 0.0
        %3290 = vmatmul.mubr.f32.gmra.mrb[0].mxu0 %v2788
        %v3291 = vpop.f32.mrb[0].mxu0
        %v3292 = vadd.f32 0.0, %v3291
        %v3293 = vpop.f32.mrb[0].mxu0
        %v3294 = vadd.f32 0.0, %v3293
        %3295 = vmatprep.mubr.f32.mxu0 0.0
        %3296 = vmatmul.mubr.f32.gmra.mrb[0].mxu0 %v2789
        %v3297 = vpop.f32.mrb[0].mxu0
        %v3298 = vadd.f32 0.0, %v3297
        %v3299 = vpop.f32.mrb[0].mxu0
        %v3300 = vadd.f32 0.0, %v3299
        %3301 = vmatprep.mubr.f32.mxu0 0.0
        %3302 = vmatmul.mubr.f32.gmra.mrb[0].mxu0 %v2790
        %v3303 = vpop.f32.mrb[0].mxu0
        %v3304 = vadd.f32 0.0, %v3303
        %v3305 = vpop.f32.mrb[0].mxu0
        %v3306 = vadd.f32 0.0, %v3305
        %3307 = vmatprep.mubr.f32.mxu0 0.0
        %3308 = vmatmul.mubr.f32.gmra.mrb[0].mxu0 %v2791
        %v3309 = vpop.f32.mrb[0].mxu0
        %v3310 = vadd.f32 0.0, %v3309
        %v3311 = vpop.f32.mrb[0].mxu0
        %v3312 = vadd.f32 0.0, %v3311
        %3313 = vmatprep.mubr.f32.mxu0 0.0
        %3314 = vmatmul.mubr.f32.gmra.mrb[0].mxu0 %v2792
        %v3315 = vpop.f32.mrb[0].mxu0
        %v3316 = vadd.f32 0.0, %v3315
        %v3317 = vpop.f32.mrb[0].mxu0
        %v3318 = vadd.f32 0.0, %v3317
        %3319 = vmatprep.mubr.f32.mxu0 0.0
        %3320 = vmatmul.mubr.f32.gmra.mrb[0].mxu0 %v2793
        %v3321 = vpop.f32.mrb[0].mxu0
        %v3322 = vadd.f32 0.0, %v3321
        %v3323 = vpop.f32.mrb[0].mxu0
        %v3324 = vadd.f32 0.0, %v3323
        %3325 = vmatprep.mubr.f32.mxu0 0.0
        %3326 = vmatmul.mubr.f32.gmra.mrb[0].mxu0 %v2794
        %v3327 = vpop.f32.mrb[0].mxu0
        %v3328 = vadd.f32 0.0, %v3327
        %v3329 = vpop.f32.mrb[0].mxu0
        %v3330 = vadd.f32 0.0, %v3329
        %3331 = vmatprep.mubr.f32.mxu0 0.0
        %3332 = vmatmul.mubr.f32.gmra.mrb[0].mxu0 %v2795
        %v3333 = vpop.f32.mrb[0].mxu0
        %v3334 = vadd.f32 0.0, %v3333
        %v3335 = vpop.f32.mrb[0].mxu0
        %v3336 = vadd.f32 0.0, %v3335
        %3337 = vmatprep.mubr.f32.mxu0 0.0
        %3338 = vmatmul.mubr.f32.gmra.mrb[0].mxu0 %v2796
        %v3339 = vpop.f32.mrb[0].mxu0
        %v3340 = vadd.f32 0.0, %v3339
        %v3341 = vpop.f32.mrb[0].mxu0
        %v3342 = vadd.f32 0.0, %v3341
        %3343 = vmatprep.mubr.f32.mxu0 0.0
        %3344 = vmatmul.mubr.f32.gmra.mrb[0].mxu0 %v2797
        %v3345 = vpop.f32.mrb[0].mxu0
        %v3346 = vadd.f32 0.0, %v3345
        %v3347 = vpop.f32.mrb[0].mxu0
        %v3348 = vadd.f32 0.0, %v3347
        %3349 = vmatprep.mubr.f32.mxu0 0.0
        %3350 = vmatmul.mubr.f32.gmra.mrb[0].mxu0 %v2798
        %v3351 = vpop.f32.mrb[0].mxu0
        %v3352 = vadd.f32 0.0, %v3351
        %v3353 = vpop.f32.mrb[0].mxu0
        %v3354 = vadd.f32 0.0, %v3353
        %3355 = vmatprep.mubr.f32.mxu0 0.0
        %3356 = vmatmul.mubr.f32.gmra.mrb[0].mxu0 %v2799
        %v3357 = vpop.f32.mrb[0].mxu0
        %v3358 = vadd.f32 0.0, %v3357
        %v3359 = vpop.f32.mrb[0].mxu0
        %v3360 = vadd.f32 0.0, %v3359
        %3361 = vmatprep.mubr.f32.mxu0 0.0
        %3362 = vmatmul.mubr.f32.gmra.mrb[0].mxu0 %v2800
        %v3363 = vpop.f32.mrb[0].mxu0
        %v3364 = vadd.f32 0.0, %v3363
        %v3365 = vpop.f32.mrb[0].mxu0
        %v3366 = vadd.f32 0.0, %v3365
        %3367 = vmatprep.mubr.f32.mxu0 0.0
        %3368 = vmatmul.mubr.f32.gmra.mrb[0].mxu0 %v2801
        %v3369 = vpop.f32.mrb[0].mxu0
        %v3370 = vadd.f32 0.0, %v3369
        %v3371 = vpop.f32.mrb[0].mxu0
        %v3372 = vadd.f32 0.0, %v3371
        %3373 = vmatprep.mubr.f32.mxu0 0.0
        %3374 = vmatmul.mubr.f32.gmra.mrb[0].mxu0 %v2802
        %v3375 = vpop.f32.mrb[0].mxu0
        %v3376 = vadd.f32 0.0, %v3375
        %v3377 = vpop.f32.mrb[0].mxu0
        %v3378 = vadd.f32 0.0, %v3377
        %3379 = vmatprep.mubr.f32.mxu0 0.0
        %3380 = vmatmul.mubr.f32.gmra.mrb[0].mxu0 %v2803
        %v3381 = vpop.f32.mrb[0].mxu0
        %v3382 = vadd.f32 0.0, %v3381
        %v3383 = vpop.f32.mrb[0].mxu0
        %v3384 = vadd.f32 0.0, %v3383
        %3385 = vmatprep.mubr.f32.mxu0 0.0
        %3386 = vmatmul.mubr.f32.gmra.mrb[0].mxu0 %v2804
        %v3387 = vpop.f32.mrb[0].mxu0
        %v3388 = vadd.f32 0.0, %v3387
        %v3389 = vpop.f32.mrb[0].mxu0
        %v3390 = vadd.f32 0.0, %v3389
        %3391 = vmatprep.mubr.f32.mxu0 0.0
        %3392 = vmatmul.mubr.f32.gmra.mrb[0].mxu0 %v2805
        %v3393 = vpop.f32.mrb[0].mxu0
        %v3394 = vadd.f32 0.0, %v3393
        %v3395 = vpop.f32.mrb[0].mxu0
        %v3396 = vadd.f32 0.0, %v3395
        %3397 = vmatprep.mubr.f32.mxu0 0.0
        %3398 = vmatmul.mubr.f32.gmra.mrb[0].mxu0 %v2806
        %v3399 = vpop.f32.mrb[0].mxu0
        %v3400 = vadd.f32 0.0, %v3399
        %v3401 = vpop.f32.mrb[0].mxu0
        %v3402 = vadd.f32 0.0, %v3401
        %3403 = vmatprep.mubr.f32.mxu0 0.0
        %3404 = vmatmul.mubr.f32.gmra.mrb[0].mxu0 %v2807
        %v3405 = vpop.f32.mrb[0].mxu0
        %v3406 = vadd.f32 0.0, %v3405
        %v3407 = vpop.f32.mrb[0].mxu0
        %v3408 = vadd.f32 0.0, %v3407
        %3409 = vmatprep.mubr.f32.mxu0 0.0
        %3410 = vmatmul.mubr.f32.gmra.mrb[0].mxu0 %v2808
        %v3411 = vpop.f32.mrb[0].mxu0
        %v3412 = vadd.f32 0.0, %v3411
        %v3413 = vpop.f32.mrb[0].mxu0
        %v3414 = vadd.f32 0.0, %v3413
        %3415 = vmatprep.mubr.f32.mxu0 0.0
        %3416 = vmatmul.mubr.f32.gmra.mrb[0].mxu0 %v2809
        %v3417 = vpop.f32.mrb[0].mxu0
        %v3418 = vadd.f32 0.0, %v3417
        %v3419 = vpop.f32.mrb[0].mxu0
        %v3420 = vadd.f32 0.0, %v3419
        %3421 = vmatprep.mubr.f32.mxu0 0.0
        %3422 = vmatmul.mubr.f32.gmra.mrb[0].mxu0 %v2810
        %v3423 = vpop.f32.mrb[0].mxu0
        %v3424 = vadd.f32 0.0, %v3423
        %v3425 = vpop.f32.mrb[0].mxu0
        %v3426 = vadd.f32 0.0, %v3425
        %3427 = vmatprep.mubr.f32.mxu0 0.0
        %3428 = vmatmul.mubr.f32.gmra.mrb[0].mxu0 %v2811
        %v3429 = vpop.f32.mrb[0].mxu0
        %v3430 = vadd.f32 0.0, %v3429
        %v3431 = vpop.f32.mrb[0].mxu0
        %v3432 = vadd.f32 0.0, %v3431
        %3433 = vmatprep.mubr.f32.mxu0 0.0
        %3434 = vmatmul.mubr.f32.gmra.mrb[0].mxu0 %v2812
        %v3435 = vpop.f32.mrb[0].mxu0
        %v3436 = vadd.f32 0.0, %v3435
        %v3437 = vpop.f32.mrb[0].mxu0
        %v3438 = vadd.f32 0.0, %v3437
        %3439 = vmatprep.mubr.f32.mxu0 0.0
        %3440 = vmatmul.mubr.f32.gmra.mrb[0].mxu0 %v2813
        %v3441 = vpop.f32.mrb[0].mxu0
        %v3442 = vadd.f32 0.0, %v3441
        %v3443 = vpop.f32.mrb[0].mxu0
        %v3444 = vadd.f32 0.0, %v3443
        %3445 = vmatprep.mubr.f32.mxu0 0.0
        %3446 = vmatmul.mubr.f32.gmra.mrb[0].mxu0 %v2814
        %v3447 = vpop.f32.mrb[0].mxu0
        %v3448 = vadd.f32 0.0, %v3447
        %v3449 = vpop.f32.mrb[0].mxu0
        %v3450 = vadd.f32 0.0, %v3449
        %3451 = vmatprep.mubr.f32.mxu0 0.0
        %3452 = vmatmul.mubr.f32.gmra.mrb[0].mxu0 %v2815
        %v3453 = vpop.f32.mrb[0].mxu0
        %v3454 = vadd.f32 0.0, %v3453
        %v3455 = vpop.f32.mrb[0].mxu0
        %v3456 = vadd.f32 0.0, %v3455
        %3457 = vmatprep.mubr.f32.mxu0 0.0
        %3458 = vmatmul.mubr.f32.gmra.mrb[0].mxu0 %v2816
        %v3459 = vpop.f32.mrb[0].mxu0
        %v3460 = vadd.f32 0.0, %v3459
        %v3461 = vpop.f32.mrb[0].mxu0
        %v3462 = vadd.f32 0.0, %v3461
        %3463 = vmatprep.mubr.f32.mxu0 0.0
        %3464 = vmatmul.mubr.f32.gmra.mrb[0].mxu0 %v2817
        %v3465 = vpop.f32.mrb[0].mxu0
        %v3466 = vadd.f32 0.0, %v3465
        %v3467 = vpop.f32.mrb[0].mxu0
        %v3468 = vadd.f32 0.0, %v3467
        %3469 = vmatprep.mubr.f32.mxu0 0.0
        %3470 = vmatmul.mubr.f32.gmra.mrb[0].mxu0 %v2818
        %v3471 = vpop.f32.mrb[0].mxu0
        %v3472 = vadd.f32 0.0, %v3471
        %v3473 = vpop.f32.mrb[0].mxu0
        %v3474 = vadd.f32 0.0, %v3473
        %3475 = vmatprep.mubr.f32.mxu0 0.0
        %3476 = vmatmul.mubr.f32.gmra.mrb[0].mxu0 %v2819
        %v3477 = vpop.f32.mrb[0].mxu0
        %v3478 = vadd.f32 0.0, %v3477
        %v3479 = vpop.f32.mrb[0].mxu0
        %v3480 = vadd.f32 0.0, %v3479
        %3481 = vmatprep.mubr.f32.mxu0 0.0
        %3482 = vmatmul.mubr.f32.gmra.mrb[0].mxu0 %v2820
        %v3483 = vpop.f32.mrb[0].mxu0
        %v3484 = vadd.f32 0.0, %v3483
        %v3485 = vpop.f32.mrb[0].mxu0
        %v3486 = vadd.f32 0.0, %v3485
        %3487 = vmatprep.mubr.f32.mxu0 0.0
        %3488 = vmatmul.mubr.f32.gmra.mrb[0].mxu0 %v2821
        %v3489 = vpop.f32.mrb[0].mxu0
        %v3490 = vadd.f32 0.0, %v3489
        %v3491 = vpop.f32.mrb[0].mxu0
        %v3492 = vadd.f32 0.0, %v3491
        %3493 = vmatprep.mubr.f32.mxu0 0.0
        %3494 = vmatmul.mubr.f32.gmra.mrb[0].mxu0 %v2822
        %v3495 = vpop.f32.mrb[0].mxu0
        %v3496 = vadd.f32 0.0, %v3495
        %v3497 = vpop.f32.mrb[0].mxu0
        %v3498 = vadd.f32 0.0, %v3497
        %3499 = vmatprep.mubr.f32.mxu0 0.0
        %3500 = vmatmul.mubr.f32.gmra.mrb[0].mxu0 %v2823
        %v3501 = vpop.f32.mrb[0].mxu0
        %v3502 = vadd.f32 0.0, %v3501
        %v3503 = vpop.f32.mrb[0].mxu0
        %v3504 = vadd.f32 0.0, %v3503
        %3505 = vmatprep.mubr.f32.mxu0 0.0
        %3506 = vmatmul.mubr.f32.gmra.mrb[0].mxu0 %v2824
        %v3507 = vpop.f32.mrb[0].mxu0
        %v3508 = vadd.f32 0.0, %v3507
        %v3509 = vpop.f32.mrb[0].mxu0
        %v3510 = vadd.f32 0.0, %v3509
        %3511 = vmatprep.mubr.f32.mxu0 0.0
        %3512 = vmatmul.mubr.f32.gmra.mrb[0].mxu0 %v2825
        %v3513 = vpop.f32.mrb[0].mxu0
        %v3514 = vadd.f32 0.0, %v3513
        %v3515 = vpop.f32.mrb[0].mxu0
        %v3516 = vadd.f32 0.0, %v3515
        %3517 = vmatprep.mubr.f32.mxu0 0.0
        %3518 = vmatmul.mubr.f32.gmra.mrb[0].mxu0 %v2826
        %v3519 = vpop.f32.mrb[0].mxu0
        %v3520 = vadd.f32 0.0, %v3519
        %v3521 = vpop.f32.mrb[0].mxu0
        %v3522 = vadd.f32 0.0, %v3521
        %3523 = vmatprep.mubr.f32.mxu0 0.0
        %3524 = vmatmul.mubr.f32.gmra.mrb[0].mxu0 %v2827
        %v3525 = vpop.f32.mrb[0].mxu0
        %v3526 = vadd.f32 0.0, %v3525
        %v3527 = vpop.f32.mrb[0].mxu0
        %v3528 = vadd.f32 0.0, %v3527
        %3529 = vmatprep.mubr.f32.mxu0 0.0
        %3530 = vmatmul.mubr.f32.gmra.mrb[0].mxu0 %v2828
        %v3531 = vpop.f32.mrb[0].mxu0
        %v3532 = vadd.f32 0.0, %v3531
        %v3533 = vpop.f32.mrb[0].mxu0
        %v3534 = vadd.f32 0.0, %v3533
        %3535 = vmatprep.mubr.f32.mxu0 0.0
        %3536 = vmatmul.mubr.f32.gmra.mrb[0].mxu0 %v2829
        %v3537 = vpop.f32.mrb[0].mxu0
        %v3538 = vadd.f32 0.0, %v3537
        %v3539 = vpop.f32.mrb[0].mxu0
        %v3540 = vadd.f32 0.0, %v3539
        %3541 = vmatprep.mubr.f32.mxu0 0.0
        %3542 = vmatmul.mubr.f32.gmra.mrb[0].mxu0 %v2830
        %v3543 = vpop.f32.mrb[0].mxu0
        %v3544 = vadd.f32 0.0, %v3543
        %v3545 = vpop.f32.mrb[0].mxu0
        %v3546 = vadd.f32 0.0, %v3545
        %3547 = vmatprep.mubr.f32.mxu0 0.0
        %3548 = vmatmul.mubr.f32.gmra.mrb[0].mxu0 %v2831
        %v3549 = vpop.f32.mrb[0].mxu0
        %v3550 = vadd.f32 0.0, %v3549
        %v3551 = vpop.f32.mrb[0].mxu0
        %v3552 = vadd.f32 0.0, %v3551
        %3553 = vmatprep.mubr.f32.mxu0 0.0
        %3554 = vmatmul.mubr.f32.gmra.mrb[0].mxu0 %v2832
        %v3555 = vpop.f32.mrb[0].mxu0
        %v3556 = vadd.f32 0.0, %v3555
        %v3557 = vpop.f32.mrb[0].mxu0
        %v3558 = vadd.f32 0.0, %v3557
        %3559 = vmatprep.mubr.f32.mxu0 0.0
        %3560 = vmatmul.mubr.f32.gmra.mrb[0].mxu0 %v2833
        %v3561 = vpop.f32.mrb[0].mxu0
        %v3562 = vadd.f32 0.0, %v3561
        %v3563 = vpop.f32.mrb[0].mxu0
        %v3564 = vadd.f32 0.0, %v3563
        %3565 = vmatprep.mubr.f32.mxu0 0.0
        %3566 = vmatmul.mubr.f32.gmra.mrb[0].mxu0 %v2834
        %v3567 = vpop.f32.mrb[0].mxu0
        %v3568 = vadd.f32 0.0, %v3567
        %v3569 = vpop.f32.mrb[0].mxu0
        %v3570 = vadd.f32 0.0, %v3569
        %3571 = vmatprep.mubr.f32.mxu0 0.0
        %3572 = vmatmul.mubr.f32.gmra.mrb[0].mxu0 %v2835
        %v3573 = vpop.f32.mrb[0].mxu0
        %v3574 = vadd.f32 0.0, %v3573
        %v3575 = vpop.f32.mrb[0].mxu0
        %v3576 = vadd.f32 0.0, %v3575
        %3577 = vmatprep.mubr.f32.mxu0 0.0
        %3578 = vmatmul.mubr.f32.gmra.mrb[0].mxu0 %v2836
        %v3579 = vpop.f32.mrb[0].mxu0
        %v3580 = vadd.f32 0.0, %v3579
        %v3581 = vpop.f32.mrb[0].mxu0
        %v3582 = vadd.f32 0.0, %v3581
        %3583 = vmatprep.mubr.f32.mxu0 0.0
        %3584 = vmatmul.mubr.f32.gmra.mrb[0].mxu0 %v2837
        %v3585 = vpop.f32.mrb[0].mxu0
        %v3586 = vadd.f32 0.0, %v3585
        %v3587 = vpop.f32.mrb[0].mxu0
        %v3588 = vadd.f32 0.0, %v3587
        %3589 = vmatprep.mubr.f32.mxu0 0.0
        %3590 = vmatmul.mubr.f32.gmra.mrb[0].mxu0 %v2838
        %v3591 = vpop.f32.mrb[0].mxu0
        %v3592 = vadd.f32 0.0, %v3591
        %v3593 = vpop.f32.mrb[0].mxu0
        %v3594 = vadd.f32 0.0, %v3593
        %3595 = vmatprep.mubr.f32.mxu0 0.0
        %3596 = vmatmul.mubr.f32.gmra.mrb[0].mxu0 %v2839
        %v3597 = vpop.f32.mrb[0].mxu0
        %v3598 = vadd.f32 0.0, %v3597
        %v3599 = vpop.f32.mrb[0].mxu0
        %v3600 = vadd.f32 0.0, %v3599
        %3601 = vmatprep.mubr.f32.mxu0 0.0
        %3602 = vmatmul.mubr.f32.gmra.mrb[0].mxu0 %v2840
        %v3603 = vpop.f32.mrb[0].mxu0
        %v3604 = vadd.f32 0.0, %v3603
        %v3605 = vpop.f32.mrb[0].mxu0
        %v3606 = vadd.f32 0.0, %v3605
        %3607 = vmatprep.mubr.f32.mxu0 0.0
        %3608 = vmatmul.mubr.f32.gmra.mrb[0].mxu0 %v2841
        %v3609 = vpop.f32.mrb[0].mxu0
        %v3610 = vadd.f32 0.0, %v3609
        %v3611 = vpop.f32.mrb[0].mxu0
        %v3612 = vadd.f32 0.0, %v3611
        %3613 = vmatprep.mubr.f32.mxu0 0.0
        %3614 = vmatmul.mubr.f32.gmra.mrb[0].mxu0 %v2842
        %v3615 = vpop.f32.mrb[0].mxu0
        %v3616 = vadd.f32 0.0, %v3615
        %v3617 = vpop.f32.mrb[0].mxu0
        %v3618 = vadd.f32 0.0, %v3617
        %3619 = vmatprep.mubr.f32.mxu0 0.0
        %3620 = vmatmul.mubr.f32.gmra.mrb[0].mxu0 %v2843
        %v3621 = vpop.f32.mrb[0].mxu0
        %v3622 = vadd.f32 0.0, %v3621
        %v3623 = vpop.f32.mrb[0].mxu0
        %v3624 = vadd.f32 0.0, %v3623
        %3625 = vmatprep.mubr.f32.mxu0 0.0
        %3626 = vmatmul.mubr.f32.gmra.mrb[0].mxu0 %v2844
        %v3627 = vpop.f32.mrb[0].mxu0
        %v3628 = vadd.f32 0.0, %v3627
        %v3629 = vpop.f32.mrb[0].mxu0
        %v3630 = vadd.f32 0.0, %v3629
        %3631 = vmatprep.mubr.f32.mxu0 0.0
        %3632 = vmatmul.mubr.f32.gmra.mrb[0].mxu0 %v2845
        %v3633 = vpop.f32.mrb[0].mxu0
        %v3634 = vadd.f32 0.0, %v3633
        %v3635 = vpop.f32.mrb[0].mxu0
        %v3636 = vadd.f32 0.0, %v3635
        %3637 = vmatprep.mubr.f32.mxu0 0.0
        %3638 = vmatmul.mubr.f32.gmra.mrb[0].mxu0 %v2846
        %v3639 = vpop.f32.mrb[0].mxu0
        %v3640 = vadd.f32 0.0, %v3639
        %v3641 = vpop.f32.mrb[0].mxu0
        %v3642 = vadd.f32 0.0, %v3641
        %3643 = vmatprep.mubr.f32.mxu0 0.0
        %3644 = vmatmul.mubr.f32.gmra.mrb[0].mxu0 %v2847
        %v3645 = vpop.f32.mrb[0].mxu0
        %v3646 = vadd.f32 0.0, %v3645
        %v3647 = vpop.f32.mrb[0].mxu0
        %v3648 = vadd.f32 0.0, %v3647
        %3649 = vmatprep.mubr.f32.mxu0 0.0
        %3650 = vmatmul.mubr.f32.gmra.mrb[0].mxu0 %v2848
        %v3651 = vpop.f32.mrb[0].mxu0
        %v3652 = vadd.f32 0.0, %v3651
        %v3653 = vpop.f32.mrb[0].mxu0
        %v3654 = vadd.f32 0.0, %v3653
        %3655 = vmatprep.mubr.f32.mxu0 0.0
        %3656 = vmatmul.mubr.f32.gmra.mrb[0].mxu0 %v2849
        %v3657 = vpop.f32.mrb[0].mxu0
        %v3658 = vadd.f32 0.0, %v3657
        %v3659 = vpop.f32.mrb[0].mxu0
        %v3660 = vadd.f32 0.0, %v3659
        %3661 = vmatprep.mubr.f32.mxu0 0.0
        %3662 = vmatmul.mubr.f32.gmra.mrb[0].mxu0 %v2850
        %v3663 = vpop.f32.mrb[0].mxu0
        %v3664 = vadd.f32 0.0, %v3663
        %v3665 = vpop.f32.mrb[0].mxu0
        %v3666 = vadd.f32 0.0, %v3665
        %3667 = vmatprep.mubr.f32.mxu0 0.0
        %3668 = vmatmul.mubr.f32.gmra.mrb[0].mxu0 %v2851
        %v3669 = vpop.f32.mrb[0].mxu0
        %v3670 = vadd.f32 0.0, %v3669
        %v3671 = vpop.f32.mrb[0].mxu0
        %v3672 = vadd.f32 0.0, %v3671
        %3673 = vmatprep.mubr.f32.mxu0 0.0
        %3674 = vmatmul.mubr.f32.gmra.mrb[0].mxu0 %v2852
        %v3675 = vpop.f32.mrb[0].mxu0
        %v3676 = vadd.f32 0.0, %v3675
        %v3677 = vpop.f32.mrb[0].mxu0
        %v3678 = vadd.f32 0.0, %v3677
        %3679 = vmatprep.mubr.f32.mxu0 0.0
        %3680 = vmatmul.mubr.f32.gmra.mrb[0].mxu0 %v2853
        %v3681 = vpop.f32.mrb[0].mxu0
        %v3682 = vadd.f32 0.0, %v3681
        %v3683 = vpop.f32.mrb[0].mxu0
        %v3684 = vadd.f32 0.0, %v3683
        %3685 = vmatprep.mubr.f32.mxu0 0.0
        %3686 = vmatmul.mubr.f32.gmra.mrb[0].mxu0 %v2854
        %v3687 = vpop.f32.mrb[0].mxu0
        %v3688 = vadd.f32 0.0, %v3687
        %v3689 = vpop.f32.mrb[0].mxu0
        %v3690 = vadd.f32 0.0, %v3689
        %3691 = vmatprep.mubr.f32.mxu0 0.0
        %3692 = vmatmul.mubr.f32.gmra.mrb[0].mxu0 %v2855
        %v3693 = vpop.f32.mrb[0].mxu0
        %v3694 = vadd.f32 0.0, %v3693
        %v3695 = vpop.f32.mrb[0].mxu0
        %v3696 = vadd.f32 0.0, %v3695
        %3697 = vmatprep.mubr.f32.mxu0 0.0
        %3698 = vmatmul.mubr.f32.gmra.mrb[0].mxu0 %v2856
        %v3699 = vpop.f32.mrb[0].mxu0
        %v3700 = vadd.f32 0.0, %v3699
        %v3701 = vpop.f32.mrb[0].mxu0
        %v3702 = vadd.f32 0.0, %v3701
        %3703 = vmatprep.mubr.f32.mxu0 0.0
        %3704 = vmatmul.mubr.f32.gmra.mrb[0].mxu0 %v2857
        %v3705 = vpop.f32.mrb[0].mxu0
        %v3706 = vadd.f32 0.0, %v3705
        %v3707 = vpop.f32.mrb[0].mxu0
        %v3708 = vadd.f32 0.0, %v3707
        %3709 = vmatprep.mubr.f32.mxu0 0.0
        %3710 = vmatmul.mubr.f32.gmra.mrb[0].mxu0 %v2858
        %v3711 = vpop.f32.mrb[0].mxu0
        %v3712 = vadd.f32 0.0, %v3711
        %v3713 = vpop.f32.mrb[0].mxu0
        %v3714 = vadd.f32 0.0, %v3713
        %3715 = vmatprep.mubr.f32.mxu0 0.0
        %3716 = vmatmul.mubr.f32.gmra.mrb[0].mxu0 %v2859
        %v3717 = vpop.f32.mrb[0].mxu0
        %v3718 = vadd.f32 0.0, %v3717
        %v3719 = vpop.f32.mrb[0].mxu0
        %v3720 = vadd.f32 0.0, %v3719
        %3721 = vmatprep.mubr.f32.mxu0 0.0
        %3722 = vmatmul.mubr.f32.gmra.mrb[0].mxu0 %v2860
        %v3723 = vpop.f32.mrb[0].mxu0
        %v3724 = vadd.f32 0.0, %v3723
        %v3725 = vpop.f32.mrb[0].mxu0
        %v3726 = vadd.f32 0.0, %v3725
        %3727 = vmatprep.mubr.f32.mxu0 0.0
        %3728 = vmatmul.mubr.f32.gmra.mrb[0].mxu0 %v2861
        %v3729 = vpop.f32.mrb[0].mxu0
        %v3730 = vadd.f32 0.0, %v3729
        %v3731 = vpop.f32.mrb[0].mxu0
        %v3732 = vadd.f32 0.0, %v3731
        %3733 = vmatprep.mubr.f32.mxu0 0.0
        %3734 = vmatmul.mubr.f32.gmra.mrb[0].mxu0 %v2862
        %v3735 = vpop.f32.mrb[0].mxu0
        %v3736 = vadd.f32 0.0, %v3735
        %v3737 = vpop.f32.mrb[0].mxu0
        %v3738 = vadd.f32 0.0, %v3737
        %3739 = vmatprep.mubr.f32.mxu0 0.0
        %3740 = vmatmul.mubr.f32.gmra.mrb[0].mxu0 %v2863
        %v3741 = vpop.f32.mrb[0].mxu0
        %v3742 = vadd.f32 0.0, %v3741
        %v3743 = vpop.f32.mrb[0].mxu0
        %v3744 = vadd.f32 0.0, %v3743
        %3745 = vmatprep.mubr.f32.mxu0 0.0
        %3746 = vmatmul.mubr.f32.gmra.mrb[0].mxu0 %v2864
        %v3747 = vpop.f32.mrb[0].mxu0
        %v3748 = vadd.f32 0.0, %v3747
        %v3749 = vpop.f32.mrb[0].mxu0
        %v3750 = vadd.f32 0.0, %v3749
        %3751 = vmatprep.mubr.f32.mxu0 0.0
        %3752 = vmatmul.mubr.f32.gmra.mrb[0].mxu0 %v2865
        %v3753 = vpop.f32.mrb[0].mxu0
        %v3754 = vadd.f32 0.0, %v3753
        %v3755 = vpop.f32.mrb[0].mxu0
        %v3756 = vadd.f32 0.0, %v3755
        %3757 = vmatprep.mubr.f32.mxu0 0.0
        %3758 = vmatmul.mubr.f32.gmra.mrb[0].mxu0 %v2866
        %v3759 = vpop.f32.mrb[0].mxu0
        %v3760 = vadd.f32 0.0, %v3759
        %v3761 = vpop.f32.mrb[0].mxu0
        %v3762 = vadd.f32 0.0, %v3761
        %3763 = vdwg.mxu0
        %3764 = vmatprep.subr.mxu0 %v2870
        %3765 = vmatpush1.msra.mxu0 %v2869
        %3766 = vmatprep.subr.mxu0 %v2874
        %3767 = vmatpush1.msra.mxu0 %v2873
        %3768 = vmatprep.subr.mxu0 %v2878
        %3769 = vmatpush1.msra.mxu0 %v2877
        %3770 = vmatprep.subr.mxu0 %v2882
        %3771 = vmatpush1.msra.mxu0 %v2881
        %3772 = vmatprep.subr.mxu0 %v2886
        %3773 = vmatpush1.msra.mxu0 %v2885
        %3774 = vmatprep.subr.mxu0 %v2890
        %3775 = vmatpush1.msra.mxu0 %v2889
        %3776 = vmatprep.subr.mxu0 %v2894
        %3777 = vmatpush1.msra.mxu0 %v2893
        %3778 = vmatprep.subr.mxu0 %v2898
        %3779 = vmatpush1.msra.mxu0 %v2897
        %3780 = vmatprep.subr.mxu0 %v2902
        %3781 = vmatpush1.msra.mxu0 %v2901
        %3782 = vmatprep.subr.mxu0 %v2906
        %3783 = vmatpush1.msra.mxu0 %v2905
        %3784 = vmatprep.subr.mxu0 %v2910
        %3785 = vmatpush1.msra.mxu0 %v2909
        %3786 = vmatprep.subr.mxu0 %v2914
        %3787 = vmatpush1.msra.mxu0 %v2913
        %3788 = vmatprep.subr.mxu0 %v2918
        %3789 = vmatpush1.msra.mxu0 %v2917
        %3790 = vmatprep.subr.mxu0 %v2922
        %3791 = vmatpush1.msra.mxu0 %v2921
        %3792 = vmatprep.subr.mxu0 %v2926
        %3793 = vmatpush1.msra.mxu0 %v2925
        %3794 = vmatprep.subr.mxu0 %v2930
        %3795 = vmatpush1.msra.mxu0 %v2929
        %3796 = vmatprep.subr.mxu0 0.0
        %3797 = vmatpush1.msra.mxu0 0.0
        %3798 = vmatprep.subr.mxu0 0.0
        %3799 = vmatpush1.msra.mxu0 0.0
        %3800 = vmatprep.subr.mxu0 0.0
        %3801 = vmatpush1.msra.mxu0 0.0
        %3802 = vmatprep.subr.mxu0 0.0
        %3803 = vmatpush1.msra.mxu0 0.0
        %3804 = vmatprep.subr.mxu0 0.0
        %3805 = vmatpush1.msra.mxu0 0.0
        %3806 = vmatprep.subr.mxu0 0.0
        %3807 = vmatpush1.msra.mxu0 0.0
        %3808 = vmatprep.subr.mxu0 0.0
        %3809 = vmatpush1.msra.mxu0 0.0
        %3810 = vmatprep.subr.mxu0 0.0
        %3811 = vmatpush1.msra.mxu0 0.0
        %3812 = vmatprep.subr.mxu0 0.0
        %3813 = vmatpush1.msra.mxu0 0.0
        %3814 = vmatprep.subr.mxu0 0.0
        %3815 = vmatpush1.msra.mxu0 0.0
        %3816 = vmatprep.subr.mxu0 0.0
        %3817 = vmatpush1.msra.mxu0 0.0
        %3818 = vmatprep.subr.mxu0 0.0
        %3819 = vmatpush1.msra.mxu0 0.0
        %3820 = vmatprep.subr.mxu0 0.0
        %3821 = vmatpush1.msra.mxu0 0.0
        %3822 = vmatprep.subr.mxu0 0.0
        %3823 = vmatpush1.msra.mxu0 0.0
        %3824 = vmatprep.subr.mxu0 0.0
        %3825 = vmatpush1.msra.mxu0 0.0
        %3826 = vmatprep.subr.mxu0 0.0
        %3827 = vmatpush1.msra.mxu0 0.0
        %3828 = vmatprep.mubr.f32.mxu0 0.0
        %3829 = vmatmul.mubr.f32.gmra.mrb[0].mxu0 %v2739
        %v3830 = vpop.f32.mrb[0].mxu0
        %v3831 = vadd.f32 0.0, %v3830
        %v3832 = vpop.f32.mrb[0].mxu0
        %v3833 = vadd.f32 0.0, %v3832
        %3834 = vmatprep.mubr.f32.mxu0 0.0
        %3835 = vmatmul.mubr.f32.gmra.mrb[0].mxu0 %v2740
        %v3836 = vpop.f32.mrb[0].mxu0
        %v3837 = vadd.f32 0.0, %v3836
        %v3838 = vpop.f32.mrb[0].mxu0
        %v3839 = vadd.f32 0.0, %v3838
        %3840 = vmatprep.mubr.f32.mxu0 0.0
        %3841 = vmatmul.mubr.f32.gmra.mrb[0].mxu0 %v2741
        %v3842 = vpop.f32.mrb[0].mxu0
        %v3843 = vadd.f32 0.0, %v3842
        %v3844 = vpop.f32.mrb[0].mxu0
        %v3845 = vadd.f32 0.0, %v3844
        %3846 = vmatprep.mubr.f32.mxu0 0.0
        %3847 = vmatmul.mubr.f32.gmra.mrb[0].mxu0 %v2742
        %v3848 = vpop.f32.mrb[0].mxu0
        %v3849 = vadd.f32 0.0, %v3848
        %v3850 = vpop.f32.mrb[0].mxu0
        %v3851 = vadd.f32 0.0, %v3850
        %3852 = vmatprep.mubr.f32.mxu0 0.0
        %3853 = vmatmul.mubr.f32.gmra.mrb[0].mxu0 %v2743
        %v3854 = vpop.f32.mrb[0].mxu0
        %v3855 = vadd.f32 0.0, %v3854
        %v3856 = vpop.f32.mrb[0].mxu0
        %v3857 = vadd.f32 0.0, %v3856
        %3858 = vmatprep.mubr.f32.mxu0 0.0
        %3859 = vmatmul.mubr.f32.gmra.mrb[0].mxu0 %v2744
        %v3860 = vpop.f32.mrb[0].mxu0
        %v3861 = vadd.f32 0.0, %v3860
        %v3862 = vpop.f32.mrb[0].mxu0
        %v3863 = vadd.f32 0.0, %v3862
        %3864 = vmatprep.mubr.f32.mxu0 0.0
        %3865 = vmatmul.mubr.f32.gmra.mrb[0].mxu0 %v2745
        %v3866 = vpop.f32.mrb[0].mxu0
        %v3867 = vadd.f32 0.0, %v3866
        %v3868 = vpop.f32.mrb[0].mxu0
        %v3869 = vadd.f32 0.0, %v3868
        %3870 = vmatprep.mubr.f32.mxu0 0.0
        %3871 = vmatmul.mubr.f32.gmra.mrb[0].mxu0 %v2746
        %v3872 = vpop.f32.mrb[0].mxu0
        %v3873 = vadd.f32 0.0, %v3872
        %v3874 = vpop.f32.mrb[0].mxu0
        %v3875 = vadd.f32 0.0, %v3874
        %3876 = vmatprep.mubr.f32.mxu0 0.0
        %3877 = vmatmul.mubr.f32.gmra.mrb[0].mxu0 %v2747
        %v3878 = vpop.f32.mrb[0].mxu0
        %v3879 = vadd.f32 0.0, %v3878
        %v3880 = vpop.f32.mrb[0].mxu0
        %v3881 = vadd.f32 0.0, %v3880
        %3882 = vmatprep.mubr.f32.mxu0 0.0
        %3883 = vmatmul.mubr.f32.gmra.mrb[0].mxu0 %v2748
        %v3884 = vpop.f32.mrb[0].mxu0
        %v3885 = vadd.f32 0.0, %v3884
        %v3886 = vpop.f32.mrb[0].mxu0
        %v3887 = vadd.f32 0.0, %v3886
        %3888 = vmatprep.mubr.f32.mxu0 0.0
        %3889 = vmatmul.mubr.f32.gmra.mrb[0].mxu0 %v2749
        %v3890 = vpop.f32.mrb[0].mxu0
        %v3891 = vadd.f32 0.0, %v3890
        %v3892 = vpop.f32.mrb[0].mxu0
        %v3893 = vadd.f32 0.0, %v3892
        %3894 = vmatprep.mubr.f32.mxu0 0.0
        %3895 = vmatmul.mubr.f32.gmra.mrb[0].mxu0 %v2750
        %v3896 = vpop.f32.mrb[0].mxu0
        %v3897 = vadd.f32 0.0, %v3896
        %v3898 = vpop.f32.mrb[0].mxu0
        %v3899 = vadd.f32 0.0, %v3898
        %3900 = vmatprep.mubr.f32.mxu0 0.0
        %3901 = vmatmul.mubr.f32.gmra.mrb[0].mxu0 %v2751
        %v3902 = vpop.f32.mrb[0].mxu0
        %v3903 = vadd.f32 0.0, %v3902
        %v3904 = vpop.f32.mrb[0].mxu0
        %v3905 = vadd.f32 0.0, %v3904
        %3906 = vmatprep.mubr.f32.mxu0 0.0
        %3907 = vmatmul.mubr.f32.gmra.mrb[0].mxu0 %v2752
        %v3908 = vpop.f32.mrb[0].mxu0
        %v3909 = vadd.f32 0.0, %v3908
        %v3910 = vpop.f32.mrb[0].mxu0
        %v3911 = vadd.f32 0.0, %v3910
        %3912 = vmatprep.mubr.f32.mxu0 0.0
        %3913 = vmatmul.mubr.f32.gmra.mrb[0].mxu0 %v2753
        %v3914 = vpop.f32.mrb[0].mxu0
        %v3915 = vadd.f32 0.0, %v3914
        %v3916 = vpop.f32.mrb[0].mxu0
        %v3917 = vadd.f32 0.0, %v3916
        %3918 = vmatprep.mubr.f32.mxu0 0.0
        %3919 = vmatmul.mubr.f32.gmra.mrb[0].mxu0 %v2754
        %v3920 = vpop.f32.mrb[0].mxu0
        %v3921 = vadd.f32 0.0, %v3920
        %v3922 = vpop.f32.mrb[0].mxu0
        %v3923 = vadd.f32 0.0, %v3922
        %3924 = vmatprep.mubr.f32.mxu0 0.0
        %3925 = vmatmul.mubr.f32.gmra.mrb[0].mxu0 %v2755
        %v3926 = vpop.f32.mrb[0].mxu0
        %v3927 = vadd.f32 0.0, %v3926
        %v3928 = vpop.f32.mrb[0].mxu0
        %v3929 = vadd.f32 0.0, %v3928
        %3930 = vmatprep.mubr.f32.mxu0 0.0
        %3931 = vmatmul.mubr.f32.gmra.mrb[0].mxu0 %v2756
        %v3932 = vpop.f32.mrb[0].mxu0
        %v3933 = vadd.f32 0.0, %v3932
        %v3934 = vpop.f32.mrb[0].mxu0
        %v3935 = vadd.f32 0.0, %v3934
        %3936 = vmatprep.mubr.f32.mxu0 0.0
        %3937 = vmatmul.mubr.f32.gmra.mrb[0].mxu0 %v2757
        %v3938 = vpop.f32.mrb[0].mxu0
        %v3939 = vadd.f32 0.0, %v3938
        %v3940 = vpop.f32.mrb[0].mxu0
        %v3941 = vadd.f32 0.0, %v3940
        %3942 = vmatprep.mubr.f32.mxu0 0.0
        %3943 = vmatmul.mubr.f32.gmra.mrb[0].mxu0 %v2758
        %v3944 = vpop.f32.mrb[0].mxu0
        %v3945 = vadd.f32 0.0, %v3944
        %v3946 = vpop.f32.mrb[0].mxu0
        %v3947 = vadd.f32 0.0, %v3946
        %3948 = vmatprep.mubr.f32.mxu0 0.0
        %3949 = vmatmul.mubr.f32.gmra.mrb[0].mxu0 %v2759
        %v3950 = vpop.f32.mrb[0].mxu0
        %v3951 = vadd.f32 0.0, %v3950
        %v3952 = vpop.f32.mrb[0].mxu0
        %v3953 = vadd.f32 0.0, %v3952
        %3954 = vmatprep.mubr.f32.mxu0 0.0
        %3955 = vmatmul.mubr.f32.gmra.mrb[0].mxu0 %v2760
        %v3956 = vpop.f32.mrb[0].mxu0
        %v3957 = vadd.f32 0.0, %v3956
        %v3958 = vpop.f32.mrb[0].mxu0
        %v3959 = vadd.f32 0.0, %v3958
        %3960 = vmatprep.mubr.f32.mxu0 0.0
        %3961 = vmatmul.mubr.f32.gmra.mrb[0].mxu0 %v2761
        %v3962 = vpop.f32.mrb[0].mxu0
        %v3963 = vadd.f32 0.0, %v3962
        %v3964 = vpop.f32.mrb[0].mxu0
        %v3965 = vadd.f32 0.0, %v3964
        %3966 = vmatprep.mubr.f32.mxu0 0.0
        %3967 = vmatmul.mubr.f32.gmra.mrb[0].mxu0 %v2762
        %v3968 = vpop.f32.mrb[0].mxu0
        %v3969 = vadd.f32 0.0, %v3968
        %v3970 = vpop.f32.mrb[0].mxu0
        %v3971 = vadd.f32 0.0, %v3970
        %3972 = vmatprep.mubr.f32.mxu0 0.0
        %3973 = vmatmul.mubr.f32.gmra.mrb[0].mxu0 %v2763
        %v3974 = vpop.f32.mrb[0].mxu0
        %v3975 = vadd.f32 0.0, %v3974
        %v3976 = vpop.f32.mrb[0].mxu0
        %v3977 = vadd.f32 0.0, %v3976
        %3978 = vmatprep.mubr.f32.mxu0 0.0
        %3979 = vmatmul.mubr.f32.gmra.mrb[0].mxu0 %v2764
        %v3980 = vpop.f32.mrb[0].mxu0
        %v3981 = vadd.f32 0.0, %v3980
        %v3982 = vpop.f32.mrb[0].mxu0
        %v3983 = vadd.f32 0.0, %v3982
        %3984 = vmatprep.mubr.f32.mxu0 0.0
        %3985 = vmatmul.mubr.f32.gmra.mrb[0].mxu0 %v2765
        %v3986 = vpop.f32.mrb[0].mxu0
        %v3987 = vadd.f32 0.0, %v3986
        %v3988 = vpop.f32.mrb[0].mxu0
        %v3989 = vadd.f32 0.0, %v3988
        %3990 = vmatprep.mubr.f32.mxu0 0.0
        %3991 = vmatmul.mubr.f32.gmra.mrb[0].mxu0 %v2766
        %v3992 = vpop.f32.mrb[0].mxu0
        %v3993 = vadd.f32 0.0, %v3992
        %v3994 = vpop.f32.mrb[0].mxu0
        %v3995 = vadd.f32 0.0, %v3994
        %3996 = vmatprep.mubr.f32.mxu0 0.0
        %3997 = vmatmul.mubr.f32.gmra.mrb[0].mxu0 %v2767
        %v3998 = vpop.f32.mrb[0].mxu0
        %v3999 = vadd.f32 0.0, %v3998
        %v4000 = vpop.f32.mrb[0].mxu0
        %v4001 = vadd.f32 0.0, %v4000
        %4002 = vmatprep.mubr.f32.mxu0 0.0
        %4003 = vmatmul.mubr.f32.gmra.mrb[0].mxu0 %v2768
        %v4004 = vpop.f32.mrb[0].mxu0
        %v4005 = vadd.f32 0.0, %v4004
        %v4006 = vpop.f32.mrb[0].mxu0
        %v4007 = vadd.f32 0.0, %v4006
        %4008 = vmatprep.mubr.f32.mxu0 0.0
        %4009 = vmatmul.mubr.f32.gmra.mrb[0].mxu0 %v2769
        %v4010 = vpop.f32.mrb[0].mxu0
        %v4011 = vadd.f32 0.0, %v4010
        %v4012 = vpop.f32.mrb[0].mxu0
        %v4013 = vadd.f32 0.0, %v4012
        %4014 = vmatprep.mubr.f32.mxu0 0.0
        %4015 = vmatmul.mubr.f32.gmra.mrb[0].mxu0 %v2770
        %v4016 = vpop.f32.mrb[0].mxu0
        %v4017 = vadd.f32 0.0, %v4016
        %v4018 = vpop.f32.mrb[0].mxu0
        %v4019 = vadd.f32 0.0, %v4018
        %4020 = vmatprep.mubr.f32.mxu0 0.0
        %4021 = vmatmul.mubr.f32.gmra.mrb[0].mxu0 %v2771
        %v4022 = vpop.f32.mrb[0].mxu0
        %v4023 = vadd.f32 0.0, %v4022
        %v4024 = vpop.f32.mrb[0].mxu0
        %v4025 = vadd.f32 0.0, %v4024
        %4026 = vmatprep.mubr.f32.mxu0 0.0
        %4027 = vmatmul.mubr.f32.gmra.mrb[0].mxu0 %v2772
        %v4028 = vpop.f32.mrb[0].mxu0
        %v4029 = vadd.f32 0.0, %v4028
        %v4030 = vpop.f32.mrb[0].mxu0
        %v4031 = vadd.f32 0.0, %v4030
        %4032 = vmatprep.mubr.f32.mxu0 0.0
        %4033 = vmatmul.mubr.f32.gmra.mrb[0].mxu0 %v2773
        %v4034 = vpop.f32.mrb[0].mxu0
        %v4035 = vadd.f32 0.0, %v4034
        %v4036 = vpop.f32.mrb[0].mxu0
        %v4037 = vadd.f32 0.0, %v4036
        %4038 = vmatprep.mubr.f32.mxu0 0.0
        %4039 = vmatmul.mubr.f32.gmra.mrb[0].mxu0 %v2774
        %v4040 = vpop.f32.mrb[0].mxu0
        %v4041 = vadd.f32 0.0, %v4040
        %v4042 = vpop.f32.mrb[0].mxu0
        %v4043 = vadd.f32 0.0, %v4042
        %4044 = vmatprep.mubr.f32.mxu0 0.0
        %4045 = vmatmul.mubr.f32.gmra.mrb[0].mxu0 %v2775
        %v4046 = vpop.f32.mrb[0].mxu0
        %v4047 = vadd.f32 0.0, %v4046
        %v4048 = vpop.f32.mrb[0].mxu0
        %v4049 = vadd.f32 0.0, %v4048
        %4050 = vmatprep.mubr.f32.mxu0 0.0
        %4051 = vmatmul.mubr.f32.gmra.mrb[0].mxu0 %v2776
        %v4052 = vpop.f32.mrb[0].mxu0
        %v4053 = vadd.f32 0.0, %v4052
        %v4054 = vpop.f32.mrb[0].mxu0
        %v4055 = vadd.f32 0.0, %v4054
        %4056 = vmatprep.mubr.f32.mxu0 0.0
        %4057 = vmatmul.mubr.f32.gmra.mrb[0].mxu0 %v2777
        %v4058 = vpop.f32.mrb[0].mxu0
        %v4059 = vadd.f32 0.0, %v4058
        %v4060 = vpop.f32.mrb[0].mxu0
        %v4061 = vadd.f32 0.0, %v4060
        %4062 = vmatprep.mubr.f32.mxu0 0.0
        %4063 = vmatmul.mubr.f32.gmra.mrb[0].mxu0 %v2778
        %v4064 = vpop.f32.mrb[0].mxu0
        %v4065 = vadd.f32 0.0, %v4064
        %v4066 = vpop.f32.mrb[0].mxu0
        %v4067 = vadd.f32 0.0, %v4066
        %4068 = vmatprep.mubr.f32.mxu0 0.0
        %4069 = vmatmul.mubr.f32.gmra.mrb[0].mxu0 %v2779
        %v4070 = vpop.f32.mrb[0].mxu0
        %v4071 = vadd.f32 0.0, %v4070
        %v4072 = vpop.f32.mrb[0].mxu0
        %v4073 = vadd.f32 0.0, %v4072
        %4074 = vmatprep.mubr.f32.mxu0 0.0
        %4075 = vmatmul.mubr.f32.gmra.mrb[0].mxu0 %v2780
        %v4076 = vpop.f32.mrb[0].mxu0
        %v4077 = vadd.f32 0.0, %v4076
        %v4078 = vpop.f32.mrb[0].mxu0
        %v4079 = vadd.f32 0.0, %v4078
        %4080 = vmatprep.mubr.f32.mxu0 0.0
        %4081 = vmatmul.mubr.f32.gmra.mrb[0].mxu0 %v2781
        %v4082 = vpop.f32.mrb[0].mxu0
        %v4083 = vadd.f32 0.0, %v4082
        %v4084 = vpop.f32.mrb[0].mxu0
        %v4085 = vadd.f32 0.0, %v4084
        %4086 = vmatprep.mubr.f32.mxu0 0.0
        %4087 = vmatmul.mubr.f32.gmra.mrb[0].mxu0 %v2782
        %v4088 = vpop.f32.mrb[0].mxu0
        %v4089 = vadd.f32 0.0, %v4088
        %v4090 = vpop.f32.mrb[0].mxu0
        %v4091 = vadd.f32 0.0, %v4090
        %4092 = vmatprep.mubr.f32.mxu0 0.0
        %4093 = vmatmul.mubr.f32.gmra.mrb[0].mxu0 %v2783
        %v4094 = vpop.f32.mrb[0].mxu0
        %v4095 = vadd.f32 0.0, %v4094
        %v4096 = vpop.f32.mrb[0].mxu0
        %v4097 = vadd.f32 0.0, %v4096
        %4098 = vmatprep.mubr.f32.mxu0 0.0
        %4099 = vmatmul.mubr.f32.gmra.mrb[0].mxu0 %v2784
        %v4100 = vpop.f32.mrb[0].mxu0
        %v4101 = vadd.f32 0.0, %v4100
        %v4102 = vpop.f32.mrb[0].mxu0
        %v4103 = vadd.f32 0.0, %v4102
        %4104 = vmatprep.mubr.f32.mxu0 0.0
        %4105 = vmatmul.mubr.f32.gmra.mrb[0].mxu0 %v2785
        %v4106 = vpop.f32.mrb[0].mxu0
        %v4107 = vadd.f32 0.0, %v4106
        %v4108 = vpop.f32.mrb[0].mxu0
        %v4109 = vadd.f32 0.0, %v4108
        %4110 = vmatprep.mubr.f32.mxu0 0.0
        %4111 = vmatmul.mubr.f32.gmra.mrb[0].mxu0 %v2786
        %v4112 = vpop.f32.mrb[0].mxu0
        %v4113 = vadd.f32 0.0, %v4112
        %v4114 = vpop.f32.mrb[0].mxu0
        %v4115 = vadd.f32 0.0, %v4114
        %4116 = vmatprep.mubr.f32.mxu0 0.0
        %4117 = vmatmul.mubr.f32.gmra.mrb[0].mxu0 %v2787
        %v4118 = vpop.f32.mrb[0].mxu0
        %v4119 = vadd.f32 0.0, %v4118
        %v4120 = vpop.f32.mrb[0].mxu0
        %v4121 = vadd.f32 0.0, %v4120
        %4122 = vmatprep.mubr.f32.mxu0 0.0
        %4123 = vmatmul.mubr.f32.gmra.mrb[0].mxu0 %v2788
        %v4124 = vpop.f32.mrb[0].mxu0
        %v4125 = vadd.f32 0.0, %v4124
        %v4126 = vpop.f32.mrb[0].mxu0
        %v4127 = vadd.f32 0.0, %v4126
        %4128 = vmatprep.mubr.f32.mxu0 0.0
        %4129 = vmatmul.mubr.f32.gmra.mrb[0].mxu0 %v2789
        %v4130 = vpop.f32.mrb[0].mxu0
        %v4131 = vadd.f32 0.0, %v4130
        %v4132 = vpop.f32.mrb[0].mxu0
        %v4133 = vadd.f32 0.0, %v4132
        %4134 = vmatprep.mubr.f32.mxu0 0.0
        %4135 = vmatmul.mubr.f32.gmra.mrb[0].mxu0 %v2790
        %v4136 = vpop.f32.mrb[0].mxu0
        %v4137 = vadd.f32 0.0, %v4136
        %v4138 = vpop.f32.mrb[0].mxu0
        %v4139 = vadd.f32 0.0, %v4138
        %4140 = vmatprep.mubr.f32.mxu0 0.0
        %4141 = vmatmul.mubr.f32.gmra.mrb[0].mxu0 %v2791
        %v4142 = vpop.f32.mrb[0].mxu0
        %v4143 = vadd.f32 0.0, %v4142
        %v4144 = vpop.f32.mrb[0].mxu0
        %v4145 = vadd.f32 0.0, %v4144
        %4146 = vmatprep.mubr.f32.mxu0 0.0
        %4147 = vmatmul.mubr.f32.gmra.mrb[0].mxu0 %v2792
        %v4148 = vpop.f32.mrb[0].mxu0
        %v4149 = vadd.f32 0.0, %v4148
        %v4150 = vpop.f32.mrb[0].mxu0
        %v4151 = vadd.f32 0.0, %v4150
        %4152 = vmatprep.mubr.f32.mxu0 0.0
        %4153 = vmatmul.mubr.f32.gmra.mrb[0].mxu0 %v2793
        %v4154 = vpop.f32.mrb[0].mxu0
        %v4155 = vadd.f32 0.0, %v4154
        %v4156 = vpop.f32.mrb[0].mxu0
        %v4157 = vadd.f32 0.0, %v4156
        %4158 = vmatprep.mubr.f32.mxu0 0.0
        %4159 = vmatmul.mubr.f32.gmra.mrb[0].mxu0 %v2794
        %v4160 = vpop.f32.mrb[0].mxu0
        %v4161 = vadd.f32 0.0, %v4160
        %v4162 = vpop.f32.mrb[0].mxu0
        %v4163 = vadd.f32 0.0, %v4162
        %4164 = vmatprep.mubr.f32.mxu0 0.0
        %4165 = vmatmul.mubr.f32.gmra.mrb[0].mxu0 %v2795
        %v4166 = vpop.f32.mrb[0].mxu0
        %v4167 = vadd.f32 0.0, %v4166
        %v4168 = vpop.f32.mrb[0].mxu0
        %v4169 = vadd.f32 0.0, %v4168
        %4170 = vmatprep.mubr.f32.mxu0 0.0
        %4171 = vmatmul.mubr.f32.gmra.mrb[0].mxu0 %v2796
        %v4172 = vpop.f32.mrb[0].mxu0
        %v4173 = vadd.f32 0.0, %v4172
        %v4174 = vpop.f32.mrb[0].mxu0
        %v4175 = vadd.f32 0.0, %v4174
        %4176 = vmatprep.mubr.f32.mxu0 0.0
        %4177 = vmatmul.mubr.f32.gmra.mrb[0].mxu0 %v2797
        %v4178 = vpop.f32.mrb[0].mxu0
        %v4179 = vadd.f32 0.0, %v4178
        %v4180 = vpop.f32.mrb[0].mxu0
        %v4181 = vadd.f32 0.0, %v4180
        %4182 = vmatprep.mubr.f32.mxu0 0.0
        %4183 = vmatmul.mubr.f32.gmra.mrb[0].mxu0 %v2798
        %v4184 = vpop.f32.mrb[0].mxu0
        %v4185 = vadd.f32 0.0, %v4184
        %v4186 = vpop.f32.mrb[0].mxu0
        %v4187 = vadd.f32 0.0, %v4186
        %4188 = vmatprep.mubr.f32.mxu0 0.0
        %4189 = vmatmul.mubr.f32.gmra.mrb[0].mxu0 %v2799
        %v4190 = vpop.f32.mrb[0].mxu0
        %v4191 = vadd.f32 0.0, %v4190
        %v4192 = vpop.f32.mrb[0].mxu0
        %v4193 = vadd.f32 0.0, %v4192
        %4194 = vmatprep.mubr.f32.mxu0 0.0
        %4195 = vmatmul.mubr.f32.gmra.mrb[0].mxu0 %v2800
        %v4196 = vpop.f32.mrb[0].mxu0
        %v4197 = vadd.f32 0.0, %v4196
        %v4198 = vpop.f32.mrb[0].mxu0
        %v4199 = vadd.f32 0.0, %v4198
        %4200 = vmatprep.mubr.f32.mxu0 0.0
        %4201 = vmatmul.mubr.f32.gmra.mrb[0].mxu0 %v2801
        %v4202 = vpop.f32.mrb[0].mxu0
        %v4203 = vadd.f32 0.0, %v4202
        %v4204 = vpop.f32.mrb[0].mxu0
        %v4205 = vadd.f32 0.0, %v4204
        %4206 = vmatprep.mubr.f32.mxu0 0.0
        %4207 = vmatmul.mubr.f32.gmra.mrb[0].mxu0 %v2802
        %v4208 = vpop.f32.mrb[0].mxu0
        %v4209 = vadd.f32 0.0, %v4208
        %v4210 = vpop.f32.mrb[0].mxu0
        %v4211 = vadd.f32 0.0, %v4210
        %4212 = vmatprep.mubr.f32.mxu0 0.0
        %4213 = vmatmul.mubr.f32.gmra.mrb[0].mxu0 %v2803
        %v4214 = vpop.f32.mrb[0].mxu0
        %v4215 = vadd.f32 0.0, %v4214
        %v4216 = vpop.f32.mrb[0].mxu0
        %v4217 = vadd.f32 0.0, %v4216
        %4218 = vmatprep.mubr.f32.mxu0 0.0
        %4219 = vmatmul.mubr.f32.gmra.mrb[0].mxu0 %v2804
        %v4220 = vpop.f32.mrb[0].mxu0
        %v4221 = vadd.f32 0.0, %v4220
        %v4222 = vpop.f32.mrb[0].mxu0
        %v4223 = vadd.f32 0.0, %v4222
        %4224 = vmatprep.mubr.f32.mxu0 0.0
        %4225 = vmatmul.mubr.f32.gmra.mrb[0].mxu0 %v2805
        %v4226 = vpop.f32.mrb[0].mxu0
        %v4227 = vadd.f32 0.0, %v4226
        %v4228 = vpop.f32.mrb[0].mxu0
        %v4229 = vadd.f32 0.0, %v4228
        %4230 = vmatprep.mubr.f32.mxu0 0.0
        %4231 = vmatmul.mubr.f32.gmra.mrb[0].mxu0 %v2806
        %v4232 = vpop.f32.mrb[0].mxu0
        %v4233 = vadd.f32 0.0, %v4232
        %v4234 = vpop.f32.mrb[0].mxu0
        %v4235 = vadd.f32 0.0, %v4234
        %4236 = vmatprep.mubr.f32.mxu0 0.0
        %4237 = vmatmul.mubr.f32.gmra.mrb[0].mxu0 %v2807
        %v4238 = vpop.f32.mrb[0].mxu0
        %v4239 = vadd.f32 0.0, %v4238
        %v4240 = vpop.f32.mrb[0].mxu0
        %v4241 = vadd.f32 0.0, %v4240
        %4242 = vmatprep.mubr.f32.mxu0 0.0
        %4243 = vmatmul.mubr.f32.gmra.mrb[0].mxu0 %v2808
        %v4244 = vpop.f32.mrb[0].mxu0
        %v4245 = vadd.f32 0.0, %v4244
        %v4246 = vpop.f32.mrb[0].mxu0
        %v4247 = vadd.f32 0.0, %v4246
        %4248 = vmatprep.mubr.f32.mxu0 0.0
        %4249 = vmatmul.mubr.f32.gmra.mrb[0].mxu0 %v2809
        %v4250 = vpop.f32.mrb[0].mxu0
        %v4251 = vadd.f32 0.0, %v4250
        %v4252 = vpop.f32.mrb[0].mxu0
        %v4253 = vadd.f32 0.0, %v4252
        %4254 = vmatprep.mubr.f32.mxu0 0.0
        %4255 = vmatmul.mubr.f32.gmra.mrb[0].mxu0 %v2810
        %v4256 = vpop.f32.mrb[0].mxu0
        %v4257 = vadd.f32 0.0, %v4256
        %v4258 = vpop.f32.mrb[0].mxu0
        %v4259 = vadd.f32 0.0, %v4258
        %4260 = vmatprep.mubr.f32.mxu0 0.0
        %4261 = vmatmul.mubr.f32.gmra.mrb[0].mxu0 %v2811
        %v4262 = vpop.f32.mrb[0].mxu0
        %v4263 = vadd.f32 0.0, %v4262
        %v4264 = vpop.f32.mrb[0].mxu0
        %v4265 = vadd.f32 0.0, %v4264
        %4266 = vmatprep.mubr.f32.mxu0 0.0
        %4267 = vmatmul.mubr.f32.gmra.mrb[0].mxu0 %v2812
        %v4268 = vpop.f32.mrb[0].mxu0
        %v4269 = vadd.f32 0.0, %v4268
        %v4270 = vpop.f32.mrb[0].mxu0
        %v4271 = vadd.f32 0.0, %v4270
        %4272 = vmatprep.mubr.f32.mxu0 0.0
        %4273 = vmatmul.mubr.f32.gmra.mrb[0].mxu0 %v2813
        %v4274 = vpop.f32.mrb[0].mxu0
        %v4275 = vadd.f32 0.0, %v4274
        %v4276 = vpop.f32.mrb[0].mxu0
        %v4277 = vadd.f32 0.0, %v4276
        %4278 = vmatprep.mubr.f32.mxu0 0.0
        %4279 = vmatmul.mubr.f32.gmra.mrb[0].mxu0 %v2814
        %v4280 = vpop.f32.mrb[0].mxu0
        %v4281 = vadd.f32 0.0, %v4280
        %v4282 = vpop.f32.mrb[0].mxu0
        %v4283 = vadd.f32 0.0, %v4282
        %4284 = vmatprep.mubr.f32.mxu0 0.0
        %4285 = vmatmul.mubr.f32.gmra.mrb[0].mxu0 %v2815
        %v4286 = vpop.f32.mrb[0].mxu0
        %v4287 = vadd.f32 0.0, %v4286
        %v4288 = vpop.f32.mrb[0].mxu0
        %v4289 = vadd.f32 0.0, %v4288
        %4290 = vmatprep.mubr.f32.mxu0 0.0
        %4291 = vmatmul.mubr.f32.gmra.mrb[0].mxu0 %v2816
        %v4292 = vpop.f32.mrb[0].mxu0
        %v4293 = vadd.f32 0.0, %v4292
        %v4294 = vpop.f32.mrb[0].mxu0
        %v4295 = vadd.f32 0.0, %v4294
        %4296 = vmatprep.mubr.f32.mxu0 0.0
        %4297 = vmatmul.mubr.f32.gmra.mrb[0].mxu0 %v2817
        %v4298 = vpop.f32.mrb[0].mxu0
        %v4299 = vadd.f32 0.0, %v4298
        %v4300 = vpop.f32.mrb[0].mxu0
        %v4301 = vadd.f32 0.0, %v4300
        %4302 = vmatprep.mubr.f32.mxu0 0.0
        %4303 = vmatmul.mubr.f32.gmra.mrb[0].mxu0 %v2818
        %v4304 = vpop.f32.mrb[0].mxu0
        %v4305 = vadd.f32 0.0, %v4304
        %v4306 = vpop.f32.mrb[0].mxu0
        %v4307 = vadd.f32 0.0, %v4306
        %4308 = vmatprep.mubr.f32.mxu0 0.0
        %4309 = vmatmul.mubr.f32.gmra.mrb[0].mxu0 %v2819
        %v4310 = vpop.f32.mrb[0].mxu0
        %v4311 = vadd.f32 0.0, %v4310
        %v4312 = vpop.f32.mrb[0].mxu0
        %v4313 = vadd.f32 0.0, %v4312
        %4314 = vmatprep.mubr.f32.mxu0 0.0
        %4315 = vmatmul.mubr.f32.gmra.mrb[0].mxu0 %v2820
        %v4316 = vpop.f32.mrb[0].mxu0
        %v4317 = vadd.f32 0.0, %v4316
        %v4318 = vpop.f32.mrb[0].mxu0
        %v4319 = vadd.f32 0.0, %v4318
        %4320 = vmatprep.mubr.f32.mxu0 0.0
        %4321 = vmatmul.mubr.f32.gmra.mrb[0].mxu0 %v2821
        %v4322 = vpop.f32.mrb[0].mxu0
        %v4323 = vadd.f32 0.0, %v4322
        %v4324 = vpop.f32.mrb[0].mxu0
        %v4325 = vadd.f32 0.0, %v4324
        %4326 = vmatprep.mubr.f32.mxu0 0.0
        %4327 = vmatmul.mubr.f32.gmra.mrb[0].mxu0 %v2822
        %v4328 = vpop.f32.mrb[0].mxu0
        %v4329 = vadd.f32 0.0, %v4328
        %v4330 = vpop.f32.mrb[0].mxu0
        %v4331 = vadd.f32 0.0, %v4330
        %4332 = vmatprep.mubr.f32.mxu0 0.0
        %4333 = vmatmul.mubr.f32.gmra.mrb[0].mxu0 %v2823
        %v4334 = vpop.f32.mrb[0].mxu0
        %v4335 = vadd.f32 0.0, %v4334
        %v4336 = vpop.f32.mrb[0].mxu0
        %v4337 = vadd.f32 0.0, %v4336
        %4338 = vmatprep.mubr.f32.mxu0 0.0
        %4339 = vmatmul.mubr.f32.gmra.mrb[0].mxu0 %v2824
        %v4340 = vpop.f32.mrb[0].mxu0
        %v4341 = vadd.f32 0.0, %v4340
        %v4342 = vpop.f32.mrb[0].mxu0
        %v4343 = vadd.f32 0.0, %v4342
        %4344 = vmatprep.mubr.f32.mxu0 0.0
        %4345 = vmatmul.mubr.f32.gmra.mrb[0].mxu0 %v2825
        %v4346 = vpop.f32.mrb[0].mxu0
        %v4347 = vadd.f32 0.0, %v4346
        %v4348 = vpop.f32.mrb[0].mxu0
        %v4349 = vadd.f32 0.0, %v4348
        %4350 = vmatprep.mubr.f32.mxu0 0.0
        %4351 = vmatmul.mubr.f32.gmra.mrb[0].mxu0 %v2826
        %v4352 = vpop.f32.mrb[0].mxu0
        %v4353 = vadd.f32 0.0, %v4352
        %v4354 = vpop.f32.mrb[0].mxu0
        %v4355 = vadd.f32 0.0, %v4354
        %4356 = vmatprep.mubr.f32.mxu0 0.0
        %4357 = vmatmul.mubr.f32.gmra.mrb[0].mxu0 %v2827
        %v4358 = vpop.f32.mrb[0].mxu0
        %v4359 = vadd.f32 0.0, %v4358
        %v4360 = vpop.f32.mrb[0].mxu0
        %v4361 = vadd.f32 0.0, %v4360
        %4362 = vmatprep.mubr.f32.mxu0 0.0
        %4363 = vmatmul.mubr.f32.gmra.mrb[0].mxu0 %v2828
        %v4364 = vpop.f32.mrb[0].mxu0
        %v4365 = vadd.f32 0.0, %v4364
        %v4366 = vpop.f32.mrb[0].mxu0
        %v4367 = vadd.f32 0.0, %v4366
        %4368 = vmatprep.mubr.f32.mxu0 0.0
        %4369 = vmatmul.mubr.f32.gmra.mrb[0].mxu0 %v2829
        %v4370 = vpop.f32.mrb[0].mxu0
        %v4371 = vadd.f32 0.0, %v4370
        %v4372 = vpop.f32.mrb[0].mxu0
        %v4373 = vadd.f32 0.0, %v4372
        %4374 = vmatprep.mubr.f32.mxu0 0.0
        %4375 = vmatmul.mubr.f32.gmra.mrb[0].mxu0 %v2830
        %v4376 = vpop.f32.mrb[0].mxu0
        %v4377 = vadd.f32 0.0, %v4376
        %v4378 = vpop.f32.mrb[0].mxu0
        %v4379 = vadd.f32 0.0, %v4378
        %4380 = vmatprep.mubr.f32.mxu0 0.0
        %4381 = vmatmul.mubr.f32.gmra.mrb[0].mxu0 %v2831
        %v4382 = vpop.f32.mrb[0].mxu0
        %v4383 = vadd.f32 0.0, %v4382
        %v4384 = vpop.f32.mrb[0].mxu0
        %v4385 = vadd.f32 0.0, %v4384
        %4386 = vmatprep.mubr.f32.mxu0 0.0
        %4387 = vmatmul.mubr.f32.gmra.mrb[0].mxu0 %v2832
        %v4388 = vpop.f32.mrb[0].mxu0
        %v4389 = vadd.f32 0.0, %v4388
        %v4390 = vpop.f32.mrb[0].mxu0
        %v4391 = vadd.f32 0.0, %v4390
        %4392 = vmatprep.mubr.f32.mxu0 0.0
        %4393 = vmatmul.mubr.f32.gmra.mrb[0].mxu0 %v2833
        %v4394 = vpop.f32.mrb[0].mxu0
        %v4395 = vadd.f32 0.0, %v4394
        %v4396 = vpop.f32.mrb[0].mxu0
        %v4397 = vadd.f32 0.0, %v4396
        %4398 = vmatprep.mubr.f32.mxu0 0.0
        %4399 = vmatmul.mubr.f32.gmra.mrb[0].mxu0 %v2834
        %v4400 = vpop.f32.mrb[0].mxu0
        %v4401 = vadd.f32 0.0, %v4400
        %v4402 = vpop.f32.mrb[0].mxu0
        %v4403 = vadd.f32 0.0, %v4402
        %4404 = vmatprep.mubr.f32.mxu0 0.0
        %4405 = vmatmul.mubr.f32.gmra.mrb[0].mxu0 %v2835
        %v4406 = vpop.f32.mrb[0].mxu0
        %v4407 = vadd.f32 0.0, %v4406
        %v4408 = vpop.f32.mrb[0].mxu0
        %v4409 = vadd.f32 0.0, %v4408
        %4410 = vmatprep.mubr.f32.mxu0 0.0
        %4411 = vmatmul.mubr.f32.gmra.mrb[0].mxu0 %v2836
        %v4412 = vpop.f32.mrb[0].mxu0
        %v4413 = vadd.f32 0.0, %v4412
        %v4414 = vpop.f32.mrb[0].mxu0
        %v4415 = vadd.f32 0.0, %v4414
        %4416 = vmatprep.mubr.f32.mxu0 0.0
        %4417 = vmatmul.mubr.f32.gmra.mrb[0].mxu0 %v2837
        %v4418 = vpop.f32.mrb[0].mxu0
        %v4419 = vadd.f32 0.0, %v4418
        %v4420 = vpop.f32.mrb[0].mxu0
        %v4421 = vadd.f32 0.0, %v4420
        %4422 = vmatprep.mubr.f32.mxu0 0.0
        %4423 = vmatmul.mubr.f32.gmra.mrb[0].mxu0 %v2838
        %v4424 = vpop.f32.mrb[0].mxu0
        %v4425 = vadd.f32 0.0, %v4424
        %v4426 = vpop.f32.mrb[0].mxu0
        %v4427 = vadd.f32 0.0, %v4426
        %4428 = vmatprep.mubr.f32.mxu0 0.0
        %4429 = vmatmul.mubr.f32.gmra.mrb[0].mxu0 %v2839
        %v4430 = vpop.f32.mrb[0].mxu0
        %v4431 = vadd.f32 0.0, %v4430
        %v4432 = vpop.f32.mrb[0].mxu0
        %v4433 = vadd.f32 0.0, %v4432
        %4434 = vmatprep.mubr.f32.mxu0 0.0
        %4435 = vmatmul.mubr.f32.gmra.mrb[0].mxu0 %v2840
        %v4436 = vpop.f32.mrb[0].mxu0
        %v4437 = vadd.f32 0.0, %v4436
        %v4438 = vpop.f32.mrb[0].mxu0
        %v4439 = vadd.f32 0.0, %v4438
        %4440 = vmatprep.mubr.f32.mxu0 0.0
        %4441 = vmatmul.mubr.f32.gmra.mrb[0].mxu0 %v2841
        %v4442 = vpop.f32.mrb[0].mxu0
        %v4443 = vadd.f32 0.0, %v4442
        %v4444 = vpop.f32.mrb[0].mxu0
        %v4445 = vadd.f32 0.0, %v4444
        %4446 = vmatprep.mubr.f32.mxu0 0.0
        %4447 = vmatmul.mubr.f32.gmra.mrb[0].mxu0 %v2842
        %v4448 = vpop.f32.mrb[0].mxu0
        %v4449 = vadd.f32 0.0, %v4448
        %v4450 = vpop.f32.mrb[0].mxu0
        %v4451 = vadd.f32 0.0, %v4450
        %4452 = vmatprep.mubr.f32.mxu0 0.0
        %4453 = vmatmul.mubr.f32.gmra.mrb[0].mxu0 %v2843
        %v4454 = vpop.f32.mrb[0].mxu0
        %v4455 = vadd.f32 0.0, %v4454
        %v4456 = vpop.f32.mrb[0].mxu0
        %v4457 = vadd.f32 0.0, %v4456
        %4458 = vmatprep.mubr.f32.mxu0 0.0
        %4459 = vmatmul.mubr.f32.gmra.mrb[0].mxu0 %v2844
        %v4460 = vpop.f32.mrb[0].mxu0
        %v4461 = vadd.f32 0.0, %v4460
        %v4462 = vpop.f32.mrb[0].mxu0
        %v4463 = vadd.f32 0.0, %v4462
        %4464 = vmatprep.mubr.f32.mxu0 0.0
        %4465 = vmatmul.mubr.f32.gmra.mrb[0].mxu0 %v2845
        %v4466 = vpop.f32.mrb[0].mxu0
        %v4467 = vadd.f32 0.0, %v4466
        %v4468 = vpop.f32.mrb[0].mxu0
        %v4469 = vadd.f32 0.0, %v4468
        %4470 = vmatprep.mubr.f32.mxu0 0.0
        %4471 = vmatmul.mubr.f32.gmra.mrb[0].mxu0 %v2846
        %v4472 = vpop.f32.mrb[0].mxu0
        %v4473 = vadd.f32 0.0, %v4472
        %v4474 = vpop.f32.mrb[0].mxu0
        %v4475 = vadd.f32 0.0, %v4474
        %4476 = vmatprep.mubr.f32.mxu0 0.0
        %4477 = vmatmul.mubr.f32.gmra.mrb[0].mxu0 %v2847
        %v4478 = vpop.f32.mrb[0].mxu0
        %v4479 = vadd.f32 0.0, %v4478
        %v4480 = vpop.f32.mrb[0].mxu0
        %v4481 = vadd.f32 0.0, %v4480
        %4482 = vmatprep.mubr.f32.mxu0 0.0
        %4483 = vmatmul.mubr.f32.gmra.mrb[0].mxu0 %v2848
        %v4484 = vpop.f32.mrb[0].mxu0
        %v4485 = vadd.f32 0.0, %v4484
        %v4486 = vpop.f32.mrb[0].mxu0
        %v4487 = vadd.f32 0.0, %v4486
        %4488 = vmatprep.mubr.f32.mxu0 0.0
        %4489 = vmatmul.mubr.f32.gmra.mrb[0].mxu0 %v2849
        %v4490 = vpop.f32.mrb[0].mxu0
        %v4491 = vadd.f32 0.0, %v4490
        %v4492 = vpop.f32.mrb[0].mxu0
        %v4493 = vadd.f32 0.0, %v4492
        %4494 = vmatprep.mubr.f32.mxu0 0.0
        %4495 = vmatmul.mubr.f32.gmra.mrb[0].mxu0 %v2850
        %v4496 = vpop.f32.mrb[0].mxu0
        %v4497 = vadd.f32 0.0, %v4496
        %v4498 = vpop.f32.mrb[0].mxu0
        %v4499 = vadd.f32 0.0, %v4498
        %4500 = vmatprep.mubr.f32.mxu0 0.0
        %4501 = vmatmul.mubr.f32.gmra.mrb[0].mxu0 %v2851
        %v4502 = vpop.f32.mrb[0].mxu0
        %v4503 = vadd.f32 0.0, %v4502
        %v4504 = vpop.f32.mrb[0].mxu0
        %v4505 = vadd.f32 0.0, %v4504
        %4506 = vmatprep.mubr.f32.mxu0 0.0
        %4507 = vmatmul.mubr.f32.gmra.mrb[0].mxu0 %v2852
        %v4508 = vpop.f32.mrb[0].mxu0
        %v4509 = vadd.f32 0.0, %v4508
        %v4510 = vpop.f32.mrb[0].mxu0
        %v4511 = vadd.f32 0.0, %v4510
        %4512 = vmatprep.mubr.f32.mxu0 0.0
        %4513 = vmatmul.mubr.f32.gmra.mrb[0].mxu0 %v2853
        %v4514 = vpop.f32.mrb[0].mxu0
        %v4515 = vadd.f32 0.0, %v4514
        %v4516 = vpop.f32.mrb[0].mxu0
        %v4517 = vadd.f32 0.0, %v4516
        %4518 = vmatprep.mubr.f32.mxu0 0.0
        %4519 = vmatmul.mubr.f32.gmra.mrb[0].mxu0 %v2854
        %v4520 = vpop.f32.mrb[0].mxu0
        %v4521 = vadd.f32 0.0, %v4520
        %v4522 = vpop.f32.mrb[0].mxu0
        %v4523 = vadd.f32 0.0, %v4522
        %4524 = vmatprep.mubr.f32.mxu0 0.0
        %4525 = vmatmul.mubr.f32.gmra.mrb[0].mxu0 %v2855
        %v4526 = vpop.f32.mrb[0].mxu0
        %v4527 = vadd.f32 0.0, %v4526
        %v4528 = vpop.f32.mrb[0].mxu0
        %v4529 = vadd.f32 0.0, %v4528
        %4530 = vmatprep.mubr.f32.mxu0 0.0
        %4531 = vmatmul.mubr.f32.gmra.mrb[0].mxu0 %v2856
        %v4532 = vpop.f32.mrb[0].mxu0
        %v4533 = vadd.f32 0.0, %v4532
        %v4534 = vpop.f32.mrb[0].mxu0
        %v4535 = vadd.f32 0.0, %v4534
        %4536 = vmatprep.mubr.f32.mxu0 0.0
        %4537 = vmatmul.mubr.f32.gmra.mrb[0].mxu0 %v2857
        %v4538 = vpop.f32.mrb[0].mxu0
        %v4539 = vadd.f32 0.0, %v4538
        %v4540 = vpop.f32.mrb[0].mxu0
        %v4541 = vadd.f32 0.0, %v4540
        %4542 = vmatprep.mubr.f32.mxu0 0.0
        %4543 = vmatmul.mubr.f32.gmra.mrb[0].mxu0 %v2858
        %v4544 = vpop.f32.mrb[0].mxu0
        %v4545 = vadd.f32 0.0, %v4544
        %v4546 = vpop.f32.mrb[0].mxu0
        %v4547 = vadd.f32 0.0, %v4546
        %4548 = vmatprep.mubr.f32.mxu0 0.0
        %4549 = vmatmul.mubr.f32.gmra.mrb[0].mxu0 %v2859
        %v4550 = vpop.f32.mrb[0].mxu0
        %v4551 = vadd.f32 0.0, %v4550
        %v4552 = vpop.f32.mrb[0].mxu0
        %v4553 = vadd.f32 0.0, %v4552
        %4554 = vmatprep.mubr.f32.mxu0 0.0
        %4555 = vmatmul.mubr.f32.gmra.mrb[0].mxu0 %v2860
        %v4556 = vpop.f32.mrb[0].mxu0
        %v4557 = vadd.f32 0.0, %v4556
        %v4558 = vpop.f32.mrb[0].mxu0
        %v4559 = vadd.f32 0.0, %v4558
        %4560 = vmatprep.mubr.f32.mxu0 0.0
        %4561 = vmatmul.mubr.f32.gmra.mrb[0].mxu0 %v2861
        %v4562 = vpop.f32.mrb[0].mxu0
        %v4563 = vadd.f32 0.0, %v4562
        %v4564 = vpop.f32.mrb[0].mxu0
        %v4565 = vadd.f32 0.0, %v4564
        %4566 = vmatprep.mubr.f32.mxu0 0.0
        %4567 = vmatmul.mubr.f32.gmra.mrb[0].mxu0 %v2862
        %v4568 = vpop.f32.mrb[0].mxu0
        %v4569 = vadd.f32 0.0, %v4568
        %v4570 = vpop.f32.mrb[0].mxu0
        %v4571 = vadd.f32 0.0, %v4570
        %4572 = vmatprep.mubr.f32.mxu0 0.0
        %4573 = vmatmul.mubr.f32.gmra.mrb[0].mxu0 %v2863
        %v4574 = vpop.f32.mrb[0].mxu0
        %v4575 = vadd.f32 0.0, %v4574
        %v4576 = vpop.f32.mrb[0].mxu0
        %v4577 = vadd.f32 0.0, %v4576
        %4578 = vmatprep.mubr.f32.mxu0 0.0
        %4579 = vmatmul.mubr.f32.gmra.mrb[0].mxu0 %v2864
        %v4580 = vpop.f32.mrb[0].mxu0
        %v4581 = vadd.f32 0.0, %v4580
        %v4582 = vpop.f32.mrb[0].mxu0
        %v4583 = vadd.f32 0.0, %v4582
        %4584 = vmatprep.mubr.f32.mxu0 0.0
        %4585 = vmatmul.mubr.f32.gmra.mrb[0].mxu0 %v2865
        %v4586 = vpop.f32.mrb[0].mxu0
        %v4587 = vadd.f32 0.0, %v4586
        %v4588 = vpop.f32.mrb[0].mxu0
        %v4589 = vadd.f32 0.0, %v4588
        %4590 = vmatprep.mubr.f32.mxu0 0.0
        %4591 = vmatmul.mubr.f32.gmra.mrb[0].mxu0 %v2866
        %v4592 = vpop.f32.mrb[0].mxu0
        %v4593 = vadd.f32 0.0, %v4592
        %v4594 = vpop.f32.mrb[0].mxu0
        %v4595 = vadd.f32 0.0, %v4594
        %4596 = vdwg.mxu0
        %v4597 = vmax.f32 %v2998, %v3004
        %v4598 = vmax.f32 %v4597, %v3010
        %v4599 = vmax.f32 %v4598, %v3016
        %v4600 = vmax.f32 %v4599, %v3022
        %v4601 = vmax.f32 %v4600, %v3028
        %v4602 = vmax.f32 %v4601, %v3034
        %v4603 = vmax.f32 %v4602, %v3040
        %v4604 = vmax.f32 %v4603, %v3046
        %v4605 = vmax.f32 %v4604, %v3052
        %v4606 = vmax.f32 %v4605, %v3058
        %v4607 = vmax.f32 %v4606, %v3064
        %v4608 = vmax.f32 %v4607, %v3070
        %v4609 = vmax.f32 %v4608, %v3076
        %v4610 = vmax.f32 %v4609, %v3082
        %v4611 = vmax.f32 %v4610, %v3088
        %v4612 = vrot.slane %v4611, 4
        %v4613 = vmax.f32 %v4611, %v4612
        %v4614 = vrot.slane %v4613, 2
        %v4615 = vmax.f32 %v4613, %v4614
        %v4616 = vrot.slane %v4615, 1
        %v4617 = vmax.f32 %v4615, %v4616
        %v4618 = vmax.f32 %v3000, %v3006
        %v4619 = vmax.f32 %v4618, %v3012
        %v4620 = vmax.f32 %v4619, %v3018
        %v4621 = vmax.f32 %v4620, %v3024
        %v4622 = vmax.f32 %v4621, %v3030
        %v4623 = vmax.f32 %v4622, %v3036
        %v4624 = vmax.f32 %v4623, %v3042
        %v4625 = vmax.f32 %v4624, %v3048
        %v4626 = vmax.f32 %v4625, %v3054
        %v4627 = vmax.f32 %v4626, %v3060
        %v4628 = vmax.f32 %v4627, %v3066
        %v4629 = vmax.f32 %v4628, %v3072
        %v4630 = vmax.f32 %v4629, %v3078
        %v4631 = vmax.f32 %v4630, %v3084
        %v4632 = vmax.f32 %v4631, %v3090
        %v4633 = vrot.slane %v4632, 4
        %v4634 = vmax.f32 %v4632, %v4633
        %v4635 = vrot.slane %v4634, 2
        %v4636 = vmax.f32 %v4634, %v4635
        %v4637 = vrot.slane %v4636, 1
        %v4638 = vmax.f32 %v4636, %v4637
        %v4639 = vmax.f32 %v3831, %v3837
        %v4640 = vmax.f32 %v4639, %v3843
        %v4641 = vmax.f32 %v4640, %v3849
        %v4642 = vmax.f32 %v4641, %v3855
        %v4643 = vmax.f32 %v4642, %v3861
        %v4644 = vmax.f32 %v4643, %v3867
        %v4645 = vmax.f32 %v4644, %v3873
        %v4646 = vmax.f32 %v4645, %v3879
        %v4647 = vmax.f32 %v4646, %v3885
        %v4648 = vmax.f32 %v4647, %v3891
        %v4649 = vmax.f32 %v4648, %v3897
        %v4650 = vmax.f32 %v4649, %v3903
        %v4651 = vmax.f32 %v4650, %v3909
        %v4652 = vmax.f32 %v4651, %v3915
        %v4653 = vmax.f32 %v4652, %v3921
        %v4654 = vrot.slane %v4653, 4
        %v4655 = vmax.f32 %v4653, %v4654
        %v4656 = vrot.slane %v4655, 2
        %v4657 = vmax.f32 %v4655, %v4656
        %v4658 = vrot.slane %v4657, 1
        %v4659 = vmax.f32 %v4657, %v4658
        %v4660 = vmax.f32 %v3833, %v3839
        %v4661 = vmax.f32 %v4660, %v3845
        %v4662 = vmax.f32 %v4661, %v3851
        %v4663 = vmax.f32 %v4662, %v3857
        %v4664 = vmax.f32 %v4663, %v3863
        %v4665 = vmax.f32 %v4664, %v3869
        %v4666 = vmax.f32 %v4665, %v3875
        %v4667 = vmax.f32 %v4666, %v3881
        %v4668 = vmax.f32 %v4667, %v3887
        %v4669 = vmax.f32 %v4668, %v3893
        %v4670 = vmax.f32 %v4669, %v3899
        %v4671 = vmax.f32 %v4670, %v3905
        %v4672 = vmax.f32 %v4671, %v3911
        %v4673 = vmax.f32 %v4672, %v3917
        %v4674 = vmax.f32 %v4673, %v3923
        %v4675 = vrot.slane %v4674, 4
        %v4676 = vmax.f32 %v4674, %v4675
        %v4677 = vrot.slane %v4676, 2
        %v4678 = vmax.f32 %v4676, %v4677
        %v4679 = vrot.slane %v4678, 1
        %v4680 = vmax.f32 %v4678, %v4679
        %v4681 = vmax.f32 %v3094, %v3100
        %v4682 = vmax.f32 %v4681, %v3106
        %v4683 = vmax.f32 %v4682, %v3112
        %v4684 = vmax.f32 %v4683, %v3118
        %v4685 = vmax.f32 %v4684, %v3124
        %v4686 = vmax.f32 %v4685, %v3130
        %v4687 = vmax.f32 %v4686, %v3136
        %v4688 = vmax.f32 %v4687, %v3142
        %v4689 = vmax.f32 %v4688, %v3148
        %v4690 = vmax.f32 %v4689, %v3154
        %v4691 = vmax.f32 %v4690, %v3160
        %v4692 = vmax.f32 %v4691, %v3166
        %v4693 = vmax.f32 %v4692, %v3172
        %v4694 = vmax.f32 %v4693, %v3178
        %v4695 = vmax.f32 %v4694, %v3184
        %v4696 = vrot.slane %v4695, 4
        %v4697 = vmax.f32 %v4695, %v4696
        %v4698 = vrot.slane %v4697, 2
        %v4699 = vmax.f32 %v4697, %v4698
        %v4700 = vrot.slane %v4699, 1
        %v4701 = vmax.f32 %v4699, %v4700
        %v4702 = vmax.f32 %v3096, %v3102
        %v4703 = vmax.f32 %v4702, %v3108
        %v4704 = vmax.f32 %v4703, %v3114
        %v4705 = vmax.f32 %v4704, %v3120
        %v4706 = vmax.f32 %v4705, %v3126
        %v4707 = vmax.f32 %v4706, %v3132
        %v4708 = vmax.f32 %v4707, %v3138
        %v4709 = vmax.f32 %v4708, %v3144
        %v4710 = vmax.f32 %v4709, %v3150
        %v4711 = vmax.f32 %v4710, %v3156
        %v4712 = vmax.f32 %v4711, %v3162
        %v4713 = vmax.f32 %v4712, %v3168
        %v4714 = vmax.f32 %v4713, %v3174
        %v4715 = vmax.f32 %v4714, %v3180
        %v4716 = vmax.f32 %v4715, %v3186
        %v4717 = vrot.slane %v4716, 4
        %v4718 = vmax.f32 %v4716, %v4717
        %v4719 = vrot.slane %v4718, 2
        %v4720 = vmax.f32 %v4718, %v4719
        %v4721 = vrot.slane %v4720, 1
        %v4722 = vmax.f32 %v4720, %v4721
        %v4723 = vmax.f32 %v3927, %v3933
        %v4724 = vmax.f32 %v4723, %v3939
        %v4725 = vmax.f32 %v4724, %v3945
        %v4726 = vmax.f32 %v4725, %v3951
        %v4727 = vmax.f32 %v4726, %v3957
        %v4728 = vmax.f32 %v4727, %v3963
        %v4729 = vmax.f32 %v4728, %v3969
        %v4730 = vmax.f32 %v4729, %v3975
        %v4731 = vmax.f32 %v4730, %v3981
        %v4732 = vmax.f32 %v4731, %v3987
        %v4733 = vmax.f32 %v4732, %v3993
        %v4734 = vmax.f32 %v4733, %v3999
        %v4735 = vmax.f32 %v4734, %v4005
        %v4736 = vmax.f32 %v4735, %v4011
        %v4737 = vmax.f32 %v4736, %v4017
        %v4738 = vrot.slane %v4737, 4
        %v4739 = vmax.f32 %v4737, %v4738
        %v4740 = vrot.slane %v4739, 2
        %v4741 = vmax.f32 %v4739, %v4740
        %v4742 = vrot.slane %v4741, 1
        %v4743 = vmax.f32 %v4741, %v4742
        %v4744 = vmax.f32 %v3929, %v3935
        %v4745 = vmax.f32 %v4744, %v3941
        %v4746 = vmax.f32 %v4745, %v3947
        %v4747 = vmax.f32 %v4746, %v3953
        %v4748 = vmax.f32 %v4747, %v3959
        %v4749 = vmax.f32 %v4748, %v3965
        %v4750 = vmax.f32 %v4749, %v3971
        %v4751 = vmax.f32 %v4750, %v3977
        %v4752 = vmax.f32 %v4751, %v3983
        %v4753 = vmax.f32 %v4752, %v3989
        %v4754 = vmax.f32 %v4753, %v3995
        %v4755 = vmax.f32 %v4754, %v4001
        %v4756 = vmax.f32 %v4755, %v4007
        %v4757 = vmax.f32 %v4756, %v4013
        %v4758 = vmax.f32 %v4757, %v4019
        %v4759 = vrot.slane %v4758, 4
        %v4760 = vmax.f32 %v4758, %v4759
        %v4761 = vrot.slane %v4760, 2
        %v4762 = vmax.f32 %v4760, %v4761
        %v4763 = vrot.slane %v4762, 1
        %v4764 = vmax.f32 %v4762, %v4763
        %v4765 = vmax.f32 %v3190, %v3196
        %v4766 = vmax.f32 %v4765, %v3202
        %v4767 = vmax.f32 %v4766, %v3208
        %v4768 = vmax.f32 %v4767, %v3214
        %v4769 = vmax.f32 %v4768, %v3220
        %v4770 = vmax.f32 %v4769, %v3226
        %v4771 = vmax.f32 %v4770, %v3232
        %v4772 = vmax.f32 %v4771, %v3238
        %v4773 = vmax.f32 %v4772, %v3244
        %v4774 = vmax.f32 %v4773, %v3250
        %v4775 = vmax.f32 %v4774, %v3256
        %v4776 = vmax.f32 %v4775, %v3262
        %v4777 = vmax.f32 %v4776, %v3268
        %v4778 = vmax.f32 %v4777, %v3274
        %v4779 = vmax.f32 %v4778, %v3280
        %v4780 = vrot.slane %v4779, 4
        %v4781 = vmax.f32 %v4779, %v4780
        %v4782 = vrot.slane %v4781, 2
        %v4783 = vmax.f32 %v4781, %v4782
        %v4784 = vrot.slane %v4783, 1
        %v4785 = vmax.f32 %v4783, %v4784
        %v4786 = vmax.f32 %v3192, %v3198
        %v4787 = vmax.f32 %v4786, %v3204
        %v4788 = vmax.f32 %v4787, %v3210
        %v4789 = vmax.f32 %v4788, %v3216
        %v4790 = vmax.f32 %v4789, %v3222
        %v4791 = vmax.f32 %v4790, %v3228
        %v4792 = vmax.f32 %v4791, %v3234
        %v4793 = vmax.f32 %v4792, %v3240
        %v4794 = vmax.f32 %v4793, %v3246
        %v4795 = vmax.f32 %v4794, %v3252
        %v4796 = vmax.f32 %v4795, %v3258
        %v4797 = vmax.f32 %v4796, %v3264
        %v4798 = vmax.f32 %v4797, %v3270
        %v4799 = vmax.f32 %v4798, %v3276
        %v4800 = vmax.f32 %v4799, %v3282
        %v4801 = vrot.slane %v4800, 4
        %v4802 = vmax.f32 %v4800, %v4801
        %v4803 = vrot.slane %v4802, 2
        %v4804 = vmax.f32 %v4802, %v4803
        %v4805 = vrot.slane %v4804, 1
        %v4806 = vmax.f32 %v4804, %v4805
        %v4807 = vmax.f32 %v4023, %v4029
        %v4808 = vmax.f32 %v4807, %v4035
        %v4809 = vmax.f32 %v4808, %v4041
        %v4810 = vmax.f32 %v4809, %v4047
        %v4811 = vmax.f32 %v4810, %v4053
        %v4812 = vmax.f32 %v4811, %v4059
        %v4813 = vmax.f32 %v4812, %v4065
        %v4814 = vmax.f32 %v4813, %v4071
        %v4815 = vmax.f32 %v4814, %v4077
        %v4816 = vmax.f32 %v4815, %v4083
        %v4817 = vmax.f32 %v4816, %v4089
        %v4818 = vmax.f32 %v4817, %v4095
        %v4819 = vmax.f32 %v4818, %v4101
        %v4820 = vmax.f32 %v4819, %v4107
        %v4821 = vmax.f32 %v4820, %v4113
        %v4822 = vrot.slane %v4821, 4
        %v4823 = vmax.f32 %v4821, %v4822
        %v4824 = vrot.slane %v4823, 2
        %v4825 = vmax.f32 %v4823, %v4824
        %v4826 = vrot.slane %v4825, 1
        %v4827 = vmax.f32 %v4825, %v4826
        %v4828 = vmax.f32 %v4025, %v4031
        %v4829 = vmax.f32 %v4828, %v4037
        %v4830 = vmax.f32 %v4829, %v4043
        %v4831 = vmax.f32 %v4830, %v4049
        %v4832 = vmax.f32 %v4831, %v4055
        %v4833 = vmax.f32 %v4832, %v4061
        %v4834 = vmax.f32 %v4833, %v4067
        %v4835 = vmax.f32 %v4834, %v4073
        %v4836 = vmax.f32 %v4835, %v4079
        %v4837 = vmax.f32 %v4836, %v4085
        %v4838 = vmax.f32 %v4837, %v4091
        %v4839 = vmax.f32 %v4838, %v4097
        %v4840 = vmax.f32 %v4839, %v4103
        %v4841 = vmax.f32 %v4840, %v4109
        %v4842 = vmax.f32 %v4841, %v4115
        %v4843 = vrot.slane %v4842, 4
        %v4844 = vmax.f32 %v4842, %v4843
        %v4845 = vrot.slane %v4844, 2
        %v4846 = vmax.f32 %v4844, %v4845
        %v4847 = vrot.slane %v4846, 1
        %v4848 = vmax.f32 %v4846, %v4847
        %v4849 = vmax.f32 %v3286, %v3292
        %v4850 = vmax.f32 %v4849, %v3298
        %v4851 = vmax.f32 %v4850, %v3304
        %v4852 = vmax.f32 %v4851, %v3310
        %v4853 = vmax.f32 %v4852, %v3316
        %v4854 = vmax.f32 %v4853, %v3322
        %v4855 = vmax.f32 %v4854, %v3328
        %v4856 = vmax.f32 %v4855, %v3334
        %v4857 = vmax.f32 %v4856, %v3340
        %v4858 = vmax.f32 %v4857, %v3346
        %v4859 = vmax.f32 %v4858, %v3352
        %v4860 = vmax.f32 %v4859, %v3358
        %v4861 = vmax.f32 %v4860, %v3364
        %v4862 = vmax.f32 %v4861, %v3370
        %v4863 = vmax.f32 %v4862, %v3376
        %v4864 = vrot.slane %v4863, 4
        %v4865 = vmax.f32 %v4863, %v4864
        %v4866 = vrot.slane %v4865, 2
        %v4867 = vmax.f32 %v4865, %v4866
        %v4868 = vrot.slane %v4867, 1
        %v4869 = vmax.f32 %v4867, %v4868
        %v4870 = vmax.f32 %v3288, %v3294
        %v4871 = vmax.f32 %v4870, %v3300
        %v4872 = vmax.f32 %v4871, %v3306
        %v4873 = vmax.f32 %v4872, %v3312
        %v4874 = vmax.f32 %v4873, %v3318
        %v4875 = vmax.f32 %v4874, %v3324
        %v4876 = vmax.f32 %v4875, %v3330
        %v4877 = vmax.f32 %v4876, %v3336
        %v4878 = vmax.f32 %v4877, %v3342
        %v4879 = vmax.f32 %v4878, %v3348
        %v4880 = vmax.f32 %v4879, %v3354
        %v4881 = vmax.f32 %v4880, %v3360
        %v4882 = vmax.f32 %v4881, %v3366
        %v4883 = vmax.f32 %v4882, %v3372
        %v4884 = vmax.f32 %v4883, %v3378
        %v4885 = vrot.slane %v4884, 4
        %v4886 = vmax.f32 %v4884, %v4885
        %v4887 = vrot.slane %v4886, 2
        %v4888 = vmax.f32 %v4886, %v4887
        %v4889 = vrot.slane %v4888, 1
        %v4890 = vmax.f32 %v4888, %v4889
        %v4891 = vmax.f32 %v4119, %v4125
        %v4892 = vmax.f32 %v4891, %v4131
        %v4893 = vmax.f32 %v4892, %v4137
        %v4894 = vmax.f32 %v4893, %v4143
        %v4895 = vmax.f32 %v4894, %v4149
        %v4896 = vmax.f32 %v4895, %v4155
        %v4897 = vmax.f32 %v4896, %v4161
        %v4898 = vmax.f32 %v4897, %v4167
        %v4899 = vmax.f32 %v4898, %v4173
        %v4900 = vmax.f32 %v4899, %v4179
        %v4901 = vmax.f32 %v4900, %v4185
        %v4902 = vmax.f32 %v4901, %v4191
        %v4903 = vmax.f32 %v4902, %v4197
        %v4904 = vmax.f32 %v4903, %v4203
        %v4905 = vmax.f32 %v4904, %v4209
        %v4906 = vrot.slane %v4905, 4
        %v4907 = vmax.f32 %v4905, %v4906
        %v4908 = vrot.slane %v4907, 2
        %v4909 = vmax.f32 %v4907, %v4908
        %v4910 = vrot.slane %v4909, 1
        %v4911 = vmax.f32 %v4909, %v4910
        %v4912 = vmax.f32 %v4121, %v4127
        %v4913 = vmax.f32 %v4912, %v4133
        %v4914 = vmax.f32 %v4913, %v4139
        %v4915 = vmax.f32 %v4914, %v4145
        %v4916 = vmax.f32 %v4915, %v4151
        %v4917 = vmax.f32 %v4916, %v4157
        %v4918 = vmax.f32 %v4917, %v4163
        %v4919 = vmax.f32 %v4918, %v4169
        %v4920 = vmax.f32 %v4919, %v4175
        %v4921 = vmax.f32 %v4920, %v4181
        %v4922 = vmax.f32 %v4921, %v4187
        %v4923 = vmax.f32 %v4922, %v4193
        %v4924 = vmax.f32 %v4923, %v4199
        %v4925 = vmax.f32 %v4924, %v4205
        %v4926 = vmax.f32 %v4925, %v4211
        %v4927 = vrot.slane %v4926, 4
        %v4928 = vmax.f32 %v4926, %v4927
        %v4929 = vrot.slane %v4928, 2
        %v4930 = vmax.f32 %v4928, %v4929
        %v4931 = vrot.slane %v4930, 1
        %v4932 = vmax.f32 %v4930, %v4931
        %v4933 = vmax.f32 %v3382, %v3388
        %v4934 = vmax.f32 %v4933, %v3394
        %v4935 = vmax.f32 %v4934, %v3400
        %v4936 = vmax.f32 %v4935, %v3406
        %v4937 = vmax.f32 %v4936, %v3412
        %v4938 = vmax.f32 %v4937, %v3418
        %v4939 = vmax.f32 %v4938, %v3424
        %v4940 = vmax.f32 %v4939, %v3430
        %v4941 = vmax.f32 %v4940, %v3436
        %v4942 = vmax.f32 %v4941, %v3442
        %v4943 = vmax.f32 %v4942, %v3448
        %v4944 = vmax.f32 %v4943, %v3454
        %v4945 = vmax.f32 %v4944, %v3460
        %v4946 = vmax.f32 %v4945, %v3466
        %v4947 = vmax.f32 %v4946, %v3472
        %v4948 = vrot.slane %v4947, 4
        %v4949 = vmax.f32 %v4947, %v4948
        %v4950 = vrot.slane %v4949, 2
        %v4951 = vmax.f32 %v4949, %v4950
        %v4952 = vrot.slane %v4951, 1
        %v4953 = vmax.f32 %v4951, %v4952
        %v4954 = vmax.f32 %v3384, %v3390
        %v4955 = vmax.f32 %v4954, %v3396
        %v4956 = vmax.f32 %v4955, %v3402
        %v4957 = vmax.f32 %v4956, %v3408
        %v4958 = vmax.f32 %v4957, %v3414
        %v4959 = vmax.f32 %v4958, %v3420
        %v4960 = vmax.f32 %v4959, %v3426
        %v4961 = vmax.f32 %v4960, %v3432
        %v4962 = vmax.f32 %v4961, %v3438
        %v4963 = vmax.f32 %v4962, %v3444
        %v4964 = vmax.f32 %v4963, %v3450
        %v4965 = vmax.f32 %v4964, %v3456
        %v4966 = vmax.f32 %v4965, %v3462
        %v4967 = vmax.f32 %v4966, %v3468
        %v4968 = vmax.f32 %v4967, %v3474
        %v4969 = vrot.slane %v4968, 4
        %v4970 = vmax.f32 %v4968, %v4969
        %v4971 = vrot.slane %v4970, 2
        %v4972 = vmax.f32 %v4970, %v4971
        %v4973 = vrot.slane %v4972, 1
        %v4974 = vmax.f32 %v4972, %v4973
        %v4975 = vmax.f32 %v4215, %v4221
        %v4976 = vmax.f32 %v4975, %v4227
        %v4977 = vmax.f32 %v4976, %v4233
        %v4978 = vmax.f32 %v4977, %v4239
        %v4979 = vmax.f32 %v4978, %v4245
        %v4980 = vmax.f32 %v4979, %v4251
        %v4981 = vmax.f32 %v4980, %v4257
        %v4982 = vmax.f32 %v4981, %v4263
        %v4983 = vmax.f32 %v4982, %v4269
        %v4984 = vmax.f32 %v4983, %v4275
        %v4985 = vmax.f32 %v4984, %v4281
        %v4986 = vmax.f32 %v4985, %v4287
        %v4987 = vmax.f32 %v4986, %v4293
        %v4988 = vmax.f32 %v4987, %v4299
        %v4989 = vmax.f32 %v4988, %v4305
        %v4990 = vrot.slane %v4989, 4
        %v4991 = vmax.f32 %v4989, %v4990
        %v4992 = vrot.slane %v4991, 2
        %v4993 = vmax.f32 %v4991, %v4992
        %v4994 = vrot.slane %v4993, 1
        %v4995 = vmax.f32 %v4993, %v4994
        %v4996 = vmax.f32 %v4217, %v4223
        %v4997 = vmax.f32 %v4996, %v4229
        %v4998 = vmax.f32 %v4997, %v4235
        %v4999 = vmax.f32 %v4998, %v4241
        %v5000 = vmax.f32 %v4999, %v4247
        %v5001 = vmax.f32 %v5000, %v4253
        %v5002 = vmax.f32 %v5001, %v4259
        %v5003 = vmax.f32 %v5002, %v4265
        %v5004 = vmax.f32 %v5003, %v4271
        %v5005 = vmax.f32 %v5004, %v4277
        %v5006 = vmax.f32 %v5005, %v4283
        %v5007 = vmax.f32 %v5006, %v4289
        %v5008 = vmax.f32 %v5007, %v4295
        %v5009 = vmax.f32 %v5008, %v4301
        %v5010 = vmax.f32 %v5009, %v4307
        %v5011 = vrot.slane %v5010, 4
        %v5012 = vmax.f32 %v5010, %v5011
        %v5013 = vrot.slane %v5012, 2
        %v5014 = vmax.f32 %v5012, %v5013
        %v5015 = vrot.slane %v5014, 1
        %v5016 = vmax.f32 %v5014, %v5015
        %v5017 = vmax.f32 %v3478, %v3484
        %v5018 = vmax.f32 %v5017, %v3490
        %v5019 = vmax.f32 %v5018, %v3496
        %v5020 = vmax.f32 %v5019, %v3502
        %v5021 = vmax.f32 %v5020, %v3508
        %v5022 = vmax.f32 %v5021, %v3514
        %v5023 = vmax.f32 %v5022, %v3520
        %v5024 = vmax.f32 %v5023, %v3526
        %v5025 = vmax.f32 %v5024, %v3532
        %v5026 = vmax.f32 %v5025, %v3538
        %v5027 = vmax.f32 %v5026, %v3544
        %v5028 = vmax.f32 %v5027, %v3550
        %v5029 = vmax.f32 %v5028, %v3556
        %v5030 = vmax.f32 %v5029, %v3562
        %v5031 = vmax.f32 %v5030, %v3568
        %v5032 = vrot.slane %v5031, 4
        %v5033 = vmax.f32 %v5031, %v5032
        %v5034 = vrot.slane %v5033, 2
        %v5035 = vmax.f32 %v5033, %v5034
        %v5036 = vrot.slane %v5035, 1
        %v5037 = vmax.f32 %v5035, %v5036
        %v5038 = vmax.f32 %v3480, %v3486
        %v5039 = vmax.f32 %v5038, %v3492
        %v5040 = vmax.f32 %v5039, %v3498
        %v5041 = vmax.f32 %v5040, %v3504
        %v5042 = vmax.f32 %v5041, %v3510
        %v5043 = vmax.f32 %v5042, %v3516
        %v5044 = vmax.f32 %v5043, %v3522
        %v5045 = vmax.f32 %v5044, %v3528
        %v5046 = vmax.f32 %v5045, %v3534
        %v5047 = vmax.f32 %v5046, %v3540
        %v5048 = vmax.f32 %v5047, %v3546
        %v5049 = vmax.f32 %v5048, %v3552
        %v5050 = vmax.f32 %v5049, %v3558
        %v5051 = vmax.f32 %v5050, %v3564
        %v5052 = vmax.f32 %v5051, %v3570
        %v5053 = vrot.slane %v5052, 4
        %v5054 = vmax.f32 %v5052, %v5053
        %v5055 = vrot.slane %v5054, 2
        %v5056 = vmax.f32 %v5054, %v5055
        %v5057 = vrot.slane %v5056, 1
        %v5058 = vmax.f32 %v5056, %v5057
        %v5059 = vmax.f32 %v4311, %v4317
        %v5060 = vmax.f32 %v5059, %v4323
        %v5061 = vmax.f32 %v5060, %v4329
        %v5062 = vmax.f32 %v5061, %v4335
        %v5063 = vmax.f32 %v5062, %v4341
        %v5064 = vmax.f32 %v5063, %v4347
        %v5065 = vmax.f32 %v5064, %v4353
        %v5066 = vmax.f32 %v5065, %v4359
        %v5067 = vmax.f32 %v5066, %v4365
        %v5068 = vmax.f32 %v5067, %v4371
        %v5069 = vmax.f32 %v5068, %v4377
        %v5070 = vmax.f32 %v5069, %v4383
        %v5071 = vmax.f32 %v5070, %v4389
        %v5072 = vmax.f32 %v5071, %v4395
        %v5073 = vmax.f32 %v5072, %v4401
        %v5074 = vrot.slane %v5073, 4
        %v5075 = vmax.f32 %v5073, %v5074
        %v5076 = vrot.slane %v5075, 2
        %v5077 = vmax.f32 %v5075, %v5076
        %v5078 = vrot.slane %v5077, 1
        %v5079 = vmax.f32 %v5077, %v5078
        %v5080 = vmax.f32 %v4313, %v4319
        %v5081 = vmax.f32 %v5080, %v4325
        %v5082 = vmax.f32 %v5081, %v4331
        %v5083 = vmax.f32 %v5082, %v4337
        %v5084 = vmax.f32 %v5083, %v4343
        %v5085 = vmax.f32 %v5084, %v4349
        %v5086 = vmax.f32 %v5085, %v4355
        %v5087 = vmax.f32 %v5086, %v4361
        %v5088 = vmax.f32 %v5087, %v4367
        %v5089 = vmax.f32 %v5088, %v4373
        %v5090 = vmax.f32 %v5089, %v4379
        %v5091 = vmax.f32 %v5090, %v4385
        %v5092 = vmax.f32 %v5091, %v4391
        %v5093 = vmax.f32 %v5092, %v4397
        %v5094 = vmax.f32 %v5093, %v4403
        %v5095 = vrot.slane %v5094, 4
        %v5096 = vmax.f32 %v5094, %v5095
        %v5097 = vrot.slane %v5096, 2
        %v5098 = vmax.f32 %v5096, %v5097
        %v5099 = vrot.slane %v5098, 1
        %v5100 = vmax.f32 %v5098, %v5099
        %v5101 = vmax.f32 %v3574, %v3580
        %v5102 = vmax.f32 %v5101, %v3586
        %v5103 = vmax.f32 %v5102, %v3592
        %v5104 = vmax.f32 %v5103, %v3598
        %v5105 = vmax.f32 %v5104, %v3604
        %v5106 = vmax.f32 %v5105, %v3610
        %v5107 = vmax.f32 %v5106, %v3616
        %v5108 = vmax.f32 %v5107, %v3622
        %v5109 = vmax.f32 %v5108, %v3628
        %v5110 = vmax.f32 %v5109, %v3634
        %v5111 = vmax.f32 %v5110, %v3640
        %v5112 = vmax.f32 %v5111, %v3646
        %v5113 = vmax.f32 %v5112, %v3652
        %v5114 = vmax.f32 %v5113, %v3658
        %v5115 = vmax.f32 %v5114, %v3664
        %v5116 = vrot.slane %v5115, 4
        %v5117 = vmax.f32 %v5115, %v5116
        %v5118 = vrot.slane %v5117, 2
        %v5119 = vmax.f32 %v5117, %v5118
        %v5120 = vrot.slane %v5119, 1
        %v5121 = vmax.f32 %v5119, %v5120
        %v5122 = vmax.f32 %v3576, %v3582
        %v5123 = vmax.f32 %v5122, %v3588
        %v5124 = vmax.f32 %v5123, %v3594
        %v5125 = vmax.f32 %v5124, %v3600
        %v5126 = vmax.f32 %v5125, %v3606
        %v5127 = vmax.f32 %v5126, %v3612
        %v5128 = vmax.f32 %v5127, %v3618
        %v5129 = vmax.f32 %v5128, %v3624
        %v5130 = vmax.f32 %v5129, %v3630
        %v5131 = vmax.f32 %v5130, %v3636
        %v5132 = vmax.f32 %v5131, %v3642
        %v5133 = vmax.f32 %v5132, %v3648
        %v5134 = vmax.f32 %v5133, %v3654
        %v5135 = vmax.f32 %v5134, %v3660
        %v5136 = vmax.f32 %v5135, %v3666
        %v5137 = vrot.slane %v5136, 4
        %v5138 = vmax.f32 %v5136, %v5137
        %v5139 = vrot.slane %v5138, 2
        %v5140 = vmax.f32 %v5138, %v5139
        %v5141 = vrot.slane %v5140, 1
        %v5142 = vmax.f32 %v5140, %v5141
        %v5143 = vmax.f32 %v4407, %v4413
        %v5144 = vmax.f32 %v5143, %v4419
        %v5145 = vmax.f32 %v5144, %v4425
        %v5146 = vmax.f32 %v5145, %v4431
        %v5147 = vmax.f32 %v5146, %v4437
        %v5148 = vmax.f32 %v5147, %v4443
        %v5149 = vmax.f32 %v5148, %v4449
        %v5150 = vmax.f32 %v5149, %v4455
        %v5151 = vmax.f32 %v5150, %v4461
        %v5152 = vmax.f32 %v5151, %v4467
        %v5153 = vmax.f32 %v5152, %v4473
        %v5154 = vmax.f32 %v5153, %v4479
        %v5155 = vmax.f32 %v5154, %v4485
        %v5156 = vmax.f32 %v5155, %v4491
        %v5157 = vmax.f32 %v5156, %v4497
        %v5158 = vrot.slane %v5157, 4
        %v5159 = vmax.f32 %v5157, %v5158
        %v5160 = vrot.slane %v5159, 2
        %v5161 = vmax.f32 %v5159, %v5160
        %v5162 = vrot.slane %v5161, 1
        %v5163 = vmax.f32 %v5161, %v5162
        %v5164 = vmax.f32 %v4409, %v4415
        %v5165 = vmax.f32 %v5164, %v4421
        %v5166 = vmax.f32 %v5165, %v4427
        %v5167 = vmax.f32 %v5166, %v4433
        %v5168 = vmax.f32 %v5167, %v4439
        %v5169 = vmax.f32 %v5168, %v4445
        %v5170 = vmax.f32 %v5169, %v4451
        %v5171 = vmax.f32 %v5170, %v4457
        %v5172 = vmax.f32 %v5171, %v4463
        %v5173 = vmax.f32 %v5172, %v4469
        %v5174 = vmax.f32 %v5173, %v4475
        %v5175 = vmax.f32 %v5174, %v4481
        %v5176 = vmax.f32 %v5175, %v4487
        %v5177 = vmax.f32 %v5176, %v4493
        %v5178 = vmax.f32 %v5177, %v4499
        %v5179 = vrot.slane %v5178, 4
        %v5180 = vmax.f32 %v5178, %v5179
        %v5181 = vrot.slane %v5180, 2
        %v5182 = vmax.f32 %v5180, %v5181
        %v5183 = vrot.slane %v5182, 1
        %v5184 = vmax.f32 %v5182, %v5183
        %v5185 = vmax.f32 %v3670, %v3676
        %v5186 = vmax.f32 %v5185, %v3682
        %v5187 = vmax.f32 %v5186, %v3688
        %v5188 = vmax.f32 %v5187, %v3694
        %v5189 = vmax.f32 %v5188, %v3700
        %v5190 = vmax.f32 %v5189, %v3706
        %v5191 = vmax.f32 %v5190, %v3712
        %v5192 = vmax.f32 %v5191, %v3718
        %v5193 = vmax.f32 %v5192, %v3724
        %v5194 = vmax.f32 %v5193, %v3730
        %v5195 = vmax.f32 %v5194, %v3736
        %v5196 = vmax.f32 %v5195, %v3742
        %v5197 = vmax.f32 %v5196, %v3748
        %v5198 = vmax.f32 %v5197, %v3754
        %v5199 = vmax.f32 %v5198, %v3760
        %v5200 = vrot.slane %v5199, 4
        %v5201 = vmax.f32 %v5199, %v5200
        %v5202 = vrot.slane %v5201, 2
        %v5203 = vmax.f32 %v5201, %v5202
        %v5204 = vrot.slane %v5203, 1
        %v5205 = vmax.f32 %v5203, %v5204
        %v5206 = vmax.f32 %v3672, %v3678
        %v5207 = vmax.f32 %v5206, %v3684
        %v5208 = vmax.f32 %v5207, %v3690
        %v5209 = vmax.f32 %v5208, %v3696
        %v5210 = vmax.f32 %v5209, %v3702
        %v5211 = vmax.f32 %v5210, %v3708
        %v5212 = vmax.f32 %v5211, %v3714
        %v5213 = vmax.f32 %v5212, %v3720
        %v5214 = vmax.f32 %v5213, %v3726
        %v5215 = vmax.f32 %v5214, %v3732
        %v5216 = vmax.f32 %v5215, %v3738
        %v5217 = vmax.f32 %v5216, %v3744
        %v5218 = vmax.f32 %v5217, %v3750
        %v5219 = vmax.f32 %v5218, %v3756
        %v5220 = vmax.f32 %v5219, %v3762
        %v5221 = vrot.slane %v5220, 4
        %v5222 = vmax.f32 %v5220, %v5221
        %v5223 = vrot.slane %v5222, 2
        %v5224 = vmax.f32 %v5222, %v5223
        %v5225 = vrot.slane %v5224, 1
        %v5226 = vmax.f32 %v5224, %v5225
        %v5227 = vmax.f32 %v4503, %v4509
        %v5228 = vmax.f32 %v5227, %v4515
        %v5229 = vmax.f32 %v5228, %v4521
        %v5230 = vmax.f32 %v5229, %v4527
        %v5231 = vmax.f32 %v5230, %v4533
        %v5232 = vmax.f32 %v5231, %v4539
        %v5233 = vmax.f32 %v5232, %v4545
        %v5234 = vmax.f32 %v5233, %v4551
        %v5235 = vmax.f32 %v5234, %v4557
        %v5236 = vmax.f32 %v5235, %v4563
        %v5237 = vmax.f32 %v5236, %v4569
        %v5238 = vmax.f32 %v5237, %v4575
        %v5239 = vmax.f32 %v5238, %v4581
        %v5240 = vmax.f32 %v5239, %v4587
        %v5241 = vmax.f32 %v5240, %v4593
        %v5242 = vrot.slane %v5241, 4
        %v5243 = vmax.f32 %v5241, %v5242
        %v5244 = vrot.slane %v5243, 2
        %v5245 = vmax.f32 %v5243, %v5244
        %v5246 = vrot.slane %v5245, 1
        %v5247 = vmax.f32 %v5245, %v5246
        %v5248 = vmax.f32 %v4505, %v4511
        %v5249 = vmax.f32 %v5248, %v4517
        %v5250 = vmax.f32 %v5249, %v4523
        %v5251 = vmax.f32 %v5250, %v4529
        %v5252 = vmax.f32 %v5251, %v4535
        %v5253 = vmax.f32 %v5252, %v4541
        %v5254 = vmax.f32 %v5253, %v4547
        %v5255 = vmax.f32 %v5254, %v4553
        %v5256 = vmax.f32 %v5255, %v4559
        %v5257 = vmax.f32 %v5256, %v4565
        %v5258 = vmax.f32 %v5257, %v4571
        %v5259 = vmax.f32 %v5258, %v4577
        %v5260 = vmax.f32 %v5259, %v4583
        %v5261 = vmax.f32 %v5260, %v4589
        %v5262 = vmax.f32 %v5261, %v4595
        %v5263 = vrot.slane %v5262, 4
        %v5264 = vmax.f32 %v5262, %v5263
        %v5265 = vrot.slane %v5264, 2
        %v5266 = vmax.f32 %v5264, %v5265
        %v5267 = vrot.slane %v5266, 1
        %v5268 = vmax.f32 %v5266, %v5267
        %v5269 = vld [vmem:[%s6] sm:$0xf]
        %v5271 = vlaneseq
        %v5272 = vshrl.u32 %v5271, 7
        %v5273 = vsub.s32 0, %v5272
        %v5274 = vrot.slane %v5269, %v5273
        %v5275 = vlaneseq
        %v5276 = vshrl.u32 %v5275, 7
        %v5277 = vsub.s32 1, %v5276
        %v5278 = vrot.slane %v5269, %v5277
        %v5279 = vlaneseq
        %v5280 = vshrl.u32 %v5279, 7
        %v5281 = vsub.s32 2, %v5280
        %v5282 = vrot.slane %v5269, %v5281
        %v5283 = vlaneseq
        %v5284 = vshrl.u32 %v5283, 7
        %v5285 = vsub.s32 3, %v5284
        %v5286 = vrot.slane %v5269, %v5285
        %v5291 = vadd.f32 %v4617, %v5274
        %v5292 = vadd.f32 %v4638, %v5278
        %v5293 = vadd.f32 %v4659, %v5282
        %v5294 = vadd.f32 %v4680, %v5286
        %v5295 = vadd.f32 %v4701, %v5274
        %v5296 = vadd.f32 %v4722, %v5278
        %v5297 = vadd.f32 %v4743, %v5282
        %v5298 = vadd.f32 %v4764, %v5286
        %v5299 = vadd.f32 %v4785, %v5274
        %v5300 = vadd.f32 %v4806, %v5278
        %v5301 = vadd.f32 %v4827, %v5282
        %v5302 = vadd.f32 %v4848, %v5286
        %v5303 = vadd.f32 %v4869, %v5274
        %v5304 = vadd.f32 %v4890, %v5278
        %v5305 = vadd.f32 %v4911, %v5282
        %v5306 = vadd.f32 %v4932, %v5286
        %v5307 = vadd.f32 %v4953, %v5274
        %v5308 = vadd.f32 %v4974, %v5278
        %v5309 = vadd.f32 %v4995, %v5282
        %v5310 = vadd.f32 %v5016, %v5286
        %v5311 = vadd.f32 %v5037, %v5274
        %v5312 = vadd.f32 %v5058, %v5278
        %v5313 = vadd.f32 %v5079, %v5282
        %v5314 = vadd.f32 %v5100, %v5286
        %v5315 = vadd.f32 %v5121, %v5274
        %v5316 = vadd.f32 %v5142, %v5278
        %v5317 = vadd.f32 %v5163, %v5282
        %v5318 = vadd.f32 %v5184, %v5286
        %v5319 = vadd.f32 %v5205, %v5274
        %v5320 = vadd.f32 %v5226, %v5278
        %v5321 = vadd.f32 %v5247, %v5282
        %v5322 = vadd.f32 %v5268, %v5286
        %v5323 = vmax.f32 %v5291, 0.0
        %v5324 = vmax.f32 %v5292, 0.0
        %v5325 = vmax.f32 %v5293, 0.0
        %v5326 = vmax.f32 %v5294, 0.0
        %v5327 = vmax.f32 %v5295, 0.0
        %v5328 = vmax.f32 %v5296, 0.0
        %v5329 = vmax.f32 %v5297, 0.0
        %v5330 = vmax.f32 %v5298, 0.0
        %v5331 = vmax.f32 %v5299, 0.0
        %v5332 = vmax.f32 %v5300, 0.0
        %v5333 = vmax.f32 %v5301, 0.0
        %v5334 = vmax.f32 %v5302, 0.0
        %v5335 = vmax.f32 %v5303, 0.0
        %v5336 = vmax.f32 %v5304, 0.0
        %v5337 = vmax.f32 %v5305, 0.0
        %v5338 = vmax.f32 %v5306, 0.0
        %v5339 = vmax.f32 %v5307, 0.0
        %v5340 = vmax.f32 %v5308, 0.0
        %v5341 = vmax.f32 %v5309, 0.0
        %v5342 = vmax.f32 %v5310, 0.0
        %v5343 = vmax.f32 %v5311, 0.0
        %v5344 = vmax.f32 %v5312, 0.0
        %v5345 = vmax.f32 %v5313, 0.0
        %v5346 = vmax.f32 %v5314, 0.0
        %v5347 = vmax.f32 %v5315, 0.0
        %v5348 = vmax.f32 %v5316, 0.0
        %v5349 = vmax.f32 %v5317, 0.0
        %v5350 = vmax.f32 %v5318, 0.0
        %v5351 = vmax.f32 %v5319, 0.0
        %v5352 = vmax.f32 %v5320, 0.0
        %v5353 = vmax.f32 %v5321, 0.0
        %v5354 = vmax.f32 %v5322, 0.0
        %v5387 = vrot.slane %v5327, 7
        %vm5388 = vcmask 1041409
        %v5389 = vsel %vm5388, %v5387, %v5323
        %v5390 = vrot.slane %v5331, 6
        %vm5391 = vcmask 1042434
        %v5392 = vsel %vm5391, %v5390, %v5389
        %v5393 = vrot.slane %v5335, 5
        %vm5394 = vcmask 1043459
        %v5395 = vsel %vm5394, %v5393, %v5392
        %v5396 = vrot.slane %v5339, 4
        %vm5397 = vcmask 1044484
        %v5398 = vsel %vm5397, %v5396, %v5395
        %v5399 = vrot.slane %v5343, 3
        %vm5400 = vcmask 1045509
        %v5401 = vsel %vm5400, %v5399, %v5398
        %v5402 = vrot.slane %v5347, 2
        %vm5403 = vcmask 1046534
        %v5404 = vsel %vm5403, %v5402, %v5401
        %v5405 = vrot.slane %v5351, 1
        %vm5406 = vcmask 1047559
        %v5407 = vsel %vm5406, %v5405, %v5404
        %v5408 = vrot.slane %v5328, 7
        %v5409 = vsel %vm5388, %v5408, %v5324
        %v5410 = vrot.slane %v5332, 6
        %v5411 = vsel %vm5391, %v5410, %v5409
        %v5412 = vrot.slane %v5336, 5
        %v5413 = vsel %vm5394, %v5412, %v5411
        %v5414 = vrot.slane %v5340, 4
        %v5415 = vsel %vm5397, %v5414, %v5413
        %v5416 = vrot.slane %v5344, 3
        %v5417 = vsel %vm5400, %v5416, %v5415
        %v5418 = vrot.slane %v5348, 2
        %v5419 = vsel %vm5403, %v5418, %v5417
        %v5420 = vrot.slane %v5352, 1
        %v5421 = vsel %vm5406, %v5420, %v5419
        %v5422 = vrot.slane %v5329, 7
        %v5423 = vsel %vm5388, %v5422, %v5325
        %v5424 = vrot.slane %v5333, 6
        %v5425 = vsel %vm5391, %v5424, %v5423
        %v5426 = vrot.slane %v5337, 5
        %v5427 = vsel %vm5394, %v5426, %v5425
        %v5428 = vrot.slane %v5341, 4
        %v5429 = vsel %vm5397, %v5428, %v5427
        %v5430 = vrot.slane %v5345, 3
        %v5431 = vsel %vm5400, %v5430, %v5429
        %v5432 = vrot.slane %v5349, 2
        %v5433 = vsel %vm5403, %v5432, %v5431
        %v5434 = vrot.slane %v5353, 1
        %v5435 = vsel %vm5406, %v5434, %v5433
        %v5436 = vrot.slane %v5330, 7
        %v5437 = vsel %vm5388, %v5436, %v5326
        %v5438 = vrot.slane %v5334, 6
        %v5439 = vsel %vm5391, %v5438, %v5437
        %v5440 = vrot.slane %v5338, 5
        %v5441 = vsel %vm5394, %v5440, %v5439
        %v5442 = vrot.slane %v5342, 4
        %v5443 = vsel %vm5397, %v5442, %v5441
        %v5444 = vrot.slane %v5346, 3
        %v5445 = vsel %vm5400, %v5444, %v5443
        %v5446 = vrot.slane %v5350, 2
        %v5447 = vsel %vm5403, %v5446, %v5445
        %v5448 = vrot.slane %v5354, 1
        %v5449 = vsel %vm5406, %v5448, %v5447
        %5454 = vst [vmem:[%s272] sm:$0xff] %v5407
        %5455 = vst [vmem:[%s272 + $0x8] sm:$0xff] %v5421
        %5456 = vst [vmem:[%s272 + $0x10] sm:$0xff] %v5435
        %5457 = vst [vmem:[%s272 + $0x18] sm:$0xff] %v5449
        %s5458 = sand.u32 %s181, 1
        %s5459 = scalar_lea.sflag [#allocation3], %s5458
        %s5460 = sand.u32 %s181, 1
        %s5461 = smul.addr %s5460, 32
        %s5462 = scalar_lea.vmem [#allocation2], %s5461
        // Predicated region
        $region49: #{tpu_custom_call.1} parent=47 // pred_check
          %p5463 = pneg %p191
        $region50: #{tpu_custom_call.1} parent=47 // pred_check_branch
          %5465 = sbr.rel (%p5463) target = $region52
        $region51: #{tpu_custom_call.1} parent=47 // pred_region
          %s5467 = ssub.s32 512, 512
          %5468 = vsyncadd %s5459, %s5467
          %s5469 = smul.addr %s21, 4
          %s5470 = smul.addr %s5469, 128
          %s5471 = scalar_lea.hbm %s7, %s5470
          %s5473 = sshll.u32 %s5462, 4
          %s5474 = int_to_ptr.vmem [resolvable:$true] %s5473
          %5476 = dma.vmem_to_hbm [thread:$0]  %s5474, 512, %s5471, %s5459
        $region52: #{tpu_custom_call.1} parent=47 // pred_fallthru
          _
      $region48: #{tpu_custom_call.1} parent=5 // pred_fallthru
        _
      %p5477 = scmp.le.s32.totalorder 2, %s16
      // Predicated region
      $region53: #{tpu_custom_call.1} parent=5 // pred_check
        %p5478 = pneg %p5477
      $region54: #{tpu_custom_call.1} parent=5 // pred_check_branch
        %5480 = sbr.rel (%p5478) target = $region56
      $region55: #{tpu_custom_call.1} parent=5 // pred_region
        %s5481 = ssub.s32 %s16, 2
        // Predicated region
        $region57: #{tpu_custom_call.1} parent=55 // pred_check
          %p5482 = pneg %p197
        $region58: #{tpu_custom_call.1} parent=55 // pred_check_branch
          %5484 = sbr.rel (%p5482) target = $region60
        $region59: #{tpu_custom_call.1} parent=55 // pred_region
          %s5485 = sand.u32 %s182, 1
          %s5486 = scalar_lea.sflag [#allocation3], %s5485
          %s5487 = sand.u32 %s182, 1
          %s5488 = smul.addr %s5487, 32
          %s5489 = scalar_lea.vmem [#allocation2], %s5488
          %5490 = dma.done %s5486, 512
        $region60: #{tpu_custom_call.1} parent=55 // pred_fallthru
          _
      $region56: #{tpu_custom_call.1} parent=5 // pred_fallthru
        _
    $region6: #{tpu_custom_call.1} parent=1 // loop_footer
      %s20 = sadd.s32 1, %s16
    $region7: #{tpu_custom_call.1} parent=1 // loop_footer_branch
      %15 = sbr.rel target = $region3
    $region8: #{tpu_custom_call.1} parent=1 // loop_exit
      _
    %5491 = vsyncpa [#allocation3], 1
    %s5492 = scalar_lea.sflag [#allocation3], 1
    %5493 = vsyncpa %s5492, 1

</llo_original>
